<compile_context>
chip_gen: v7x
topology: tpu7x:2x2x1
jax: 0.10.0
libtpu: 0.0.40
codegen_flags: <defaults>
</compile_context>

<pallas_src>
import math
from functools import partial

import jax
import jax.numpy as jnp
from jax.experimental import pallas as pl
from jax.experimental.pallas import tpu as pltpu


# ----------------------------- in-kernel helpers ------------------------------

def _layer_norm(x, gamma, beta, eps=1e-5):
    mu = jnp.mean(x, axis=-1, keepdims=True)
    var = jnp.mean((x - mu) ** 2, axis=-1, keepdims=True)
    return (x - mu) * jax.lax.rsqrt(var + eps) * gamma + beta


# ------------------------- fused decoder-layer kernel --------------------------
# One grid step = one batch element. QKV projections, K/V compression, masked
# softmax attention, output projection, residual + LN, feed-forward,
# residual + LN — all fused.

def decoder_layer_kernel(x_ref,
                         wqh_ref, bqh_ref,
                         wk_ref, bk_ref, wv_ref, bv_ref,
                         wckh_ref, bckh_ref, wcvh_ref, bcvh_ref,
                         woh_ref, bo_ref,
                         g1_ref, be1_ref,
                         wf1_ref, bf1_ref, wf2_ref, bf2_ref,
                         g2_ref, be2_ref,
                         o_ref, *, num_heads, compress):
    f32, bf16 = jnp.float32, jnp.bfloat16
    x = x_ref[0]                                  # (S, D) f32
    S, D = x.shape
    H = num_heads
    dh = D // H
    c = compress
    Sc = S // c
    x_bf = x.astype(bf16)

    # --- K / V projections: full-width 2D matmuls (bf16 in, f32 accumulate) -----
    k = jnp.dot(x_bf, wk_ref[...], preferred_element_type=f32) + bk_ref[...]
    v = jnp.dot(x_bf, wv_ref[...], preferred_element_type=f32) + bv_ref[...]

    # --- Q projection directly in head-batched (H, S, dh) layout ----------------
    x_b = jnp.broadcast_to(x_bf[None, :, :], (H, S, D))             # hoisted once
    qh = jax.lax.dot_general(
        x_b, wqh_ref[...], (((2,), (1,)), ((0,), (0,))),
        preferred_element_type=f32) + bqh_ref[...]                    # (H, S, dh)

    # --- memory compression of K/V, emitted head-split ---------------------------
    # k_c[h, j, :] = sum_t k[j*c + t, :] @ Wck[t, h] + bck[h]
    # (sublane-split (Sc, c, D) view; no (Sc, c*D) lane-folding reshape)
    k3 = k.astype(bf16).reshape(Sc, c, D)
    v3 = v.astype(bf16).reshape(Sc, c, D)
    kch = jnp.zeros((H, Sc, dh), f32)
    vch = jnp.zeros((H, Sc, dh), f32)
    for t in range(c):                            # c is small & static (unrolled)
        kt = jnp.broadcast_to(k3[:, t, :][None, :, :], (H, Sc, D))
        vt = jnp.broadcast_to(v3[:, t, :][None, :, :], (H, Sc, D))
        kch = kch + jax.lax.dot_general(
            kt, wckh_ref[t], (((2,), (1,)), ((0,), (0,))),
            preferred_element_type=f32)
        vch = vch + jax.lax.dot_general(
            vt, wcvh_ref[t], (((2,), (1,)), ((0,), (0,))),
            preferred_element_type=f32)
    kch = kch + bckh_ref[...]                                        # (H, Sc, dh)
    vch = vch + bcvh_ref[...]

    # --- causal mask at compressed granularity ----------------------------------
    qi = jax.lax.broadcasted_iota(jnp.int32, (1, S, Sc), 1)
    kj = jax.lax.broadcasted_iota(jnp.int32, (1, S, Sc), 2)
    allow = (kj * c) <= qi                        # query i may see compressed slot j

    # --- batched-head attention (no transposes, no concat) -----------------------
    scale = 1.0 / math.sqrt(dh)
    s = jax.lax.dot_general(
        qh.astype(bf16), kch.astype(bf16), (((2,), (2,)), ((0,), (0,))),
        preferred_element_type=f32) * scale                          # (H, S, Sc)
    s = jnp.where(allow, s, -1e9)
    m = jnp.max(s, axis=-1, keepdims=True)
    p = jnp.exp(s - m)
    l = jnp.sum(p, axis=-1, keepdims=True)                           # (H, S, 1)
    o = jax.lax.dot_general(
        p.astype(bf16), vch.astype(bf16), (((2,), (1,)), ((0,), (0,))),
        preferred_element_type=f32)                                  # (H, S, dh)
    # normalize the small output tensor with an EUP reciprocal (not the probs)
    o = o * pl.reciprocal(l, approx=True)

    # --- output projection: sum_h o[h] @ Wo[h] (replaces lane concat) ------------
    attn3 = jax.lax.dot_general(
        o.astype(bf16), woh_ref[...], (((2,), (1,)), ((0,), (0,))),
        preferred_element_type=f32)                                  # (H, S, D)
    attn = jnp.sum(attn3, axis=0) + bo_ref[...]                      # (S, D)

    # dropout_p == 0.0 -> dropout is identity
    y = _layer_norm(attn + x, g1_ref[...], be1_ref[...])

    # --- feed-forward ------------------------------------------------------------
    y_bf = y.astype(bf16)
    h1 = jnp.maximum(
        jnp.dot(y_bf, wf1_ref[...], preferred_element_type=f32) + bf1_ref[...], 0.0)
    ff = jnp.dot(h1.astype(bf16), wf2_ref[...],
                 preferred_element_type=f32) + bf2_ref[...]
    o_ref[0] = _layer_norm(ff + y, g2_ref[...], be2_ref[...])


def prep_layer_params(p, *, num_heads, factor, d_model):
    """Pre-split / pre-transpose weights in plain JAX (one-time, outside kernel)."""
    D, H, c = d_model, num_heads, factor
    dh = D // H
    bf = lambda a: a.astype(jnp.bfloat16)
    return [
        bf(p["wq"].reshape(D, H, dh).transpose(1, 0, 2)),            # (H, D, dh)
        p["bq"].reshape(H, 1, dh),                                   # (H, 1, dh)
        bf(p["wk"]), p["bk"],
        bf(p["wv"]), p["bv"],
        bf(p["wck"].reshape(c, D, H, dh).transpose(0, 2, 1, 3)),     # (c, H, D, dh)
        p["bck"].reshape(H, 1, dh),
        bf(p["wcv"].reshape(c, D, H, dh).transpose(0, 2, 1, 3)),
        p["bcv"].reshape(H, 1, dh),
        bf(p["wo"].reshape(H, dh, D)),                               # (H, dh, D)
        p["bo"],
        p["g1"], p["be1"],
        bf(p["wf1"]), p["bf1"],
        bf(p["wf2"]), p["bf2"],
        p["g2"], p["be2"],
    ]


def run_decoder_layer(x, params, *, num_heads, compress):
    B, S, D = x.shape
    assert D % num_heads == 0, "d_model must be divisible by num_heads"
    assert S % compress == 0, "seq_len must be divisible by the compression factor"

    weights = prep_layer_params(params, num_heads=num_heads,
                                factor=compress, d_model=D)

    in_specs = [pl.BlockSpec((1, S, D), lambda b: (b, 0, 0))]
    for w in weights:
        in_specs.append(pl.BlockSpec(w.shape, lambda b, nd=w.ndim: (0,) * nd))

    return pl.pallas_call(
        partial(decoder_layer_kernel, num_heads=num_heads, compress=compress),
        out_shape=jax.ShapeDtypeStruct((B, S, D), jnp.float32),
        grid=(B,),
        in_specs=in_specs,
        out_specs=pl.BlockSpec((1, S, D), lambda b: (b, 0, 0)),
        compiler_params=pltpu.CompilerParams(
            dimension_semantics=("parallel",),
            vmem_limit_bytes=48 * 1024 * 1024),
    )(x, *weights)


# --------------------------- tied output-projection kernel ---------------------

def logits_kernel(x_ref, et_ref, o_ref):
    # out = x @ E^T, with E^T pre-transposed to (D, V) in the wrapper (no in-kernel
    # transpose); one vocab tile per grid step.
    o_ref[0] = jnp.dot(x_ref[0].astype(jnp.bfloat16), et_ref[...],
                       preferred_element_type=jnp.float32)


def _pick_vocab_tile(V):
    for tv in (2048, 1024, 512, 256, 128):
        if V % tv == 0:
            return tv
    return V


def run_logits(x, embed_w_t):
    B, S, D = x.shape
    V = embed_w_t.shape[1]
    TV = _pick_vocab_tile(V)
    return pl.pallas_call(
        logits_kernel,
        out_shape=jax.ShapeDtypeStruct((B, S, V), jnp.float32),
        grid=(B, V // TV),
        in_specs=[pl.BlockSpec((1, S, D), lambda b, j: (b, 0, 0)),
                  pl.BlockSpec((D, TV), lambda b, j: (0, j))],
        out_specs=pl.BlockSpec((1, S, TV), lambda b, j: (b, 0, j)),
        compiler_params=pltpu.CompilerParams(
            dimension_semantics=("parallel", "parallel"),
            vmem_limit_bytes=48 * 1024 * 1024),
    )(x, embed_w_t)


# --------------------------------- model glue -----------------------------------

def sinusoidal_pe(seq_len, d_model):
    pos = jnp.arange(seq_len, dtype=jnp.float32)[:, None]
    i = jnp.arange(0, d_model, 2, dtype=jnp.float32)[None, :]
    angle = pos / jnp.power(10000.0, i / d_model)
    pe = jnp.zeros((seq_len, d_model), jnp.float32)
    pe = pe.at[:, 0::2].set(jnp.sin(angle))
    pe = pe.at[:, 1::2].set(jnp.cos(angle))
    return pe


def init_layer_params(key, d_model, factor):
    D = d_model
    ks = jax.random.split(key, 10)
    n = lambda k, shape: 0.02 * jax.random.normal(k, shape, jnp.float32)
    return {
        "wq": n(ks[0], (D, D)),           "bq": jnp.zeros((1, D), jnp.float32),
        "wk": n(ks[1], (D, D)),           "bk": jnp.zeros((1, D), jnp.float32),
        "wv": n(ks[2], (D, D)),           "bv": jnp.zeros((1, D), jnp.float32),
        "wck": n(ks[3], (factor * D, D)), "bck": jnp.zeros((1, D), jnp.float32),
        "wcv": n(ks[4], (factor * D, D)), "bcv": jnp.zeros((1, D), jnp.float32),
        "wo": n(ks[5], (D, D)),           "bo": jnp.zeros((1, D), jnp.float32),
        "g1": jnp.ones((1, D), jnp.float32), "be1": jnp.zeros((1, D), jnp.float32),
        "wf1": n(ks[6], (D, 4 * D)),      "bf1": jnp.zeros((1, 4 * D), jnp.float32),
        "wf2": n(ks[7], (4 * D, D)),      "bf2": jnp.zeros((1, D), jnp.float32),
        "g2": jnp.ones((1, D), jnp.float32), "be2": jnp.zeros((1, D), jnp.float32),
    }


def decoder_only_model(tokens, embed_w, layer_params, layer_factors, *,
                       d_model, num_heads):
    B, S = tokens.shape
    # embedding + scale + positional encoding (glue in plain JAX)
    x = jnp.take(embed_w, tokens, axis=0) * math.sqrt(d_model)      # (B, S, D)
    x = x + sinusoidal_pe(S, d_model)[None, :, :]
    # decoder layers (fused Pallas kernels, mask=True -> causal at block granularity)
    for p, factor in zip(layer_params, layer_factors):
        x = run_decoder_layer(x, p, num_heads=num_heads, compress=factor)
    # tied output projection: pre-transpose embedding to (D, V) bf16 in the wrapper
    return run_logits(x, embed_w.T.astype(jnp.bfloat16))


# ------------------------------------ main ---------------------------------------

if __name__ == "__main__":
    # small, shape-consistent config
    vocab_size = 64
    d_model = 32
    num_heads = 4
    num_layers = 2
    compress_factor = 2
    block_size = 4
    dropout_p = 0.0           # identity dropout -> deterministic
    batch, seq_len = 2, 8

    key = jax.random.PRNGKey(0)
    k_embed, k_tok, *k_layers = jax.random.split(key, 2 + num_layers)

    embed_w = 0.02 * jax.random.normal(k_embed, (vocab_size, d_model), jnp.float32)

    layer_factors = []
    layer_params = []
    for i in range(num_layers):
        factor = block_size if i % 2 == 0 else compress_factor   # local / compressed
        layer_factors.append(factor)
        layer_params.append(init_layer_params(k_layers[i], d_model, factor))

    tokens = jax.random.randint(k_tok, (batch, seq_len), 0, vocab_size, jnp.int32)

    logits = decoder_only_model(tokens, embed_w, layer_params, layer_factors,
                                d_model=d_model, num_heads=num_heads)
    logits = jax.block_until_ready(logits)

    assert logits.shape == (batch, seq_len, vocab_size)
    assert bool(jnp.all(jnp.isfinite(logits)))
    print("KERNEL_OK")
</pallas_src>

<mosaic_0001>
module attributes {stable_mosaic.version = 11 : i64} {
  func.func @decoder_layer_kernel(%arg0: i32, %arg1: memref<1x8x32xf32, #tpu.memory_space<vmem>>, %arg2: memref<4x32x8xbf16, #tpu.memory_space<vmem>>, %arg3: memref<4x1x8xf32, #tpu.memory_space<vmem>>, %arg4: memref<32x32xbf16, #tpu.memory_space<vmem>>, %arg5: memref<1x32xf32, #tpu.memory_space<vmem>>, %arg6: memref<32x32xbf16, #tpu.memory_space<vmem>>, %arg7: memref<1x32xf32, #tpu.memory_space<vmem>>, %arg8: memref<4x4x32x8xbf16, #tpu.memory_space<vmem>>, %arg9: memref<4x1x8xf32, #tpu.memory_space<vmem>>, %arg10: memref<4x4x32x8xbf16, #tpu.memory_space<vmem>>, %arg11: memref<4x1x8xf32, #tpu.memory_space<vmem>>, %arg12: memref<4x8x32xbf16, #tpu.memory_space<vmem>>, %arg13: memref<1x32xf32, #tpu.memory_space<vmem>>, %arg14: memref<1x32xf32, #tpu.memory_space<vmem>>, %arg15: memref<1x32xf32, #tpu.memory_space<vmem>>, %arg16: memref<32x128xbf16, #tpu.memory_space<vmem>>, %arg17: memref<1x128xf32, #tpu.memory_space<vmem>>, %arg18: memref<128x32xbf16, #tpu.memory_space<vmem>>, %arg19: memref<1x32xf32, #tpu.memory_space<vmem>>, %arg20: memref<1x32xf32, #tpu.memory_space<vmem>>, %arg21: memref<1x32xf32, #tpu.memory_space<vmem>>, %arg22: memref<1x8x32xf32, #tpu.memory_space<vmem>>) attributes {dimension_semantics = [#tpu.dimension_semantics<parallel>], iteration_bounds = array<i64: 2>, scalar_prefetch = 0 : i64, scratch_operands = 0 : i64, tpu.core_type = #tpu.core_type<tc>, window_params = [{transform_indices = @transform_0, window_bounds = array<i64: 1, 8, 32>}, {pipeline_mode = #tpu.pipeline_mode<synchronous>, transform_indices = @transform_1, window_bounds = array<i64: 4, 32, 8>}, {pipeline_mode = #tpu.pipeline_mode<synchronous>, transform_indices = @transform_2, window_bounds = array<i64: 4, 1, 8>}, {pipeline_mode = #tpu.pipeline_mode<synchronous>, transform_indices = @transform_3, window_bounds = array<i64: 32, 32>}, {pipeline_mode = #tpu.pipeline_mode<synchronous>, transform_indices = @transform_4, window_bounds = array<i64: 1, 32>}, {pipeline_mode = #tpu.pipeline_mode<synchronous>, transform_indices = @transform_5, window_bounds = array<i64: 32, 32>}, {pipeline_mode = #tpu.pipeline_mode<synchronous>, transform_indices = @transform_6, window_bounds = array<i64: 1, 32>}, {pipeline_mode = #tpu.pipeline_mode<synchronous>, transform_indices = @transform_7, window_bounds = array<i64: 4, 4, 32, 8>}, {pipeline_mode = #tpu.pipeline_mode<synchronous>, transform_indices = @transform_8, window_bounds = array<i64: 4, 1, 8>}, {pipeline_mode = #tpu.pipeline_mode<synchronous>, transform_indices = @transform_9, window_bounds = array<i64: 4, 4, 32, 8>}, {pipeline_mode = #tpu.pipeline_mode<synchronous>, transform_indices = @transform_10, window_bounds = array<i64: 4, 1, 8>}, {pipeline_mode = #tpu.pipeline_mode<synchronous>, transform_indices = @transform_11, window_bounds = array<i64: 4, 8, 32>}, {pipeline_mode = #tpu.pipeline_mode<synchronous>, transform_indices = @transform_12, window_bounds = array<i64: 1, 32>}, {pipeline_mode = #tpu.pipeline_mode<synchronous>, transform_indices = @transform_13, window_bounds = array<i64: 1, 32>}, {pipeline_mode = #tpu.pipeline_mode<synchronous>, transform_indices = @transform_14, window_bounds = array<i64: 1, 32>}, {pipeline_mode = #tpu.pipeline_mode<synchronous>, transform_indices = @transform_15, window_bounds = array<i64: 32, 128>}, {pipeline_mode = #tpu.pipeline_mode<synchronous>, transform_indices = @transform_16, window_bounds = array<i64: 1, 128>}, {pipeline_mode = #tpu.pipeline_mode<synchronous>, transform_indices = @transform_17, window_bounds = array<i64: 128, 32>}, {pipeline_mode = #tpu.pipeline_mode<synchronous>, transform_indices = @transform_18, window_bounds = array<i64: 1, 32>}, {pipeline_mode = #tpu.pipeline_mode<synchronous>, transform_indices = @transform_19, window_bounds = array<i64: 1, 32>}, {pipeline_mode = #tpu.pipeline_mode<synchronous>, transform_indices = @transform_20, window_bounds = array<i64: 1, 32>}, {transform_indices = @transform_21, window_bounds = array<i64: 1, 8, 32>}]} {
    %c0 = arith.constant 0 : index
    %c0_0 = arith.constant 0 : index
    %c0_1 = arith.constant 0 : index
    %0 = vector.load %arg1[%c0, %c0_0, %c0_1] : memref<1x8x32xf32, #tpu.memory_space<vmem>>, vector<1x8x32xf32>
    %1 = vector.shape_cast %0 : vector<1x8x32xf32> to vector<8x32xf32>
    %2 = arith.truncf %1 : vector<8x32xf32> to vector<8x32xbf16>
    %c0_2 = arith.constant 0 : index
    %c0_3 = arith.constant 0 : index
    %3 = vector.load %arg4[%c0_2, %c0_3] : memref<32x32xbf16, #tpu.memory_space<vmem>>, vector<32x32xbf16>
    %cst = arith.constant dense<0.000000e+00> : vector<8x32xf32>
    %4 = tpu.matmul %2, %3, %cst {dimension_numbers = #tpu.dot_dimension_numbers<[1], [0], [0], [1], [0, 0, 1, 1], [], []>} : vector<8x32xbf16>, vector<32x32xbf16>, vector<8x32xf32> -> vector<8x32xf32>
    %c0_4 = arith.constant 0 : index
    %c0_5 = arith.constant 0 : index
    %5 = vector.load %arg5[%c0_4, %c0_5] : memref<1x32xf32, #tpu.memory_space<vmem>>, vector<1x32xf32>
    %6 = vector.broadcast %5 : vector<1x32xf32> to vector<8x32xf32>
    %7 = arith.addf %4, %6 : vector<8x32xf32>
    %c0_6 = arith.constant 0 : index
    %c0_7 = arith.constant 0 : index
    %8 = vector.load %arg6[%c0_6, %c0_7] : memref<32x32xbf16, #tpu.memory_space<vmem>>, vector<32x32xbf16>
    %cst_8 = arith.constant dense<0.000000e+00> : vector<8x32xf32>
    %9 = tpu.matmul %2, %8, %cst_8 {dimension_numbers = #tpu.dot_dimension_numbers<[1], [0], [0], [1], [0, 0, 1, 1], [], []>} : vector<8x32xbf16>, vector<32x32xbf16>, vector<8x32xf32> -> vector<8x32xf32>
    %c0_9 = arith.constant 0 : index
    %c0_10 = arith.constant 0 : index
    %10 = vector.load %arg7[%c0_9, %c0_10] : memref<1x32xf32, #tpu.memory_space<vmem>>, vector<1x32xf32>
    %11 = vector.broadcast %10 : vector<1x32xf32> to vector<8x32xf32>
    %12 = arith.addf %9, %11 : vector<8x32xf32>
    %13 = vector.shape_cast %2 : vector<8x32xbf16> to vector<1x8x32xbf16>
    %14 = vector.shape_cast %13 : vector<1x8x32xbf16> to vector<1x8x32xbf16>
    %15 = vector.broadcast %14 : vector<1x8x32xbf16> to vector<4x8x32xbf16>
    %c0_11 = arith.constant 0 : index
    %c0_12 = arith.constant 0 : index
    %c0_13 = arith.constant 0 : index
    %16 = vector.load %arg2[%c0_11, %c0_12, %c0_13] : memref<4x32x8xbf16, #tpu.memory_space<vmem>>, vector<4x32x8xbf16>
    %cst_14 = arith.constant dense<0.000000e+00> : vector<4x8x8xf32>
    %17 = tpu.matmul %15, %16, %cst_14 {dimension_numbers = #tpu.dot_dimension_numbers<[2], [1], [1], [2], [0, 0, 0, 1, 1, 2], [0], [0]>} : vector<4x8x32xbf16>, vector<4x32x8xbf16>, vector<4x8x8xf32> -> vector<4x8x8xf32>
    %c0_15 = arith.constant 0 : index
    %c0_16 = arith.constant 0 : index
    %c0_17 = arith.constant 0 : index
    %18 = vector.load %arg3[%c0_15, %c0_16, %c0_17] : memref<4x1x8xf32, #tpu.memory_space<vmem>>, vector<4x1x8xf32>
    %19 = vector.broadcast %18 : vector<4x1x8xf32> to vector<4x8x8xf32>
    %20 = arith.addf %17, %19 : vector<4x8x8xf32>
    %21 = arith.truncf %7 : vector<8x32xf32> to vector<8x32xbf16>
    %22 = vector.shape_cast %21 : vector<8x32xbf16> to vector<2x4x32xbf16>
    %23 = arith.truncf %12 : vector<8x32xf32> to vector<8x32xbf16>
    %24 = vector.shape_cast %23 : vector<8x32xbf16> to vector<2x4x32xbf16>
    %cst_18 = arith.constant 0.000000e+00 : f32
    %25 = vector.broadcast %cst_18 : f32 to vector<4x2x8xf32>
    %cst_19 = arith.constant 0.000000e+00 : f32
    %26 = vector.broadcast %cst_19 : f32 to vector<4x2x8xf32>
    %27 = vector.extract_strided_slice %22 {offsets = [0, 0, 0], sizes = [2, 1, 32], strides = [1, 1, 1]} : vector<2x4x32xbf16> to vector<2x1x32xbf16>
    %28 = vector.shape_cast %27 : vector<2x1x32xbf16> to vector<2x32xbf16>
    %29 = vector.shape_cast %28 : vector<2x32xbf16> to vector<1x2x32xbf16>
    %30 = vector.shape_cast %29 : vector<1x2x32xbf16> to vector<1x2x32xbf16>
    %31 = vector.broadcast %30 : vector<1x2x32xbf16> to vector<4x2x32xbf16>
    %32 = vector.extract_strided_slice %24 {offsets = [0, 0, 0], sizes = [2, 1, 32], strides = [1, 1, 1]} : vector<2x4x32xbf16> to vector<2x1x32xbf16>
    %33 = vector.shape_cast %32 : vector<2x1x32xbf16> to vector<2x32xbf16>
    %34 = vector.shape_cast %33 : vector<2x32xbf16> to vector<1x2x32xbf16>
    %35 = vector.shape_cast %34 : vector<1x2x32xbf16> to vector<1x2x32xbf16>
    %36 = vector.broadcast %35 : vector<1x2x32xbf16> to vector<4x2x32xbf16>
    %c0_20 = arith.constant 0 : index
    %c0_21 = arith.constant 0 : index
    %c0_22 = arith.constant 0 : index
    %c0_23 = arith.constant 0 : index
    %37 = vector.load %arg8[%c0_20, %c0_21, %c0_22, %c0_23] : memref<4x4x32x8xbf16, #tpu.memory_space<vmem>>, vector<1x4x32x8xbf16>
    %38 = vector.shape_cast %37 : vector<1x4x32x8xbf16> to vector<4x32x8xbf16>
    %cst_24 = arith.constant dense<0.000000e+00> : vector<4x2x8xf32>
    %39 = tpu.matmul %31, %38, %cst_24 {dimension_numbers = #tpu.dot_dimension_numbers<[2], [1], [1], [2], [0, 0, 0, 1, 1, 2], [0], [0]>} : vector<4x2x32xbf16>, vector<4x32x8xbf16>, vector<4x2x8xf32> -> vector<4x2x8xf32>
    %40 = arith.addf %25, %39 : vector<4x2x8xf32>
    %c0_25 = arith.constant 0 : index
    %c0_26 = arith.constant 0 : index
    %c0_27 = arith.constant 0 : index
    %c0_28 = arith.constant 0 : index
    %41 = vector.load %arg10[%c0_25, %c0_26, %c0_27, %c0_28] : memref<4x4x32x8xbf16, #tpu.memory_space<vmem>>, vector<1x4x32x8xbf16>
    %42 = vector.shape_cast %41 : vector<1x4x32x8xbf16> to vector<4x32x8xbf16>
    %cst_29 = arith.constant dense<0.000000e+00> : vector<4x2x8xf32>
    %43 = tpu.matmul %36, %42, %cst_29 {dimension_numbers = #tpu.dot_dimension_numbers<[2], [1], [1], [2], [0, 0, 0, 1, 1, 2], [0], [0]>} : vector<4x2x32xbf16>, vector<4x32x8xbf16>, vector<4x2x8xf32> -> vector<4x2x8xf32>
    %44 = arith.addf %26, %43 : vector<4x2x8xf32>
    %45 = vector.extract_strided_slice %22 {offsets = [0, 1, 0], sizes = [2, 1, 32], strides = [1, 1, 1]} : vector<2x4x32xbf16> to vector<2x1x32xbf16>
    %46 = vector.shape_cast %45 : vector<2x1x32xbf16> to vector<2x32xbf16>
    %47 = vector.shape_cast %46 : vector<2x32xbf16> to vector<1x2x32xbf16>
    %48 = vector.shape_cast %47 : vector<1x2x32xbf16> to vector<1x2x32xbf16>
    %49 = vector.broadcast %48 : vector<1x2x32xbf16> to vector<4x2x32xbf16>
    %50 = vector.extract_strided_slice %24 {offsets = [0, 1, 0], sizes = [2, 1, 32], strides = [1, 1, 1]} : vector<2x4x32xbf16> to vector<2x1x32xbf16>
    %51 = vector.shape_cast %50 : vector<2x1x32xbf16> to vector<2x32xbf16>
    %52 = vector.shape_cast %51 : vector<2x32xbf16> to vector<1x2x32xbf16>
    %53 = vector.shape_cast %52 : vector<1x2x32xbf16> to vector<1x2x32xbf16>
    %54 = vector.broadcast %53 : vector<1x2x32xbf16> to vector<4x2x32xbf16>
    %c1 = arith.constant 1 : index
    %c0_30 = arith.constant 0 : index
    %c0_31 = arith.constant 0 : index
    %c0_32 = arith.constant 0 : index
    %55 = vector.load %arg8[%c1, %c0_30, %c0_31, %c0_32] : memref<4x4x32x8xbf16, #tpu.memory_space<vmem>>, vector<1x4x32x8xbf16>
    %56 = vector.shape_cast %55 : vector<1x4x32x8xbf16> to vector<4x32x8xbf16>
    %cst_33 = arith.constant dense<0.000000e+00> : vector<4x2x8xf32>
    %57 = tpu.matmul %49, %56, %cst_33 {dimension_numbers = #tpu.dot_dimension_numbers<[2], [1], [1], [2], [0, 0, 0, 1, 1, 2], [0], [0]>} : vector<4x2x32xbf16>, vector<4x32x8xbf16>, vector<4x2x8xf32> -> vector<4x2x8xf32>
    %58 = arith.addf %40, %57 : vector<4x2x8xf32>
    %c1_34 = arith.constant 1 : index
    %c0_35 = arith.constant 0 : index
    %c0_36 = arith.constant 0 : index
    %c0_37 = arith.constant 0 : index
    %59 = vector.load %arg10[%c1_34, %c0_35, %c0_36, %c0_37] : memref<4x4x32x8xbf16, #tpu.memory_space<vmem>>, vector<1x4x32x8xbf16>
    %60 = vector.shape_cast %59 : vector<1x4x32x8xbf16> to vector<4x32x8xbf16>
    %cst_38 = arith.constant dense<0.000000e+00> : vector<4x2x8xf32>
    %61 = tpu.matmul %54, %60, %cst_38 {dimension_numbers = #tpu.dot_dimension_numbers<[2], [1], [1], [2], [0, 0, 0, 1, 1, 2], [0], [0]>} : vector<4x2x32xbf16>, vector<4x32x8xbf16>, vector<4x2x8xf32> -> vector<4x2x8xf32>
    %62 = arith.addf %44, %61 : vector<4x2x8xf32>
    %63 = vector.extract_strided_slice %22 {offsets = [0, 2, 0], sizes = [2, 1, 32], strides = [1, 1, 1]} : vector<2x4x32xbf16> to vector<2x1x32xbf16>
    %64 = vector.shape_cast %63 : vector<2x1x32xbf16> to vector<2x32xbf16>
    %65 = vector.shape_cast %64 : vector<2x32xbf16> to vector<1x2x32xbf16>
    %66 = vector.shape_cast %65 : vector<1x2x32xbf16> to vector<1x2x32xbf16>
    %67 = vector.broadcast %66 : vector<1x2x32xbf16> to vector<4x2x32xbf16>
    %68 = vector.extract_strided_slice %24 {offsets = [0, 2, 0], sizes = [2, 1, 32], strides = [1, 1, 1]} : vector<2x4x32xbf16> to vector<2x1x32xbf16>
    %69 = vector.shape_cast %68 : vector<2x1x32xbf16> to vector<2x32xbf16>
    %70 = vector.shape_cast %69 : vector<2x32xbf16> to vector<1x2x32xbf16>
    %71 = vector.shape_cast %70 : vector<1x2x32xbf16> to vector<1x2x32xbf16>
    %72 = vector.broadcast %71 : vector<1x2x32xbf16> to vector<4x2x32xbf16>
    %c2 = arith.constant 2 : index
    %c0_39 = arith.constant 0 : index
    %c0_40 = arith.constant 0 : index
    %c0_41 = arith.constant 0 : index
    %73 = vector.load %arg8[%c2, %c0_39, %c0_40, %c0_41] : memref<4x4x32x8xbf16, #tpu.memory_space<vmem>>, vector<1x4x32x8xbf16>
    %74 = vector.shape_cast %73 : vector<1x4x32x8xbf16> to vector<4x32x8xbf16>
    %cst_42 = arith.constant dense<0.000000e+00> : vector<4x2x8xf32>
    %75 = tpu.matmul %67, %74, %cst_42 {dimension_numbers = #tpu.dot_dimension_numbers<[2], [1], [1], [2], [0, 0, 0, 1, 1, 2], [0], [0]>} : vector<4x2x32xbf16>, vector<4x32x8xbf16>, vector<4x2x8xf32> -> vector<4x2x8xf32>
    %76 = arith.addf %58, %75 : vector<4x2x8xf32>
    %c2_43 = arith.constant 2 : index
    %c0_44 = arith.constant 0 : index
    %c0_45 = arith.constant 0 : index
    %c0_46 = arith.constant 0 : index
    %77 = vector.load %arg10[%c2_43, %c0_44, %c0_45, %c0_46] : memref<4x4x32x8xbf16, #tpu.memory_space<vmem>>, vector<1x4x32x8xbf16>
    %78 = vector.shape_cast %77 : vector<1x4x32x8xbf16> to vector<4x32x8xbf16>
    %cst_47 = arith.constant dense<0.000000e+00> : vector<4x2x8xf32>
    %79 = tpu.matmul %72, %78, %cst_47 {dimension_numbers = #tpu.dot_dimension_numbers<[2], [1], [1], [2], [0, 0, 0, 1, 1, 2], [0], [0]>} : vector<4x2x32xbf16>, vector<4x32x8xbf16>, vector<4x2x8xf32> -> vector<4x2x8xf32>
    %80 = arith.addf %62, %79 : vector<4x2x8xf32>
    %81 = vector.extract_strided_slice %22 {offsets = [0, 3, 0], sizes = [2, 1, 32], strides = [1, 1, 1]} : vector<2x4x32xbf16> to vector<2x1x32xbf16>
    %82 = vector.shape_cast %81 : vector<2x1x32xbf16> to vector<2x32xbf16>
    %83 = vector.shape_cast %82 : vector<2x32xbf16> to vector<1x2x32xbf16>
    %84 = vector.shape_cast %83 : vector<1x2x32xbf16> to vector<1x2x32xbf16>
    %85 = vector.broadcast %84 : vector<1x2x32xbf16> to vector<4x2x32xbf16>
    %86 = vector.extract_strided_slice %24 {offsets = [0, 3, 0], sizes = [2, 1, 32], strides = [1, 1, 1]} : vector<2x4x32xbf16> to vector<2x1x32xbf16>
    %87 = vector.shape_cast %86 : vector<2x1x32xbf16> to vector<2x32xbf16>
    %88 = vector.shape_cast %87 : vector<2x32xbf16> to vector<1x2x32xbf16>
    %89 = vector.shape_cast %88 : vector<1x2x32xbf16> to vector<1x2x32xbf16>
    %90 = vector.broadcast %89 : vector<1x2x32xbf16> to vector<4x2x32xbf16>
    %c3 = arith.constant 3 : index
    %c0_48 = arith.constant 0 : index
    %c0_49 = arith.constant 0 : index
    %c0_50 = arith.constant 0 : index
    %91 = vector.load %arg8[%c3, %c0_48, %c0_49, %c0_50] : memref<4x4x32x8xbf16, #tpu.memory_space<vmem>>, vector<1x4x32x8xbf16>
    %92 = vector.shape_cast %91 : vector<1x4x32x8xbf16> to vector<4x32x8xbf16>
    %cst_51 = arith.constant dense<0.000000e+00> : vector<4x2x8xf32>
    %93 = tpu.matmul %85, %92, %cst_51 {dimension_numbers = #tpu.dot_dimension_numbers<[2], [1], [1], [2], [0, 0, 0, 1, 1, 2], [0], [0]>} : vector<4x2x32xbf16>, vector<4x32x8xbf16>, vector<4x2x8xf32> -> vector<4x2x8xf32>
    %94 = arith.addf %76, %93 : vector<4x2x8xf32>
    %c3_52 = arith.constant 3 : index
    %c0_53 = arith.constant 0 : index
    %c0_54 = arith.constant 0 : index
    %c0_55 = arith.constant 0 : index
    %95 = vector.load %arg10[%c3_52, %c0_53, %c0_54, %c0_55] : memref<4x4x32x8xbf16, #tpu.memory_space<vmem>>, vector<1x4x32x8xbf16>
    %96 = vector.shape_cast %95 : vector<1x4x32x8xbf16> to vector<4x32x8xbf16>
    %cst_56 = arith.constant dense<0.000000e+00> : vector<4x2x8xf32>
    %97 = tpu.matmul %90, %96, %cst_56 {dimension_numbers = #tpu.dot_dimension_numbers<[2], [1], [1], [2], [0, 0, 0, 1, 1, 2], [0], [0]>} : vector<4x2x32xbf16>, vector<4x32x8xbf16>, vector<4x2x8xf32> -> vector<4x2x8xf32>
    %98 = arith.addf %80, %97 : vector<4x2x8xf32>
    %c0_57 = arith.constant 0 : index
    %c0_58 = arith.constant 0 : index
    %c0_59 = arith.constant 0 : index
    %99 = vector.load %arg9[%c0_57, %c0_58, %c0_59] : memref<4x1x8xf32, #tpu.memory_space<vmem>>, vector<4x1x8xf32>
    %100 = vector.broadcast %99 : vector<4x1x8xf32> to vector<4x2x8xf32>
    %101 = arith.addf %94, %100 : vector<4x2x8xf32>
    %c0_60 = arith.constant 0 : index
    %c0_61 = arith.constant 0 : index
    %c0_62 = arith.constant 0 : index
    %102 = vector.load %arg11[%c0_60, %c0_61, %c0_62] : memref<4x1x8xf32, #tpu.memory_space<vmem>>, vector<4x1x8xf32>
    %103 = vector.broadcast %102 : vector<4x1x8xf32> to vector<4x2x8xf32>
    %104 = arith.addf %98, %103 : vector<4x2x8xf32>
    %105 = tpu.iota {dimensions = array<i32: 1>} : vector<1x8x2xi32>
    %106 = tpu.iota {dimensions = array<i32: 2>} : vector<1x8x2xi32>
    %c4_i32 = arith.constant 4 : i32
    %107 = vector.broadcast %c4_i32 : i32 to vector<1x8x2xi32>
    %108 = arith.muli %106, %107 : vector<1x8x2xi32>
    %109 = arith.cmpi sle, %108, %105 : vector<1x8x2xi32>
    %110 = arith.truncf %20 : vector<4x8x8xf32> to vector<4x8x8xbf16>
    %111 = arith.truncf %101 : vector<4x2x8xf32> to vector<4x2x8xbf16>
    %cst_63 = arith.constant dense<0.000000e+00> : vector<4x8x2xf32>
    %112 = tpu.matmul %110, %111, %cst_63 {dimension_numbers = #tpu.dot_dimension_numbers<[2], [2], [1], [1], [0, 0, 0, 1, 1, 1], [0], [0]>} : vector<4x8x8xbf16>, vector<4x2x8xbf16>, vector<4x8x2xf32> -> vector<4x8x2xf32>
    %cst_64 = arith.constant 0.353553385 : f32
    %113 = vector.broadcast %cst_64 : f32 to vector<4x8x2xf32>
    %114 = arith.mulf %112, %113 : vector<4x8x2xf32>
    %cst_65 = arith.constant -1.000000e+09 : f32
    %115 = vector.shape_cast %109 : vector<1x8x2xi1> to vector<1x8x2xi1>
    %116 = vector.broadcast %115 : vector<1x8x2xi1> to vector<4x8x2xi1>
    %117 = vector.broadcast %cst_65 : f32 to vector<4x8x2xf32>
    %118 = arith.select %116, %114, %117 : vector<4x8x2xi1>, vector<4x8x2xf32>
    %cst_66 = arith.constant dense<0xFF800000> : vector<4x8xf32>
    %119 = vector.multi_reduction <maximumf>, %118, %cst_66 [2] : vector<4x8x2xf32> to vector<4x8xf32>
    %120 = vector.shape_cast %119 : vector<4x8xf32> to vector<4x8x1xf32>
    %121 = vector.broadcast %120 : vector<4x8x1xf32> to vector<4x8x2xf32>
    %122 = arith.subf %118, %121 : vector<4x8x2xf32>
    %123 = math.exp %122 : vector<4x8x2xf32>
    %cst_67 = arith.constant dense<0.000000e+00> : vector<4x8xf32>
    %124 = vector.multi_reduction <add>, %123, %cst_67 [2] : vector<4x8x2xf32> to vector<4x8xf32>
    %125 = vector.shape_cast %124 : vector<4x8xf32> to vector<4x8x1xf32>
    %126 = arith.truncf %123 : vector<4x8x2xf32> to vector<4x8x2xbf16>
    %127 = arith.truncf %104 : vector<4x2x8xf32> to vector<4x2x8xbf16>
    %cst_68 = arith.constant dense<0.000000e+00> : vector<4x8x8xf32>
    %128 = tpu.matmul %126, %127, %cst_68 {dimension_numbers = #tpu.dot_dimension_numbers<[2], [1], [1], [2], [0, 0, 0, 1, 1, 2], [0], [0]>} : vector<4x8x2xbf16>, vector<4x2x8xbf16>, vector<4x8x8xf32> -> vector<4x8x8xf32>
    %129 = tpu.reciprocal %125 {approx = true} : vector<4x8x1xf32> -> vector<4x8x1xf32>
    %130 = vector.broadcast %129 : vector<4x8x1xf32> to vector<4x8x8xf32>
    %131 = arith.mulf %128, %130 : vector<4x8x8xf32>
    %132 = arith.truncf %131 : vector<4x8x8xf32> to vector<4x8x8xbf16>
    %c0_69 = arith.constant 0 : index
    %c0_70 = arith.constant 0 : index
    %c0_71 = arith.constant 0 : index
    %133 = vector.load %arg12[%c0_69, %c0_70, %c0_71] : memref<4x8x32xbf16, #tpu.memory_space<vmem>>, vector<4x8x32xbf16>
    %cst_72 = arith.constant dense<0.000000e+00> : vector<4x8x32xf32>
    %134 = tpu.matmul %132, %133, %cst_72 {dimension_numbers = #tpu.dot_dimension_numbers<[2], [1], [1], [2], [0, 0, 0, 1, 1, 2], [0], [0]>} : vector<4x8x8xbf16>, vector<4x8x32xbf16>, vector<4x8x32xf32> -> vector<4x8x32xf32>
    %cst_73 = arith.constant dense<0.000000e+00> : vector<8x32xf32>
    %135 = vector.multi_reduction <add>, %134, %cst_73 [0] : vector<4x8x32xf32> to vector<8x32xf32>
    %c0_74 = arith.constant 0 : index
    %c0_75 = arith.constant 0 : index
    %136 = vector.load %arg13[%c0_74, %c0_75] : memref<1x32xf32, #tpu.memory_space<vmem>>, vector<1x32xf32>
    %137 = vector.broadcast %136 : vector<1x32xf32> to vector<8x32xf32>
    %138 = arith.addf %135, %137 : vector<8x32xf32>
    %139 = arith.addf %138, %1 : vector<8x32xf32>
    %c0_76 = arith.constant 0 : index
    %c0_77 = arith.constant 0 : index
    %140 = vector.load %arg14[%c0_76, %c0_77] : memref<1x32xf32, #tpu.memory_space<vmem>>, vector<1x32xf32>
    %c0_78 = arith.constant 0 : index
    %c0_79 = arith.constant 0 : index
    %141 = vector.load %arg15[%c0_78, %c0_79] : memref<1x32xf32, #tpu.memory_space<vmem>>, vector<1x32xf32>
    %cst_80 = arith.constant dense<0.000000e+00> : vector<8xf32>
    %142 = vector.multi_reduction <add>, %139, %cst_80 [1] : vector<8x32xf32> to vector<8xf32>
    %143 = vector.shape_cast %142 : vector<8xf32> to vector<8x1xf32>
    %cst_81 = arith.constant 3.200000e+01 : f32
    %144 = vector.broadcast %cst_81 : f32 to vector<8x1xf32>
    %145 = arith.divf %143, %144 : vector<8x1xf32>
    %146 = vector.broadcast %145 : vector<8x1xf32> to vector<8x32xf32>
    %147 = arith.subf %139, %146 : vector<8x32xf32>
    %148 = arith.mulf %147, %147 : vector<8x32xf32>
    %cst_82 = arith.constant dense<0.000000e+00> : vector<8xf32>
    %149 = vector.multi_reduction <add>, %148, %cst_82 [1] : vector<8x32xf32> to vector<8xf32>
    %150 = vector.shape_cast %149 : vector<8xf32> to vector<8x1xf32>
    %cst_83 = arith.constant 3.200000e+01 : f32
    %151 = vector.broadcast %cst_83 : f32 to vector<8x1xf32>
    %152 = arith.divf %150, %151 : vector<8x1xf32>
    %153 = vector.broadcast %145 : vector<8x1xf32> to vector<8x32xf32>
    %154 = arith.subf %139, %153 : vector<8x32xf32>
    %cst_84 = arith.constant 9.99999974E-6 : f32
    %155 = vector.broadcast %cst_84 : f32 to vector<8x1xf32>
    %156 = arith.addf %152, %155 : vector<8x1xf32>
    %157 = math.rsqrt %156 : vector<8x1xf32>
    %158 = vector.broadcast %157 : vector<8x1xf32> to vector<8x32xf32>
    %159 = arith.mulf %154, %158 : vector<8x32xf32>
    %160 = vector.broadcast %140 : vector<1x32xf32> to vector<8x32xf32>
    %161 = arith.mulf %159, %160 : vector<8x32xf32>
    %162 = vector.broadcast %141 : vector<1x32xf32> to vector<8x32xf32>
    %163 = arith.addf %161, %162 : vector<8x32xf32>
    %164 = arith.truncf %163 : vector<8x32xf32> to vector<8x32xbf16>
    %c0_85 = arith.constant 0 : index
    %c0_86 = arith.constant 0 : index
    %165 = vector.load %arg16[%c0_85, %c0_86] : memref<32x128xbf16, #tpu.memory_space<vmem>>, vector<32x128xbf16>
    %cst_87 = arith.constant dense<0.000000e+00> : vector<8x128xf32>
    %166 = tpu.matmul %164, %165, %cst_87 {dimension_numbers = #tpu.dot_dimension_numbers<[1], [0], [0], [1], [0, 0, 1, 1], [], []>} : vector<8x32xbf16>, vector<32x128xbf16>, vector<8x128xf32> -> vector<8x128xf32>
    %c0_88 = arith.constant 0 : index
    %c0_89 = arith.constant 0 : index
    %167 = vector.load %arg17[%c0_88, %c0_89] : memref<1x128xf32, #tpu.memory_space<vmem>>, vector<1x128xf32>
    %168 = vector.broadcast %167 : vector<1x128xf32> to vector<8x128xf32>
    %169 = arith.addf %166, %168 : vector<8x128xf32>
    %cst_90 = arith.constant 0.000000e+00 : f32
    %170 = vector.broadcast %cst_90 : f32 to vector<8x128xf32>
    %171 = arith.maximumf %169, %170 : vector<8x128xf32>
    %172 = arith.truncf %171 : vector<8x128xf32> to vector<8x128xbf16>
    %c0_91 = arith.constant 0 : index
    %c0_92 = arith.constant 0 : index
    %173 = vector.load %arg18[%c0_91, %c0_92] : memref<128x32xbf16, #tpu.memory_space<vmem>>, vector<128x32xbf16>
    %cst_93 = arith.constant dense<0.000000e+00> : vector<8x32xf32>
    %174 = tpu.matmul %172, %173, %cst_93 {dimension_numbers = #tpu.dot_dimension_numbers<[1], [0], [0], [1], [0, 0, 1, 1], [], []>} : vector<8x128xbf16>, vector<128x32xbf16>, vector<8x32xf32> -> vector<8x32xf32>
    %c0_94 = arith.constant 0 : index
    %c0_95 = arith.constant 0 : index
    %175 = vector.load %arg19[%c0_94, %c0_95] : memref<1x32xf32, #tpu.memory_space<vmem>>, vector<1x32xf32>
    %176 = vector.broadcast %175 : vector<1x32xf32> to vector<8x32xf32>
    %177 = arith.addf %174, %176 : vector<8x32xf32>
    %178 = arith.addf %177, %163 : vector<8x32xf32>
    %c0_96 = arith.constant 0 : index
    %c0_97 = arith.constant 0 : index
    %179 = vector.load %arg20[%c0_96, %c0_97] : memref<1x32xf32, #tpu.memory_space<vmem>>, vector<1x32xf32>
    %c0_98 = arith.constant 0 : index
    %c0_99 = arith.constant 0 : index
    %180 = vector.load %arg21[%c0_98, %c0_99] : memref<1x32xf32, #tpu.memory_space<vmem>>, vector<1x32xf32>
    %cst_100 = arith.constant dense<0.000000e+00> : vector<8xf32>
    %181 = vector.multi_reduction <add>, %178, %cst_100 [1] : vector<8x32xf32> to vector<8xf32>
    %182 = vector.shape_cast %181 : vector<8xf32> to vector<8x1xf32>
    %cst_101 = arith.constant 3.200000e+01 : f32
    %183 = vector.broadcast %cst_101 : f32 to vector<8x1xf32>
    %184 = arith.divf %182, %183 : vector<8x1xf32>
    %185 = vector.broadcast %184 : vector<8x1xf32> to vector<8x32xf32>
    %186 = arith.subf %178, %185 : vector<8x32xf32>
    %187 = arith.mulf %186, %186 : vector<8x32xf32>
    %cst_102 = arith.constant dense<0.000000e+00> : vector<8xf32>
    %188 = vector.multi_reduction <add>, %187, %cst_102 [1] : vector<8x32xf32> to vector<8xf32>
    %189 = vector.shape_cast %188 : vector<8xf32> to vector<8x1xf32>
    %cst_103 = arith.constant 3.200000e+01 : f32
    %190 = vector.broadcast %cst_103 : f32 to vector<8x1xf32>
    %191 = arith.divf %189, %190 : vector<8x1xf32>
    %192 = vector.broadcast %184 : vector<8x1xf32> to vector<8x32xf32>
    %193 = arith.subf %178, %192 : vector<8x32xf32>
    %cst_104 = arith.constant 9.99999974E-6 : f32
    %194 = vector.broadcast %cst_104 : f32 to vector<8x1xf32>
    %195 = arith.addf %191, %194 : vector<8x1xf32>
    %196 = math.rsqrt %195 : vector<8x1xf32>
    %197 = vector.broadcast %196 : vector<8x1xf32> to vector<8x32xf32>
    %198 = arith.mulf %193, %197 : vector<8x32xf32>
    %199 = vector.broadcast %179 : vector<1x32xf32> to vector<8x32xf32>
    %200 = arith.mulf %198, %199 : vector<8x32xf32>
    %201 = vector.broadcast %180 : vector<1x32xf32> to vector<8x32xf32>
    %202 = arith.addf %200, %201 : vector<8x32xf32>
    %c0_105 = arith.constant 0 : index
    %c0_106 = arith.constant 0 : index
    %c0_107 = arith.constant 0 : index
    %203 = vector.load %arg22[%c0_105, %c0_106, %c0_107] : memref<1x8x32xf32, #tpu.memory_space<vmem>>, vector<1x8x32xf32>
    %204 = vector.shape_cast %203 : vector<1x8x32xf32> to vector<8x32xf32>
    %205 = vector.shape_cast %202 : vector<8x32xf32> to vector<1x8x32xf32>
    tpu.vector_store %arg22[%c0_105, %c0_106, %c0_107], %205 {strides = array<i32>} : memref<1x8x32xf32, #tpu.memory_space<vmem>>, vector<1x8x32xf32>,
    return
  }
  func.func @transform_0(%arg0: i32) -> (i32, i32, i32) {
    %c0_i32 = arith.constant 0 : i32
    %c0_i32_0 = arith.constant 0 : i32
    %c0_i32_1 = arith.constant 0 : i32
    return %arg0, %c0_i32, %c0_i32_0 : i32, i32, i32
  }
  func.func @transform_1(%arg0: i32) -> (i32, i32, i32) {
    %c0_i32 = arith.constant 0 : i32
    %c0_i32_0 = arith.constant 0 : i32
    %c0_i32_1 = arith.constant 0 : i32
    %c0_i32_2 = arith.constant 0 : i32
    return %c0_i32, %c0_i32_0, %c0_i32_1 : i32, i32, i32
  }
  func.func @transform_2(%arg0: i32) -> (i32, i32, i32) {
    %c0_i32 = arith.constant 0 : i32
    %c0_i32_0 = arith.constant 0 : i32
    %c0_i32_1 = arith.constant 0 : i32
    %c0_i32_2 = arith.constant 0 : i32
    return %c0_i32, %c0_i32_0, %c0_i32_1 : i32, i32, i32
  }
  func.func @transform_3(%arg0: i32) -> (i32, i32) {
    %c0_i32 = arith.constant 0 : i32
    %c0_i32_0 = arith.constant 0 : i32
    %c0_i32_1 = arith.constant 0 : i32
    return %c0_i32, %c0_i32_0 : i32, i32
  }
  func.func @transform_4(%arg0: i32) -> (i32, i32) {
    %c0_i32 = arith.constant 0 : i32
    %c0_i32_0 = arith.constant 0 : i32
    %c0_i32_1 = arith.constant 0 : i32
    return %c0_i32, %c0_i32_0 : i32, i32
  }
  func.func @transform_5(%arg0: i32) -> (i32, i32) {
    %c0_i32 = arith.constant 0 : i32
    %c0_i32_0 = arith.constant 0 : i32
    %c0_i32_1 = arith.constant 0 : i32
    return %c0_i32, %c0_i32_0 : i32, i32
  }
  func.func @transform_6(%arg0: i32) -> (i32, i32) {
    %c0_i32 = arith.constant 0 : i32
    %c0_i32_0 = arith.constant 0 : i32
    %c0_i32_1 = arith.constant 0 : i32
    return %c0_i32, %c0_i32_0 : i32, i32
  }
  func.func @transform_7(%arg0: i32) -> (i32, i32, i32, i32) {
    %c0_i32 = arith.constant 0 : i32
    %c0_i32_0 = arith.constant 0 : i32
    %c0_i32_1 = arith.constant 0 : i32
    %c0_i32_2 = arith.constant 0 : i32
    %c0_i32_3 = arith.constant 0 : i32
    return %c0_i32, %c0_i32_0, %c0_i32_1, %c0_i32_2 : i32, i32, i32, i32
  }
  func.func @transform_8(%arg0: i32) -> (i32, i32, i32) {
    %c0_i32 = arith.constant 0 : i32
    %c0_i32_0 = arith.constant 0 : i32
    %c0_i32_1 = arith.constant 0 : i32
    %c0_i32_2 = arith.constant 0 : i32
    return %c0_i32, %c0_i32_0, %c0_i32_1 : i32, i32, i32
  }
  func.func @transform_9(%arg0: i32) -> (i32, i32, i32, i32) {
    %c0_i32 = arith.constant 0 : i32
    %c0_i32_0 = arith.constant 0 : i32
    %c0_i32_1 = arith.constant 0 : i32
    %c0_i32_2 = arith.constant 0 : i32
    %c0_i32_3 = arith.constant 0 : i32
    return %c0_i32, %c0_i32_0, %c0_i32_1, %c0_i32_2 : i32, i32, i32, i32
  }
  func.func @transform_10(%arg0: i32) -> (i32, i32, i32) {
    %c0_i32 = arith.constant 0 : i32
    %c0_i32_0 = arith.constant 0 : i32
    %c0_i32_1 = arith.constant 0 : i32
    %c0_i32_2 = arith.constant 0 : i32
    return %c0_i32, %c0_i32_0, %c0_i32_1 : i32, i32, i32
  }
  func.func @transform_11(%arg0: i32) -> (i32, i32, i32) {
    %c0_i32 = arith.constant 0 : i32
    %c0_i32_0 = arith.constant 0 : i32
    %c0_i32_1 = arith.constant 0 : i32
    %c0_i32_2 = arith.constant 0 : i32
    return %c0_i32, %c0_i32_0, %c0_i32_1 : i32, i32, i32
  }
  func.func @transform_12(%arg0: i32) -> (i32, i32) {
    %c0_i32 = arith.constant 0 : i32
    %c0_i32_0 = arith.constant 0 : i32
    %c0_i32_1 = arith.constant 0 : i32
    return %c0_i32, %c0_i32_0 : i32, i32
  }
  func.func @transform_13(%arg0: i32) -> (i32, i32) {
    %c0_i32 = arith.constant 0 : i32
    %c0_i32_0 = arith.constant 0 : i32
    %c0_i32_1 = arith.constant 0 : i32
    return %c0_i32, %c0_i32_0 : i32, i32
  }
  func.func @transform_14(%arg0: i32) -> (i32, i32) {
    %c0_i32 = arith.constant 0 : i32
    %c0_i32_0 = arith.constant 0 : i32
    %c0_i32_1 = arith.constant 0 : i32
    return %c0_i32, %c0_i32_0 : i32, i32
  }
  func.func @transform_15(%arg0: i32) -> (i32, i32) {
    %c0_i32 = arith.constant 0 : i32
    %c0_i32_0 = arith.constant 0 : i32
    %c0_i32_1 = arith.constant 0 : i32
    return %c0_i32, %c0_i32_0 : i32, i32
  }
  func.func @transform_16(%arg0: i32) -> (i32, i32) {
    %c0_i32 = arith.constant 0 : i32
    %c0_i32_0 = arith.constant 0 : i32
    %c0_i32_1 = arith.constant 0 : i32
    return %c0_i32, %c0_i32_0 : i32, i32
  }
  func.func @transform_17(%arg0: i32) -> (i32, i32) {
    %c0_i32 = arith.constant 0 : i32
    %c0_i32_0 = arith.constant 0 : i32
    %c0_i32_1 = arith.constant 0 : i32
    return %c0_i32, %c0_i32_0 : i32, i32
  }
  func.func @transform_18(%arg0: i32) -> (i32, i32) {
    %c0_i32 = arith.constant 0 : i32
    %c0_i32_0 = arith.constant 0 : i32
    %c0_i32_1 = arith.constant 0 : i32
    return %c0_i32, %c0_i32_0 : i32, i32
  }
  func.func @transform_19(%arg0: i32) -> (i32, i32) {
    %c0_i32 = arith.constant 0 : i32
    %c0_i32_0 = arith.constant 0 : i32
    %c0_i32_1 = arith.constant 0 : i32
    return %c0_i32, %c0_i32_0 : i32, i32
  }
  func.func @transform_20(%arg0: i32) -> (i32, i32) {
    %c0_i32 = arith.constant 0 : i32
    %c0_i32_0 = arith.constant 0 : i32
    %c0_i32_1 = arith.constant 0 : i32
    return %c0_i32, %c0_i32_0 : i32, i32
  }
  func.func @transform_21(%arg0: i32) -> (i32, i32, i32) {
    %c0_i32 = arith.constant 0 : i32
    %c0_i32_0 = arith.constant 0 : i32
    %c0_i32_1 = arith.constant 0 : i32
    return %arg0, %c0_i32, %c0_i32_0 : i32, i32, i32
  }
}

</mosaic_0001>

<llo_original>
// kernel: tpu_custom_call.1
$region0: #{tpu_custom_call.1}
  #allocation0 [shape = 'u32[]', space=smem, size = 0x4, offset = 0x4, fixed_abs, tag = 'smem constant byte address 0x4 - core index']
  #allocation1 [shape = 'u32[144,128]{1,0:T(1,128)}', space=vmem, size = 0x12000, scoped, tag = 'internal scratch']
  %s0 = inlined_call_operand.vmem [shape: f32[2,8,32], index: 0, kind: input, shape index: {}]
  %s1 = inlined_call_operand.vmem [shape: bf16[4,32,8], index: 1, kind: input, shape index: {}]
  %s2 = inlined_call_operand.vmem [shape: f32[4,1,8], index: 2, kind: input, shape index: {}]
  %s3 = inlined_call_operand.vmem [shape: bf16[32,32], index: 3, kind: input, shape index: {}]
  %s4 = inlined_call_operand.vmem [shape: f32[1,32], index: 4, kind: input, shape index: {}]
  %s5 = inlined_call_operand.vmem [shape: bf16[32,32], index: 5, kind: input, shape index: {}]
  %s6 = inlined_call_operand.vmem [shape: f32[1,32], index: 6, kind: input, shape index: {}]
  %s7 = inlined_call_operand.vmem [shape: bf16[4,4,32,8], index: 7, kind: input, shape index: {}]
  %s8 = inlined_call_operand.vmem [shape: f32[4,1,8], index: 8, kind: input, shape index: {}]
  %s9 = inlined_call_operand.vmem [shape: bf16[4,4,32,8], index: 9, kind: input, shape index: {}]
  %s10 = inlined_call_operand.vmem [shape: f32[4,1,8], index: 10, kind: input, shape index: {}]
  %s11 = inlined_call_operand.vmem [shape: bf16[4,8,32], index: 11, kind: input, shape index: {}]
  %s12 = inlined_call_operand.vmem [shape: f32[1,32], index: 12, kind: input, shape index: {}]
  %s13 = inlined_call_operand.vmem [shape: f32[1,32], index: 13, kind: input, shape index: {}]
  %s14 = inlined_call_operand.vmem [shape: f32[1,32], index: 14, kind: input, shape index: {}]
  %s15 = inlined_call_operand.vmem [shape: bf16[32,128], index: 15, kind: input, shape index: {}]
  %s16 = inlined_call_operand.vmem [shape: f32[1,128], index: 16, kind: input, shape index: {}]
  %s17 = inlined_call_operand.vmem [shape: bf16[128,32], index: 17, kind: input, shape index: {}]
  %s18 = inlined_call_operand.vmem [shape: f32[1,32], index: 18, kind: input, shape index: {}]
  %s19 = inlined_call_operand.vmem [shape: f32[1,32], index: 19, kind: input, shape index: {}]
  %s20 = inlined_call_operand.vmem [shape: f32[1,32], index: 20, kind: input, shape index: {}]
  %s21 = inlined_call_operand.hbm [shape: f32[2,8,32], index: 21, kind: output, shape index: {}]
  %s22 = sld [smem:[#allocation0]]
  $region117: #{tpu_custom_call.1} parent=0
    _
  %s24 = ssub.s32 1, %s22
  %s25 = scalar_select 0, %s24, %s22
  $region1: #{tpu_custom_call.1} parent=0
    #allocation2 [shape = 'u8[8192]{0}', space=vmem, size = 0x2000, scoped, tag = 'output window, operand 0']
    #allocation3 [shape = 's32[2]{0}', space=sflag, size = 0x8, scoped, tag = 'scoped memory for tpu_custom_call.1']
    %26 = vsyncpa [#allocation3], 0
    %s27 = scalar_lea.sflag [#allocation3], 1
    %28 = vsyncpa %s27, 0
    loop: start=0, step=1, limit=4
    $region2: #{tpu_custom_call.1} parent=1 // loop_pre_header
      _
    $region3: #{tpu_custom_call.1} parent=1 // loop_header
      %s30 = sphi 0, %s34
      %p31 = scmp.ge.s32.totalorder %s30, 4
      %s40 = sphi 0, %s42
      %s43 = sphi 0, %s40
      %s44 = sphi 0, %s43
      %s60 = sphi 0, %s44
      %s64 = sphi 0, %s64
      %s66 = sphi 0, %s64
      %s67 = sphi 0, %s66
      %s81 = sphi 0, %s67
      %s85 = sphi 0, %s85
      %s87 = sphi 0, %s85
      %s88 = sphi 0, %s87
      %s102 = sphi 0, %s88
      %s106 = sphi 0, %s106
      %s108 = sphi 0, %s106
      %s109 = sphi 0, %s108
      %s123 = sphi 0, %s109
      %s127 = sphi 0, %s127
      %s129 = sphi 0, %s127
      %s130 = sphi 0, %s129
      %s144 = sphi 0, %s130
      %s148 = sphi 0, %s148
      %s150 = sphi 0, %s148
      %s151 = sphi 0, %s150
      %s165 = sphi 0, %s151
      %s169 = sphi 0, %s169
      %s171 = sphi 0, %s169
      %s172 = sphi 0, %s171
      %s186 = sphi 0, %s172
      %s190 = sphi 0, %s190
      %s192 = sphi 0, %s190
      %s193 = sphi 0, %s192
      %s207 = sphi 0, %s193
      %s211 = sphi 0, %s211
      %s213 = sphi 0, %s211
      %s214 = sphi 0, %s213
      %s228 = sphi 0, %s214
      %s232 = sphi 0, %s232
      %s234 = sphi 0, %s232
      %s235 = sphi 0, %s234
      %s249 = sphi 0, %s235
      %s253 = sphi 0, %s253
      %s255 = sphi 0, %s253
      %s256 = sphi 0, %s255
      %s270 = sphi 0, %s256
      %s274 = sphi 0, %s274
      %s276 = sphi 0, %s274
      %s277 = sphi 0, %s276
      %s291 = sphi 0, %s277
      %s295 = sphi 0, %s295
      %s297 = sphi 0, %s295
      %s298 = sphi 0, %s297
      %s312 = sphi 0, %s298
      %s316 = sphi 0, %s316
      %s318 = sphi 0, %s316
      %s319 = sphi 0, %s318
      %s333 = sphi 0, %s319
      %s337 = sphi 0, %s337
      %s339 = sphi 0, %s337
      %s340 = sphi 0, %s339
      %s354 = sphi 0, %s340
      %s358 = sphi 0, %s358
      %s360 = sphi 0, %s358
      %s361 = sphi 0, %s360
      %s375 = sphi 0, %s361
      %s379 = sphi 0, %s379
      %s381 = sphi 0, %s379
      %s382 = sphi 0, %s381
      %s396 = sphi 0, %s382
      %s400 = sphi 0, %s400
      %s402 = sphi 0, %s400
      %s403 = sphi 0, %s402
      %s417 = sphi 0, %s403
      %s421 = sphi 0, %s421
      %s423 = sphi 0, %s421
      %s424 = sphi 0, %s423
      %s438 = sphi 0, %s424
      %s442 = sphi 0, %s442
      %s444 = sphi 0, %s442
      %s445 = sphi 0, %s444
      %s459 = sphi 0, %s445
      %s463 = sphi 0, %s463
      %s465 = sphi 0, %s463
      %s466 = sphi 0, %s465
      %s480 = sphi 0, %s466
      %s486 = sphi 0, %s488
      %s489 = sphi 0, %s486
      %s490 = sphi 0, %s489
      %s506 = sphi 0, %s490
    $region4: #{tpu_custom_call.1} parent=1 // loop_header_branch
      %33 = sbr.rel (%p31) target = $region8
    $region5: #{tpu_custom_call.1} parent=1 // loop_body
      %s35 = ssub.s32 %s30, 1
      %s36 = ssub.s32 %s30, 2
      %s37 = sadd.s32 %s30, 1
      %s38 = ssub.s32 %s30, %s37
      %p39 = scmp.eq.s32.totalorder %s38, 0
      %s41 = sadd.s32 %s40, 1
      %s42 = scalar_select %p39, %s40, %s41
      %p45 = pneg %p39
      %p46 = scmp.eq.s32.totalorder %s30, 1
      %p47 = por %p45, %p46
      %p48 = scmp.ne.s32.totalorder %s40, %s43
      %p49 = scmp.eq.s32.totalorder %s30, 0
      %p50 = por %p48, %p49
      %p51 = scmp.ne.s32.totalorder %s40, %s43
      %p52 = scmp.eq.s32.totalorder %s35, 1
      %p53 = por %p51, %p52
      %p54 = scmp.ne.s32.totalorder %s43, %s44
      %p55 = scmp.eq.s32.totalorder %s35, 0
      %p56 = por %p54, %p55
      %p57 = scmp.ne.s32.totalorder %s43, %s44
      %p58 = scmp.eq.s32.totalorder %s36, 1
      %p59 = por %p57, %p58
      %p61 = scmp.ne.s32.totalorder %s44, %s60
      %p62 = scmp.eq.s32.totalorder %s36, 0
      %p63 = por %p61, %p62
      %s65 = sadd.s32 %s64, 1
      %p68 = scmp.eq.s32.totalorder %s30, 1
      %p69 = scmp.ne.s32.totalorder %s64, %s66
      %p70 = scmp.eq.s32.totalorder %s30, 0
      %p71 = por %p69, %p70
      %p72 = scmp.ne.s32.totalorder %s64, %s66
      %p73 = scmp.eq.s32.totalorder %s35, 1
      %p74 = por %p72, %p73
      %p75 = scmp.ne.s32.totalorder %s66, %s67
      %p76 = scmp.eq.s32.totalorder %s35, 0
      %p77 = por %p75, %p76
      %p78 = scmp.ne.s32.totalorder %s66, %s67
      %p79 = scmp.eq.s32.totalorder %s36, 1
      %p80 = por %p78, %p79
      %p82 = scmp.ne.s32.totalorder %s67, %s81
      %p83 = scmp.eq.s32.totalorder %s36, 0
      %p84 = por %p82, %p83
      %s86 = sadd.s32 %s85, 1
      %p89 = scmp.eq.s32.totalorder %s30, 1
      %p90 = scmp.ne.s32.totalorder %s85, %s87
      %p91 = scmp.eq.s32.totalorder %s30, 0
      %p92 = por %p90, %p91
      %p93 = scmp.ne.s32.totalorder %s85, %s87
      %p94 = scmp.eq.s32.totalorder %s35, 1
      %p95 = por %p93, %p94
      %p96 = scmp.ne.s32.totalorder %s87, %s88
      %p97 = scmp.eq.s32.totalorder %s35, 0
      %p98 = por %p96, %p97
      %p99 = scmp.ne.s32.totalorder %s87, %s88
      %p100 = scmp.eq.s32.totalorder %s36, 1
      %p101 = por %p99, %p100
      %p103 = scmp.ne.s32.totalorder %s88, %s102
      %p104 = scmp.eq.s32.totalorder %s36, 0
      %p105 = por %p103, %p104
      %s107 = sadd.s32 %s106, 1
      %p110 = scmp.eq.s32.totalorder %s30, 1
      %p111 = scmp.ne.s32.totalorder %s106, %s108
      %p112 = scmp.eq.s32.totalorder %s30, 0
      %p113 = por %p111, %p112
      %p114 = scmp.ne.s32.totalorder %s106, %s108
      %p115 = scmp.eq.s32.totalorder %s35, 1
      %p116 = por %p114, %p115
      %p117 = scmp.ne.s32.totalorder %s108, %s109
      %p118 = scmp.eq.s32.totalorder %s35, 0
      %p119 = por %p117, %p118
      %p120 = scmp.ne.s32.totalorder %s108, %s109
      %p121 = scmp.eq.s32.totalorder %s36, 1
      %p122 = por %p120, %p121
      %p124 = scmp.ne.s32.totalorder %s109, %s123
      %p125 = scmp.eq.s32.totalorder %s36, 0
      %p126 = por %p124, %p125
      %s128 = sadd.s32 %s127, 1
      %p131 = scmp.eq.s32.totalorder %s30, 1
      %p132 = scmp.ne.s32.totalorder %s127, %s129
      %p133 = scmp.eq.s32.totalorder %s30, 0
      %p134 = por %p132, %p133
      %p135 = scmp.ne.s32.totalorder %s127, %s129
      %p136 = scmp.eq.s32.totalorder %s35, 1
      %p137 = por %p135, %p136
      %p138 = scmp.ne.s32.totalorder %s129, %s130
      %p139 = scmp.eq.s32.totalorder %s35, 0
      %p140 = por %p138, %p139
      %p141 = scmp.ne.s32.totalorder %s129, %s130
      %p142 = scmp.eq.s32.totalorder %s36, 1
      %p143 = por %p141, %p142
      %p145 = scmp.ne.s32.totalorder %s130, %s144
      %p146 = scmp.eq.s32.totalorder %s36, 0
      %p147 = por %p145, %p146
      %s149 = sadd.s32 %s148, 1
      %p152 = scmp.eq.s32.totalorder %s30, 1
      %p153 = scmp.ne.s32.totalorder %s148, %s150
      %p154 = scmp.eq.s32.totalorder %s30, 0
      %p155 = por %p153, %p154
      %p156 = scmp.ne.s32.totalorder %s148, %s150
      %p157 = scmp.eq.s32.totalorder %s35, 1
      %p158 = por %p156, %p157
      %p159 = scmp.ne.s32.totalorder %s150, %s151
      %p160 = scmp.eq.s32.totalorder %s35, 0
      %p161 = por %p159, %p160
      %p162 = scmp.ne.s32.totalorder %s150, %s151
      %p163 = scmp.eq.s32.totalorder %s36, 1
      %p164 = por %p162, %p163
      %p166 = scmp.ne.s32.totalorder %s151, %s165
      %p167 = scmp.eq.s32.totalorder %s36, 0
      %p168 = por %p166, %p167
      %s170 = sadd.s32 %s169, 1
      %p173 = scmp.eq.s32.totalorder %s30, 1
      %p174 = scmp.ne.s32.totalorder %s169, %s171
      %p175 = scmp.eq.s32.totalorder %s30, 0
      %p176 = por %p174, %p175
      %p177 = scmp.ne.s32.totalorder %s169, %s171
      %p178 = scmp.eq.s32.totalorder %s35, 1
      %p179 = por %p177, %p178
      %p180 = scmp.ne.s32.totalorder %s171, %s172
      %p181 = scmp.eq.s32.totalorder %s35, 0
      %p182 = por %p180, %p181
      %p183 = scmp.ne.s32.totalorder %s171, %s172
      %p184 = scmp.eq.s32.totalorder %s36, 1
      %p185 = por %p183, %p184
      %p187 = scmp.ne.s32.totalorder %s172, %s186
      %p188 = scmp.eq.s32.totalorder %s36, 0
      %p189 = por %p187, %p188
      %s191 = sadd.s32 %s190, 1
      %p194 = scmp.eq.s32.totalorder %s30, 1
      %p195 = scmp.ne.s32.totalorder %s190, %s192
      %p196 = scmp.eq.s32.totalorder %s30, 0
      %p197 = por %p195, %p196
      %p198 = scmp.ne.s32.totalorder %s190, %s192
      %p199 = scmp.eq.s32.totalorder %s35, 1
      %p200 = por %p198, %p199
      %p201 = scmp.ne.s32.totalorder %s192, %s193
      %p202 = scmp.eq.s32.totalorder %s35, 0
      %p203 = por %p201, %p202
      %p204 = scmp.ne.s32.totalorder %s192, %s193
      %p205 = scmp.eq.s32.totalorder %s36, 1
      %p206 = por %p204, %p205
      %p208 = scmp.ne.s32.totalorder %s193, %s207
      %p209 = scmp.eq.s32.totalorder %s36, 0
      %p210 = por %p208, %p209
      %s212 = sadd.s32 %s211, 1
      %p215 = scmp.eq.s32.totalorder %s30, 1
      %p216 = scmp.ne.s32.totalorder %s211, %s213
      %p217 = scmp.eq.s32.totalorder %s30, 0
      %p218 = por %p216, %p217
      %p219 = scmp.ne.s32.totalorder %s211, %s213
      %p220 = scmp.eq.s32.totalorder %s35, 1
      %p221 = por %p219, %p220
      %p222 = scmp.ne.s32.totalorder %s213, %s214
      %p223 = scmp.eq.s32.totalorder %s35, 0
      %p224 = por %p222, %p223
      %p225 = scmp.ne.s32.totalorder %s213, %s214
      %p226 = scmp.eq.s32.totalorder %s36, 1
      %p227 = por %p225, %p226
      %p229 = scmp.ne.s32.totalorder %s214, %s228
      %p230 = scmp.eq.s32.totalorder %s36, 0
      %p231 = por %p229, %p230
      %s233 = sadd.s32 %s232, 1
      %p236 = scmp.eq.s32.totalorder %s30, 1
      %p237 = scmp.ne.s32.totalorder %s232, %s234
      %p238 = scmp.eq.s32.totalorder %s30, 0
      %p239 = por %p237, %p238
      %p240 = scmp.ne.s32.totalorder %s232, %s234
      %p241 = scmp.eq.s32.totalorder %s35, 1
      %p242 = por %p240, %p241
      %p243 = scmp.ne.s32.totalorder %s234, %s235
      %p244 = scmp.eq.s32.totalorder %s35, 0
      %p245 = por %p243, %p244
      %p246 = scmp.ne.s32.totalorder %s234, %s235
      %p247 = scmp.eq.s32.totalorder %s36, 1
      %p248 = por %p246, %p247
      %p250 = scmp.ne.s32.totalorder %s235, %s249
      %p251 = scmp.eq.s32.totalorder %s36, 0
      %p252 = por %p250, %p251
      %s254 = sadd.s32 %s253, 1
      %p257 = scmp.eq.s32.totalorder %s30, 1
      %p258 = scmp.ne.s32.totalorder %s253, %s255
      %p259 = scmp.eq.s32.totalorder %s30, 0
      %p260 = por %p258, %p259
      %p261 = scmp.ne.s32.totalorder %s253, %s255
      %p262 = scmp.eq.s32.totalorder %s35, 1
      %p263 = por %p261, %p262
      %p264 = scmp.ne.s32.totalorder %s255, %s256
      %p265 = scmp.eq.s32.totalorder %s35, 0
      %p266 = por %p264, %p265
      %p267 = scmp.ne.s32.totalorder %s255, %s256
      %p268 = scmp.eq.s32.totalorder %s36, 1
      %p269 = por %p267, %p268
      %p271 = scmp.ne.s32.totalorder %s256, %s270
      %p272 = scmp.eq.s32.totalorder %s36, 0
      %p273 = por %p271, %p272
      %s275 = sadd.s32 %s274, 1
      %p278 = scmp.eq.s32.totalorder %s30, 1
      %p279 = scmp.ne.s32.totalorder %s274, %s276
      %p280 = scmp.eq.s32.totalorder %s30, 0
      %p281 = por %p279, %p280
      %p282 = scmp.ne.s32.totalorder %s274, %s276
      %p283 = scmp.eq.s32.totalorder %s35, 1
      %p284 = por %p282, %p283
      %p285 = scmp.ne.s32.totalorder %s276, %s277
      %p286 = scmp.eq.s32.totalorder %s35, 0
      %p287 = por %p285, %p286
      %p288 = scmp.ne.s32.totalorder %s276, %s277
      %p289 = scmp.eq.s32.totalorder %s36, 1
      %p290 = por %p288, %p289
      %p292 = scmp.ne.s32.totalorder %s277, %s291
      %p293 = scmp.eq.s32.totalorder %s36, 0
      %p294 = por %p292, %p293
      %s296 = sadd.s32 %s295, 1
      %p299 = scmp.eq.s32.totalorder %s30, 1
      %p300 = scmp.ne.s32.totalorder %s295, %s297
      %p301 = scmp.eq.s32.totalorder %s30, 0
      %p302 = por %p300, %p301
      %p303 = scmp.ne.s32.totalorder %s295, %s297
      %p304 = scmp.eq.s32.totalorder %s35, 1
      %p305 = por %p303, %p304
      %p306 = scmp.ne.s32.totalorder %s297, %s298
      %p307 = scmp.eq.s32.totalorder %s35, 0
      %p308 = por %p306, %p307
      %p309 = scmp.ne.s32.totalorder %s297, %s298
      %p310 = scmp.eq.s32.totalorder %s36, 1
      %p311 = por %p309, %p310
      %p313 = scmp.ne.s32.totalorder %s298, %s312
      %p314 = scmp.eq.s32.totalorder %s36, 0
      %p315 = por %p313, %p314
      %s317 = sadd.s32 %s316, 1
      %p320 = scmp.eq.s32.totalorder %s30, 1
      %p321 = scmp.ne.s32.totalorder %s316, %s318
      %p322 = scmp.eq.s32.totalorder %s30, 0
      %p323 = por %p321, %p322
      %p324 = scmp.ne.s32.totalorder %s316, %s318
      %p325 = scmp.eq.s32.totalorder %s35, 1
      %p326 = por %p324, %p325
      %p327 = scmp.ne.s32.totalorder %s318, %s319
      %p328 = scmp.eq.s32.totalorder %s35, 0
      %p329 = por %p327, %p328
      %p330 = scmp.ne.s32.totalorder %s318, %s319
      %p331 = scmp.eq.s32.totalorder %s36, 1
      %p332 = por %p330, %p331
      %p334 = scmp.ne.s32.totalorder %s319, %s333
      %p335 = scmp.eq.s32.totalorder %s36, 0
      %p336 = por %p334, %p335
      %s338 = sadd.s32 %s337, 1
      %p341 = scmp.eq.s32.totalorder %s30, 1
      %p342 = scmp.ne.s32.totalorder %s337, %s339
      %p343 = scmp.eq.s32.totalorder %s30, 0
      %p344 = por %p342, %p343
      %p345 = scmp.ne.s32.totalorder %s337, %s339
      %p346 = scmp.eq.s32.totalorder %s35, 1
      %p347 = por %p345, %p346
      %p348 = scmp.ne.s32.totalorder %s339, %s340
      %p349 = scmp.eq.s32.totalorder %s35, 0
      %p350 = por %p348, %p349
      %p351 = scmp.ne.s32.totalorder %s339, %s340
      %p352 = scmp.eq.s32.totalorder %s36, 1
      %p353 = por %p351, %p352
      %p355 = scmp.ne.s32.totalorder %s340, %s354
      %p356 = scmp.eq.s32.totalorder %s36, 0
      %p357 = por %p355, %p356
      %s359 = sadd.s32 %s358, 1
      %p362 = scmp.eq.s32.totalorder %s30, 1
      %p363 = scmp.ne.s32.totalorder %s358, %s360
      %p364 = scmp.eq.s32.totalorder %s30, 0
      %p365 = por %p363, %p364
      %p366 = scmp.ne.s32.totalorder %s358, %s360
      %p367 = scmp.eq.s32.totalorder %s35, 1
      %p368 = por %p366, %p367
      %p369 = scmp.ne.s32.totalorder %s360, %s361
      %p370 = scmp.eq.s32.totalorder %s35, 0
      %p371 = por %p369, %p370
      %p372 = scmp.ne.s32.totalorder %s360, %s361
      %p373 = scmp.eq.s32.totalorder %s36, 1
      %p374 = por %p372, %p373
      %p376 = scmp.ne.s32.totalorder %s361, %s375
      %p377 = scmp.eq.s32.totalorder %s36, 0
      %p378 = por %p376, %p377
      %s380 = sadd.s32 %s379, 1
      %p383 = scmp.eq.s32.totalorder %s30, 1
      %p384 = scmp.ne.s32.totalorder %s379, %s381
      %p385 = scmp.eq.s32.totalorder %s30, 0
      %p386 = por %p384, %p385
      %p387 = scmp.ne.s32.totalorder %s379, %s381
      %p388 = scmp.eq.s32.totalorder %s35, 1
      %p389 = por %p387, %p388
      %p390 = scmp.ne.s32.totalorder %s381, %s382
      %p391 = scmp.eq.s32.totalorder %s35, 0
      %p392 = por %p390, %p391
      %p393 = scmp.ne.s32.totalorder %s381, %s382
      %p394 = scmp.eq.s32.totalorder %s36, 1
      %p395 = por %p393, %p394
      %p397 = scmp.ne.s32.totalorder %s382, %s396
      %p398 = scmp.eq.s32.totalorder %s36, 0
      %p399 = por %p397, %p398
      %s401 = sadd.s32 %s400, 1
      %p404 = scmp.eq.s32.totalorder %s30, 1
      %p405 = scmp.ne.s32.totalorder %s400, %s402
      %p406 = scmp.eq.s32.totalorder %s30, 0
      %p407 = por %p405, %p406
      %p408 = scmp.ne.s32.totalorder %s400, %s402
      %p409 = scmp.eq.s32.totalorder %s35, 1
      %p410 = por %p408, %p409
      %p411 = scmp.ne.s32.totalorder %s402, %s403
      %p412 = scmp.eq.s32.totalorder %s35, 0
      %p413 = por %p411, %p412
      %p414 = scmp.ne.s32.totalorder %s402, %s403
      %p415 = scmp.eq.s32.totalorder %s36, 1
      %p416 = por %p414, %p415
      %p418 = scmp.ne.s32.totalorder %s403, %s417
      %p419 = scmp.eq.s32.totalorder %s36, 0
      %p420 = por %p418, %p419
      %s422 = sadd.s32 %s421, 1
      %p425 = scmp.eq.s32.totalorder %s30, 1
      %p426 = scmp.ne.s32.totalorder %s421, %s423
      %p427 = scmp.eq.s32.totalorder %s30, 0
      %p428 = por %p426, %p427
      %p429 = scmp.ne.s32.totalorder %s421, %s423
      %p430 = scmp.eq.s32.totalorder %s35, 1
      %p431 = por %p429, %p430
      %p432 = scmp.ne.s32.totalorder %s423, %s424
      %p433 = scmp.eq.s32.totalorder %s35, 0
      %p434 = por %p432, %p433
      %p435 = scmp.ne.s32.totalorder %s423, %s424
      %p436 = scmp.eq.s32.totalorder %s36, 1
      %p437 = por %p435, %p436
      %p439 = scmp.ne.s32.totalorder %s424, %s438
      %p440 = scmp.eq.s32.totalorder %s36, 0
      %p441 = por %p439, %p440
      %s443 = sadd.s32 %s442, 1
      %p446 = scmp.eq.s32.totalorder %s30, 1
      %p447 = scmp.ne.s32.totalorder %s442, %s444
      %p448 = scmp.eq.s32.totalorder %s30, 0
      %p449 = por %p447, %p448
      %p450 = scmp.ne.s32.totalorder %s442, %s444
      %p451 = scmp.eq.s32.totalorder %s35, 1
      %p452 = por %p450, %p451
      %p453 = scmp.ne.s32.totalorder %s444, %s445
      %p454 = scmp.eq.s32.totalorder %s35, 0
      %p455 = por %p453, %p454
      %p456 = scmp.ne.s32.totalorder %s444, %s445
      %p457 = scmp.eq.s32.totalorder %s36, 1
      %p458 = por %p456, %p457
      %p460 = scmp.ne.s32.totalorder %s445, %s459
      %p461 = scmp.eq.s32.totalorder %s36, 0
      %p462 = por %p460, %p461
      %s464 = sadd.s32 %s463, 1
      %p467 = scmp.eq.s32.totalorder %s30, 1
      %p468 = scmp.ne.s32.totalorder %s463, %s465
      %p469 = scmp.eq.s32.totalorder %s30, 0
      %p470 = por %p468, %p469
      %p471 = scmp.ne.s32.totalorder %s463, %s465
      %p472 = scmp.eq.s32.totalorder %s35, 1
      %p473 = por %p471, %p472
      %p474 = scmp.ne.s32.totalorder %s465, %s466
      %p475 = scmp.eq.s32.totalorder %s35, 0
      %p476 = por %p474, %p475
      %p477 = scmp.ne.s32.totalorder %s465, %s466
      %p478 = scmp.eq.s32.totalorder %s36, 1
      %p479 = por %p477, %p478
      %p481 = scmp.ne.s32.totalorder %s466, %s480
      %p482 = scmp.eq.s32.totalorder %s36, 0
      %p483 = por %p481, %p482
      %s484 = ssub.s32 %s30, %s37
      %p485 = scmp.eq.s32.totalorder %s484, 0
      %s487 = sadd.s32 %s486, 1
      %s488 = scalar_select %p485, %s486, %s487
      %p491 = pneg %p485
      %p492 = scmp.eq.s32.totalorder %s30, 1
      %p493 = por %p491, %p492
      %p494 = scmp.ne.s32.totalorder %s486, %s489
      %p495 = scmp.eq.s32.totalorder %s30, 0
      %p496 = por %p494, %p495
      %p497 = scmp.ne.s32.totalorder %s486, %s489
      %p498 = scmp.eq.s32.totalorder %s35, 1
      %p499 = por %p497, %p498
      %p500 = scmp.ne.s32.totalorder %s489, %s490
      %p501 = scmp.eq.s32.totalorder %s35, 0
      %p502 = por %p500, %p501
      %p503 = scmp.ne.s32.totalorder %s489, %s490
      %p504 = scmp.eq.s32.totalorder %s36, 1
      %p505 = por %p503, %p504
      %p507 = scmp.ne.s32.totalorder %s490, %s506
      %p508 = scmp.eq.s32.totalorder %s36, 0
      %p509 = por %p507, %p508
      %p510 = scmp.le.s32.totalorder 1, %s30
      %p511 = scmp.lt.s32.totalorder %s30, 3
      %p512 = pnand %p510, %p511
      %p513 = pneg %p512
      // Predicated region
      $region9: #{tpu_custom_call.1} parent=5 // pred_check
        _
      $region10: #{tpu_custom_call.1} parent=5 // pred_check_branch
        %515 = sbr.rel (%p512) target = $region12
      $region11: #{tpu_custom_call.1} parent=5 // pred_region
        %s516 = ssub.s32 %s30, 1
        // Predicated region
        $region13: #{tpu_custom_call.1} parent=11 // pred_check
          %p517 = pneg %p77
        $region14: #{tpu_custom_call.1} parent=11 // pred_check_branch
          %519 = sbr.rel (%p517) target = $region16
        $region15: #{tpu_custom_call.1} parent=11 // pred_region
          _
        $region16: #{tpu_custom_call.1} parent=11 // pred_fallthru
          _
        // Predicated region
        $region17: #{tpu_custom_call.1} parent=11 // pred_check
          %p520 = pneg %p98
        $region18: #{tpu_custom_call.1} parent=11 // pred_check_branch
          %522 = sbr.rel (%p520) target = $region20
        $region19: #{tpu_custom_call.1} parent=11 // pred_region
          _
        $region20: #{tpu_custom_call.1} parent=11 // pred_fallthru
          _
        // Predicated region
        $region21: #{tpu_custom_call.1} parent=11 // pred_check
          %p523 = pneg %p119
        $region22: #{tpu_custom_call.1} parent=11 // pred_check_branch
          %525 = sbr.rel (%p523) target = $region24
        $region23: #{tpu_custom_call.1} parent=11 // pred_region
          _
        $region24: #{tpu_custom_call.1} parent=11 // pred_fallthru
          _
        // Predicated region
        $region25: #{tpu_custom_call.1} parent=11 // pred_check
          %p526 = pneg %p140
        $region26: #{tpu_custom_call.1} parent=11 // pred_check_branch
          %528 = sbr.rel (%p526) target = $region28
        $region27: #{tpu_custom_call.1} parent=11 // pred_region
          _
        $region28: #{tpu_custom_call.1} parent=11 // pred_fallthru
          _
        // Predicated region
        $region29: #{tpu_custom_call.1} parent=11 // pred_check
          %p529 = pneg %p161
        $region30: #{tpu_custom_call.1} parent=11 // pred_check_branch
          %531 = sbr.rel (%p529) target = $region32
        $region31: #{tpu_custom_call.1} parent=11 // pred_region
          _
        $region32: #{tpu_custom_call.1} parent=11 // pred_fallthru
          _
        // Predicated region
        $region33: #{tpu_custom_call.1} parent=11 // pred_check
          %p532 = pneg %p182
        $region34: #{tpu_custom_call.1} parent=11 // pred_check_branch
          %534 = sbr.rel (%p532) target = $region36
        $region35: #{tpu_custom_call.1} parent=11 // pred_region
          _
        $region36: #{tpu_custom_call.1} parent=11 // pred_fallthru
          _
        // Predicated region
        $region37: #{tpu_custom_call.1} parent=11 // pred_check
          %p535 = pneg %p203
        $region38: #{tpu_custom_call.1} parent=11 // pred_check_branch
          %537 = sbr.rel (%p535) target = $region40
        $region39: #{tpu_custom_call.1} parent=11 // pred_region
          _
        $region40: #{tpu_custom_call.1} parent=11 // pred_fallthru
          _
        // Predicated region
        $region41: #{tpu_custom_call.1} parent=11 // pred_check
          %p538 = pneg %p224
        $region42: #{tpu_custom_call.1} parent=11 // pred_check_branch
          %540 = sbr.rel (%p538) target = $region44
        $region43: #{tpu_custom_call.1} parent=11 // pred_region
          _
        $region44: #{tpu_custom_call.1} parent=11 // pred_fallthru
          _
        // Predicated region
        $region45: #{tpu_custom_call.1} parent=11 // pred_check
          %p541 = pneg %p245
        $region46: #{tpu_custom_call.1} parent=11 // pred_check_branch
          %543 = sbr.rel (%p541) target = $region48
        $region47: #{tpu_custom_call.1} parent=11 // pred_region
          _
        $region48: #{tpu_custom_call.1} parent=11 // pred_fallthru
          _
        // Predicated region
        $region49: #{tpu_custom_call.1} parent=11 // pred_check
          %p544 = pneg %p266
        $region50: #{tpu_custom_call.1} parent=11 // pred_check_branch
          %546 = sbr.rel (%p544) target = $region52
        $region51: #{tpu_custom_call.1} parent=11 // pred_region
          _
        $region52: #{tpu_custom_call.1} parent=11 // pred_fallthru
          _
        // Predicated region
        $region53: #{tpu_custom_call.1} parent=11 // pred_check
          %p547 = pneg %p287
        $region54: #{tpu_custom_call.1} parent=11 // pred_check_branch
          %549 = sbr.rel (%p547) target = $region56
        $region55: #{tpu_custom_call.1} parent=11 // pred_region
          _
        $region56: #{tpu_custom_call.1} parent=11 // pred_fallthru
          _
        // Predicated region
        $region57: #{tpu_custom_call.1} parent=11 // pred_check
          %p550 = pneg %p308
        $region58: #{tpu_custom_call.1} parent=11 // pred_check_branch
          %552 = sbr.rel (%p550) target = $region60
        $region59: #{tpu_custom_call.1} parent=11 // pred_region
          _
        $region60: #{tpu_custom_call.1} parent=11 // pred_fallthru
          _
        // Predicated region
        $region61: #{tpu_custom_call.1} parent=11 // pred_check
          %p553 = pneg %p329
        $region62: #{tpu_custom_call.1} parent=11 // pred_check_branch
          %555 = sbr.rel (%p553) target = $region64
        $region63: #{tpu_custom_call.1} parent=11 // pred_region
          _
        $region64: #{tpu_custom_call.1} parent=11 // pred_fallthru
          _
        // Predicated region
        $region65: #{tpu_custom_call.1} parent=11 // pred_check
          %p556 = pneg %p350
        $region66: #{tpu_custom_call.1} parent=11 // pred_check_branch
          %558 = sbr.rel (%p556) target = $region68
        $region67: #{tpu_custom_call.1} parent=11 // pred_region
          _
        $region68: #{tpu_custom_call.1} parent=11 // pred_fallthru
          _
        // Predicated region
        $region69: #{tpu_custom_call.1} parent=11 // pred_check
          %p559 = pneg %p371
        $region70: #{tpu_custom_call.1} parent=11 // pred_check_branch
          %561 = sbr.rel (%p559) target = $region72
        $region71: #{tpu_custom_call.1} parent=11 // pred_region
          _
        $region72: #{tpu_custom_call.1} parent=11 // pred_fallthru
          _
        // Predicated region
        $region73: #{tpu_custom_call.1} parent=11 // pred_check
          %p562 = pneg %p392
        $region74: #{tpu_custom_call.1} parent=11 // pred_check_branch
          %564 = sbr.rel (%p562) target = $region76
        $region75: #{tpu_custom_call.1} parent=11 // pred_region
          _
        $region76: #{tpu_custom_call.1} parent=11 // pred_fallthru
          _
        // Predicated region
        $region77: #{tpu_custom_call.1} parent=11 // pred_check
          %p565 = pneg %p413
        $region78: #{tpu_custom_call.1} parent=11 // pred_check_branch
          %567 = sbr.rel (%p565) target = $region80
        $region79: #{tpu_custom_call.1} parent=11 // pred_region
          _
        $region80: #{tpu_custom_call.1} parent=11 // pred_fallthru
          _
        // Predicated region
        $region81: #{tpu_custom_call.1} parent=11 // pred_check
          %p568 = pneg %p434
        $region82: #{tpu_custom_call.1} parent=11 // pred_check_branch
          %570 = sbr.rel (%p568) target = $region84
        $region83: #{tpu_custom_call.1} parent=11 // pred_region
          _
        $region84: #{tpu_custom_call.1} parent=11 // pred_fallthru
          _
        // Predicated region
        $region85: #{tpu_custom_call.1} parent=11 // pred_check
          %p571 = pneg %p455
        $region86: #{tpu_custom_call.1} parent=11 // pred_check_branch
          %573 = sbr.rel (%p571) target = $region88
        $region87: #{tpu_custom_call.1} parent=11 // pred_region
          _
        $region88: #{tpu_custom_call.1} parent=11 // pred_fallthru
          _
        // Predicated region
        $region89: #{tpu_custom_call.1} parent=11 // pred_check
          %p574 = pneg %p476
        $region90: #{tpu_custom_call.1} parent=11 // pred_check_branch
          %576 = sbr.rel (%p574) target = $region92
        $region91: #{tpu_custom_call.1} parent=11 // pred_region
          _
        $region92: #{tpu_custom_call.1} parent=11 // pred_fallthru
          _
      $region12: #{tpu_custom_call.1} parent=5 // pred_fallthru
        _
      %p577 = scmp.lt.s32.totalorder %s30, 2
      // Predicated region
      $region93: #{tpu_custom_call.1} parent=5 // pred_check
        %p578 = pneg %p577
      $region94: #{tpu_custom_call.1} parent=5 // pred_check_branch
        %580 = sbr.rel (%p578) target = $region96
      $region95: #{tpu_custom_call.1} parent=5 // pred_region
        // Predicated region
        $region97: #{tpu_custom_call.1} parent=95 // pred_check
          %p581 = pneg %p50
        $region98: #{tpu_custom_call.1} parent=95 // pred_check_branch
          %583 = sbr.rel (%p581) target = $region100
        $region99: #{tpu_custom_call.1} parent=95 // pred_region
          %p584 = scmp.lt.s32.totalorder %s30, 1
          %s585 = scalar_select %p584, %s30, 1
          %s586 = smul.addr %s585, 8
          %s587 = scalar_lea.vmem %s0, %s586
        $region100: #{tpu_custom_call.1} parent=95 // pred_fallthru
          _
      $region96: #{tpu_custom_call.1} parent=5 // pred_fallthru
        _
      %p588 = scmp.le.s32.totalorder 1, %s30
      %p589 = scmp.lt.s32.totalorder %s30, 3
      %p590 = pnand %p588, %p589
      %p591 = pneg %p590
      // Predicated region
      $region101: #{tpu_custom_call.1} parent=5 // pred_check
        _
      $region102: #{tpu_custom_call.1} parent=5 // pred_check_branch
        %593 = sbr.rel (%p590) target = $region104
      $region103: #{tpu_custom_call.1} parent=5 // pred_region
        %s594 = ssub.s32 %s30, 1
        %p595 = scmp.lt.s32.totalorder %s35, 1
        %s596 = scalar_select %p595, %s35, 1
        %s597 = smul.addr %s596, 8
        %s598 = scalar_lea.vmem %s0, %s597
        %p599 = pneg %p56
        %p600 = pneg %p53
        %p601 = pneg %p77
        %p602 = pneg %p74
        %p603 = pneg %p98
        %p604 = pneg %p95
        %p605 = pneg %p119
        %p606 = pneg %p116
        %p607 = pneg %p140
        %p608 = pneg %p137
        %p609 = pneg %p161
        %p610 = pneg %p158
        %p611 = pneg %p182
        %p612 = pneg %p179
        %p613 = pneg %p203
        %p614 = pneg %p200
        %p615 = pneg %p224
        %p616 = pneg %p221
        %p617 = pneg %p245
        %p618 = pneg %p242
        %p619 = pneg %p266
        %p620 = pneg %p263
        %p621 = pneg %p287
        %p622 = pneg %p284
        %p623 = pneg %p308
        %p624 = pneg %p305
        %p625 = pneg %p329
        %p626 = pneg %p326
        %p627 = pneg %p350
        %p628 = pneg %p347
        %p629 = pneg %p371
        %p630 = pneg %p368
        %p631 = pneg %p392
        %p632 = pneg %p389
        %p633 = pneg %p413
        %p634 = pneg %p410
        %p635 = pneg %p434
        %p636 = pneg %p431
        %p637 = pneg %p455
        %p638 = pneg %p452
        %p639 = pneg %p476
        %p640 = pneg %p473
        %p641 = pneg %p502
        %p642 = pneg %p499
        %s643 = sand.u32 %s489, 1
        %s644 = scalar_lea.sflag [#allocation3], %s643
        %s645 = sand.u32 %s489, 1
        %s646 = smul.addr %s645, 8
        %s647 = scalar_lea.vmem [#allocation2], %s646
        %p648 = scmp.lt.s32.totalorder %s35, 1
        %s649 = scalar_select %p648, %s35, 1
        %s650 = smul.addr %s649, 8
        %s651 = scalar_lea.vmem %s0, %s650
        %v653 = vld [vmem:[%s651] sm:$0xff]
        %v654 = vpack.c.bf16 %v653, %v653
        %v655 = vld [vmem:[%s3] sm:$0xf]
        %v656 = vld [vmem:[%s3 + $0x4] sm:$0xf]
        %v657 = vld [vmem:[%s3 + $0x8] sm:$0xf]
        %v658 = vld [vmem:[%s3 + $0xc] sm:$0xf]
        %v659 = vld [vmem:[%s4] sm:$0x1]
        %v661 = vlaneseq
        %v662 = vshrl.u32 %v661, 7
        %v663 = vsub.s32 0, %v662
        %v664 = vrot.slane %v659, %v663
        %v670 = vunpack.c.l.b16 %v655
        %v671 = vunpack.c.l.b16 %v656
        %v672 = vunpack.c.l.b16 %v657
        %v673 = vunpack.c.l.b16 %v658
        %v674 = vpack.c.b16 %v671, %v670
        %v675 = vpack.c.b16 %v673, %v672
        %vm678 = vcmask 261120
        %v680 = vsel %vm678, %v654, 0
        %682 = vmatprep.subr.bf16.mxu0 0
        %683 = vmatpush1.bf16.msra.mxu0 %v674
        %684 = vmatprep.subr.bf16.mxu0 0
        %685 = vmatpush1.bf16.msra.mxu0 %v675
        %686 = vmatprep.subr.bf16.mxu0 0
        %687 = vmatpush1.bf16.msra.mxu0 0
        %688 = vmatprep.subr.bf16.mxu0 0
        %689 = vmatpush1.bf16.msra.mxu0 0
        %690 = vmatprep.subr.bf16.mxu0 0
        %691 = vmatpush1.bf16.msra.mxu0 0
        %692 = vmatprep.subr.bf16.mxu0 0
        %693 = vmatpush1.bf16.msra.mxu0 0
        %694 = vmatprep.subr.bf16.mxu0 0
        %695 = vmatpush1.bf16.msra.mxu0 0
        %696 = vmatprep.subr.bf16.mxu0 0
        %697 = vmatpush1.bf16.msra.mxu0 0
        %698 = vmatprep.subr.bf16.mxu0 0
        %699 = vmatpush1.bf16.msra.mxu0 0
        %700 = vmatprep.subr.bf16.mxu0 0
        %701 = vmatpush1.bf16.msra.mxu0 0
        %702 = vmatprep.subr.bf16.mxu0 0
        %703 = vmatpush1.bf16.msra.mxu0 0
        %704 = vmatprep.subr.bf16.mxu0 0
        %705 = vmatpush1.bf16.msra.mxu0 0
        %706 = vmatprep.subr.bf16.mxu0 0
        %707 = vmatpush1.bf16.msra.mxu0 0
        %708 = vmatprep.subr.bf16.mxu0 0
        %709 = vmatpush1.bf16.msra.mxu0 0
        %710 = vmatprep.subr.bf16.mxu0 0
        %711 = vmatpush1.bf16.msra.mxu0 0
        %712 = vmatprep.subr.bf16.mxu0 0
        %713 = vmatpush1.bf16.msra.mxu0 0
        %714 = vmatprep.mubr.bf16.mxu0 0
        %715 = vmatmul.mubr.bf16.gmra.mrb[0].mxu0 %v680
        %v716 = vpop.f32.mrb[0].mxu0
        %v717 = vadd.f32 %v664, %v716
        %v718 = vpop.f32.mrb[0].mxu0
        %v719 = vpop.f32.mrb[0].mxu0
        %v720 = vpop.f32.mrb[0].mxu0
        %721 = vdwg.mxu0
        %v722 = vld [vmem:[%s5] sm:$0xf]
        %v723 = vld [vmem:[%s5 + $0x4] sm:$0xf]
        %v724 = vld [vmem:[%s5 + $0x8] sm:$0xf]
        %v725 = vld [vmem:[%s5 + $0xc] sm:$0xf]
        %v726 = vld [vmem:[%s6] sm:$0x1]
        %v728 = vlaneseq
        %v729 = vshrl.u32 %v728, 7
        %v730 = vsub.s32 0, %v729
        %v731 = vrot.slane %v726, %v730
        %v737 = vunpack.c.l.b16 %v722
        %v738 = vunpack.c.l.b16 %v723
        %v739 = vunpack.c.l.b16 %v724
        %v740 = vunpack.c.l.b16 %v725
        %v741 = vpack.c.b16 %v738, %v737
        %v742 = vpack.c.b16 %v740, %v739
        %745 = vmatprep.subr.bf16.mxu0 0
        %746 = vmatpush1.bf16.msra.mxu0 %v741
        %747 = vmatprep.subr.bf16.mxu0 0
        %748 = vmatpush1.bf16.msra.mxu0 %v742
        %749 = vmatprep.subr.bf16.mxu0 0
        %750 = vmatpush1.bf16.msra.mxu0 0
        %751 = vmatprep.subr.bf16.mxu0 0
        %752 = vmatpush1.bf16.msra.mxu0 0
        %753 = vmatprep.subr.bf16.mxu0 0
        %754 = vmatpush1.bf16.msra.mxu0 0
        %755 = vmatprep.subr.bf16.mxu0 0
        %756 = vmatpush1.bf16.msra.mxu0 0
        %757 = vmatprep.subr.bf16.mxu0 0
        %758 = vmatpush1.bf16.msra.mxu0 0
        %759 = vmatprep.subr.bf16.mxu0 0
        %760 = vmatpush1.bf16.msra.mxu0 0
        %761 = vmatprep.subr.bf16.mxu0 0
        %762 = vmatpush1.bf16.msra.mxu0 0
        %763 = vmatprep.subr.bf16.mxu0 0
        %764 = vmatpush1.bf16.msra.mxu0 0
        %765 = vmatprep.subr.bf16.mxu0 0
        %766 = vmatpush1.bf16.msra.mxu0 0
        %767 = vmatprep.subr.bf16.mxu0 0
        %768 = vmatpush1.bf16.msra.mxu0 0
        %769 = vmatprep.subr.bf16.mxu0 0
        %770 = vmatpush1.bf16.msra.mxu0 0
        %771 = vmatprep.subr.bf16.mxu0 0
        %772 = vmatpush1.bf16.msra.mxu0 0
        %773 = vmatprep.subr.bf16.mxu0 0
        %774 = vmatpush1.bf16.msra.mxu0 0
        %775 = vmatprep.subr.bf16.mxu0 0
        %776 = vmatpush1.bf16.msra.mxu0 0
        %777 = vmatprep.mubr.bf16.mxu0 0
        %778 = vmatmul.mubr.bf16.gmra.mrb[0].mxu0 %v680
        %v779 = vpop.f32.mrb[0].mxu0
        %v780 = vadd.f32 %v731, %v779
        %v781 = vpop.f32.mrb[0].mxu0
        %v782 = vpop.f32.mrb[0].mxu0
        %v783 = vpop.f32.mrb[0].mxu0
        %784 = vdwg.mxu0
        %v785 = vld [vmem:[%s1] sm:$0xf]
        %v786 = vld [vmem:[%s1 + $0x4] sm:$0xf]
        %v787 = vld [vmem:[%s1 + $0x8] sm:$0xf]
        %v788 = vld [vmem:[%s1 + $0xc] sm:$0xf]
        %v789 = vld [vmem:[%s1 + $0x10] sm:$0xf]
        %v790 = vld [vmem:[%s1 + $0x14] sm:$0xf]
        %v791 = vld [vmem:[%s1 + $0x18] sm:$0xf]
        %v792 = vld [vmem:[%s1 + $0x1c] sm:$0xf]
        %v793 = vld [vmem:[%s1 + $0x20] sm:$0xf]
        %v794 = vld [vmem:[%s1 + $0x24] sm:$0xf]
        %v795 = vld [vmem:[%s1 + $0x28] sm:$0xf]
        %v796 = vld [vmem:[%s1 + $0x2c] sm:$0xf]
        %v797 = vld [vmem:[%s1 + $0x30] sm:$0xf]
        %v798 = vld [vmem:[%s1 + $0x34] sm:$0xf]
        %v799 = vld [vmem:[%s1 + $0x38] sm:$0xf]
        %v800 = vld [vmem:[%s1 + $0x3c] sm:$0xf]
        %v801 = vld [vmem:[%s2] sm:$0x1]
        %v802 = vld [vmem:[%s2 + $0x1] sm:$0x1]
        %v803 = vld [vmem:[%s2 + $0x2] sm:$0x1]
        %v804 = vld [vmem:[%s2 + $0x3] sm:$0x1]
        %v809 = vlaneseq
        %v810 = vshrl.u32 %v809, 7
        %v811 = vsub.s32 0, %v810
        %v812 = vrot.slane %v801, %v811
        %v813 = vlaneseq
        %v814 = vshrl.u32 %v813, 7
        %v815 = vsub.s32 0, %v814
        %v816 = vrot.slane %v802, %v815
        %v817 = vlaneseq
        %v818 = vshrl.u32 %v817, 7
        %v819 = vsub.s32 0, %v818
        %v820 = vrot.slane %v803, %v819
        %v821 = vlaneseq
        %v822 = vshrl.u32 %v821, 7
        %v823 = vsub.s32 0, %v822
        %v824 = vrot.slane %v804, %v823
        %v833 = vunpack.c.l.b16 %v785
        %v834 = vunpack.c.l.b16 %v786
        %v835 = vunpack.c.l.b16 %v787
        %v836 = vunpack.c.l.b16 %v788
        %v837 = vpack.c.b16 %v834, %v833
        %v838 = vpack.c.b16 %v836, %v835
        %841 = vmatprep.subr.bf16.mxu0 0
        %842 = vmatpush1.bf16.msra.mxu0 %v837
        %843 = vmatprep.subr.bf16.mxu0 0
        %844 = vmatpush1.bf16.msra.mxu0 %v838
        %845 = vmatprep.subr.bf16.mxu0 0
        %846 = vmatpush1.bf16.msra.mxu0 0
        %847 = vmatprep.subr.bf16.mxu0 0
        %848 = vmatpush1.bf16.msra.mxu0 0
        %849 = vmatprep.subr.bf16.mxu0 0
        %850 = vmatpush1.bf16.msra.mxu0 0
        %851 = vmatprep.subr.bf16.mxu0 0
        %852 = vmatpush1.bf16.msra.mxu0 0
        %853 = vmatprep.subr.bf16.mxu0 0
        %854 = vmatpush1.bf16.msra.mxu0 0
        %855 = vmatprep.subr.bf16.mxu0 0
        %856 = vmatpush1.bf16.msra.mxu0 0
        %857 = vmatprep.subr.bf16.mxu0 0
        %858 = vmatpush1.bf16.msra.mxu0 0
        %859 = vmatprep.subr.bf16.mxu0 0
        %860 = vmatpush1.bf16.msra.mxu0 0
        %861 = vmatprep.subr.bf16.mxu0 0
        %862 = vmatpush1.bf16.msra.mxu0 0
        %863 = vmatprep.subr.bf16.mxu0 0
        %864 = vmatpush1.bf16.msra.mxu0 0
        %865 = vmatprep.subr.bf16.mxu0 0
        %866 = vmatpush1.bf16.msra.mxu0 0
        %867 = vmatprep.subr.bf16.mxu0 0
        %868 = vmatpush1.bf16.msra.mxu0 0
        %869 = vmatprep.subr.bf16.mxu0 0
        %870 = vmatpush1.bf16.msra.mxu0 0
        %871 = vmatprep.subr.bf16.mxu0 0
        %872 = vmatpush1.bf16.msra.mxu0 0
        %873 = vmatprep.mubr.bf16.mxu0 0
        %874 = vmatmul.mubr.bf16.gmra.mrb[0].mxu0 %v680
        %v875 = vpop.f32.mrb[0].mxu0
        %v876 = vadd.f32 %v812, %v875
        %v877 = vpop.f32.mrb[0].mxu0
        %v878 = vpop.f32.mrb[0].mxu0
        %v879 = vpop.f32.mrb[0].mxu0
        %880 = vdwg.mxu0
        %v885 = vunpack.c.l.b16 %v789
        %v886 = vunpack.c.l.b16 %v790
        %v887 = vunpack.c.l.b16 %v791
        %v888 = vunpack.c.l.b16 %v792
        %v889 = vpack.c.b16 %v886, %v885
        %v890 = vpack.c.b16 %v888, %v887
        %893 = vmatprep.subr.bf16.mxu0 0
        %894 = vmatpush1.bf16.msra.mxu0 %v889
        %895 = vmatprep.subr.bf16.mxu0 0
        %896 = vmatpush1.bf16.msra.mxu0 %v890
        %897 = vmatprep.subr.bf16.mxu0 0
        %898 = vmatpush1.bf16.msra.mxu0 0
        %899 = vmatprep.subr.bf16.mxu0 0
        %900 = vmatpush1.bf16.msra.mxu0 0
        %901 = vmatprep.subr.bf16.mxu0 0
        %902 = vmatpush1.bf16.msra.mxu0 0
        %903 = vmatprep.subr.bf16.mxu0 0
        %904 = vmatpush1.bf16.msra.mxu0 0
        %905 = vmatprep.subr.bf16.mxu0 0
        %906 = vmatpush1.bf16.msra.mxu0 0
        %907 = vmatprep.subr.bf16.mxu0 0
        %908 = vmatpush1.bf16.msra.mxu0 0
        %909 = vmatprep.subr.bf16.mxu0 0
        %910 = vmatpush1.bf16.msra.mxu0 0
        %911 = vmatprep.subr.bf16.mxu0 0
        %912 = vmatpush1.bf16.msra.mxu0 0
        %913 = vmatprep.subr.bf16.mxu0 0
        %914 = vmatpush1.bf16.msra.mxu0 0
        %915 = vmatprep.subr.bf16.mxu0 0
        %916 = vmatpush1.bf16.msra.mxu0 0
        %917 = vmatprep.subr.bf16.mxu0 0
        %918 = vmatpush1.bf16.msra.mxu0 0
        %919 = vmatprep.subr.bf16.mxu0 0
        %920 = vmatpush1.bf16.msra.mxu0 0
        %921 = vmatprep.subr.bf16.mxu0 0
        %922 = vmatpush1.bf16.msra.mxu0 0
        %923 = vmatprep.subr.bf16.mxu0 0
        %924 = vmatpush1.bf16.msra.mxu0 0
        %925 = vmatprep.mubr.bf16.mxu0 0
        %926 = vmatmul.mubr.bf16.gmra.mrb[0].mxu0 %v680
        %v927 = vpop.f32.mrb[0].mxu0
        %v928 = vadd.f32 %v816, %v927
        %v929 = vpop.f32.mrb[0].mxu0
        %v930 = vpop.f32.mrb[0].mxu0
        %v931 = vpop.f32.mrb[0].mxu0
        %932 = vdwg.mxu0
        %v937 = vunpack.c.l.b16 %v793
        %v938 = vunpack.c.l.b16 %v794
        %v939 = vunpack.c.l.b16 %v795
        %v940 = vunpack.c.l.b16 %v796
        %v941 = vpack.c.b16 %v938, %v937
        %v942 = vpack.c.b16 %v940, %v939
        %945 = vmatprep.subr.bf16.mxu0 0
        %946 = vmatpush1.bf16.msra.mxu0 %v941
        %947 = vmatprep.subr.bf16.mxu0 0
        %948 = vmatpush1.bf16.msra.mxu0 %v942
        %949 = vmatprep.subr.bf16.mxu0 0
        %950 = vmatpush1.bf16.msra.mxu0 0
        %951 = vmatprep.subr.bf16.mxu0 0
        %952 = vmatpush1.bf16.msra.mxu0 0
        %953 = vmatprep.subr.bf16.mxu0 0
        %954 = vmatpush1.bf16.msra.mxu0 0
        %955 = vmatprep.subr.bf16.mxu0 0
        %956 = vmatpush1.bf16.msra.mxu0 0
        %957 = vmatprep.subr.bf16.mxu0 0
        %958 = vmatpush1.bf16.msra.mxu0 0
        %959 = vmatprep.subr.bf16.mxu0 0
        %960 = vmatpush1.bf16.msra.mxu0 0
        %961 = vmatprep.subr.bf16.mxu0 0
        %962 = vmatpush1.bf16.msra.mxu0 0
        %963 = vmatprep.subr.bf16.mxu0 0
        %964 = vmatpush1.bf16.msra.mxu0 0
        %965 = vmatprep.subr.bf16.mxu0 0
        %966 = vmatpush1.bf16.msra.mxu0 0
        %967 = vmatprep.subr.bf16.mxu0 0
        %968 = vmatpush1.bf16.msra.mxu0 0
        %969 = vmatprep.subr.bf16.mxu0 0
        %970 = vmatpush1.bf16.msra.mxu0 0
        %971 = vmatprep.subr.bf16.mxu0 0
        %972 = vmatpush1.bf16.msra.mxu0 0
        %973 = vmatprep.subr.bf16.mxu0 0
        %974 = vmatpush1.bf16.msra.mxu0 0
        %975 = vmatprep.subr.bf16.mxu0 0
        %976 = vmatpush1.bf16.msra.mxu0 0
        %977 = vmatprep.mubr.bf16.mxu0 0
        %978 = vmatmul.mubr.bf16.gmra.mrb[0].mxu0 %v680
        %v979 = vpop.f32.mrb[0].mxu0
        %v980 = vadd.f32 %v820, %v979
        %v981 = vpop.f32.mrb[0].mxu0
        %v982 = vpop.f32.mrb[0].mxu0
        %v983 = vpop.f32.mrb[0].mxu0
        %984 = vdwg.mxu0
        %v989 = vunpack.c.l.b16 %v797
        %v990 = vunpack.c.l.b16 %v798
        %v991 = vunpack.c.l.b16 %v799
        %v992 = vunpack.c.l.b16 %v800
        %v993 = vpack.c.b16 %v990, %v989
        %v994 = vpack.c.b16 %v992, %v991
        %997 = vmatprep.subr.bf16.mxu0 0
        %998 = vmatpush1.bf16.msra.mxu0 %v993
        %999 = vmatprep.subr.bf16.mxu0 0
        %1000 = vmatpush1.bf16.msra.mxu0 %v994
        %1001 = vmatprep.subr.bf16.mxu0 0
        %1002 = vmatpush1.bf16.msra.mxu0 0
        %1003 = vmatprep.subr.bf16.mxu0 0
        %1004 = vmatpush1.bf16.msra.mxu0 0
        %1005 = vmatprep.subr.bf16.mxu0 0
        %1006 = vmatpush1.bf16.msra.mxu0 0
        %1007 = vmatprep.subr.bf16.mxu0 0
        %1008 = vmatpush1.bf16.msra.mxu0 0
        %1009 = vmatprep.subr.bf16.mxu0 0
        %1010 = vmatpush1.bf16.msra.mxu0 0
        %1011 = vmatprep.subr.bf16.mxu0 0
        %1012 = vmatpush1.bf16.msra.mxu0 0
        %1013 = vmatprep.subr.bf16.mxu0 0
        %1014 = vmatpush1.bf16.msra.mxu0 0
        %1015 = vmatprep.subr.bf16.mxu0 0
        %1016 = vmatpush1.bf16.msra.mxu0 0
        %1017 = vmatprep.subr.bf16.mxu0 0
        %1018 = vmatpush1.bf16.msra.mxu0 0
        %1019 = vmatprep.subr.bf16.mxu0 0
        %1020 = vmatpush1.bf16.msra.mxu0 0
        %1021 = vmatprep.subr.bf16.mxu0 0
        %1022 = vmatpush1.bf16.msra.mxu0 0
        %1023 = vmatprep.subr.bf16.mxu0 0
        %1024 = vmatpush1.bf16.msra.mxu0 0
        %1025 = vmatprep.subr.bf16.mxu0 0
        %1026 = vmatpush1.bf16.msra.mxu0 0
        %1027 = vmatprep.subr.bf16.mxu0 0
        %1028 = vmatpush1.bf16.msra.mxu0 0
        %1029 = vmatprep.mubr.bf16.mxu0 0
        %1030 = vmatmul.mubr.bf16.gmra.mrb[0].mxu0 %v680
        %v1031 = vpop.f32.mrb[0].mxu0
        %v1032 = vadd.f32 %v824, %v1031
        %v1033 = vpop.f32.mrb[0].mxu0
        %v1034 = vpop.f32.mrb[0].mxu0
        %v1035 = vpop.f32.mrb[0].mxu0
        %1036 = vdwg.mxu0
        %v1037 = vpack.c.bf16 %v717, %v717
        %v1040 = vunpack.c.l.s4 1983009808
        %v1041 = vunpack.c.0.s8 %v1040
        %v1042 = vlaneseq
        %v1043 = vshrl.u32 %v1042, 7
        %v1044 = vsub.s32 %v1041, %v1043
        %v1045 = vrot.slane %v1037, %v1044
        %v1046 = vcombine.high %v1045, %v1045
        %v1047 = vpack.c.bf16 %v780, %v780
        %v1050 = vunpack.c.l.s4 1983009808
        %v1051 = vunpack.c.0.s8 %v1050
        %v1052 = vlaneseq
        %v1053 = vshrl.u32 %v1052, 7
        %v1054 = vsub.s32 %v1051, %v1053
        %v1055 = vrot.slane %v1047, %v1054
        %v1056 = vcombine.high %v1055, %v1055
        %v1057 = vld [vmem:[%s7] sm:$0xf]
        %v1058 = vld [vmem:[%s7 + $0x4] sm:$0xf]
        %v1059 = vld [vmem:[%s7 + $0x8] sm:$0xf]
        %v1060 = vld [vmem:[%s7 + $0xc] sm:$0xf]
        %v1061 = vld [vmem:[%s7 + $0x10] sm:$0xf]
        %v1062 = vld [vmem:[%s7 + $0x14] sm:$0xf]
        %v1063 = vld [vmem:[%s7 + $0x18] sm:$0xf]
        %v1064 = vld [vmem:[%s7 + $0x1c] sm:$0xf]
        %v1065 = vld [vmem:[%s7 + $0x20] sm:$0xf]
        %v1066 = vld [vmem:[%s7 + $0x24] sm:$0xf]
        %v1067 = vld [vmem:[%s7 + $0x28] sm:$0xf]
        %v1068 = vld [vmem:[%s7 + $0x2c] sm:$0xf]
        %v1069 = vld [vmem:[%s7 + $0x30] sm:$0xf]
        %v1070 = vld [vmem:[%s7 + $0x34] sm:$0xf]
        %v1071 = vld [vmem:[%s7 + $0x38] sm:$0xf]
        %v1072 = vld [vmem:[%s7 + $0x3c] sm:$0xf]
        %v1073 = vld [vmem:[%s9] sm:$0xf]
        %v1074 = vld [vmem:[%s9 + $0x4] sm:$0xf]
        %v1075 = vld [vmem:[%s9 + $0x8] sm:$0xf]
        %v1076 = vld [vmem:[%s9 + $0xc] sm:$0xf]
        %v1077 = vld [vmem:[%s9 + $0x10] sm:$0xf]
        %v1078 = vld [vmem:[%s9 + $0x14] sm:$0xf]
        %v1079 = vld [vmem:[%s9 + $0x18] sm:$0xf]
        %v1080 = vld [vmem:[%s9 + $0x1c] sm:$0xf]
        %v1081 = vld [vmem:[%s9 + $0x20] sm:$0xf]
        %v1082 = vld [vmem:[%s9 + $0x24] sm:$0xf]
        %v1083 = vld [vmem:[%s9 + $0x28] sm:$0xf]
        %v1084 = vld [vmem:[%s9 + $0x2c] sm:$0xf]
        %v1085 = vld [vmem:[%s9 + $0x30] sm:$0xf]
        %v1086 = vld [vmem:[%s9 + $0x34] sm:$0xf]
        %v1087 = vld [vmem:[%s9 + $0x38] sm:$0xf]
        %v1088 = vld [vmem:[%s9 + $0x3c] sm:$0xf]
        %s1089 = scalar_lea.vmem %s7, 64
        %v1090 = vld [vmem:[%s1089] sm:$0xf]
        %v1091 = vld [vmem:[%s1089 + $0x4] sm:$0xf]
        %v1092 = vld [vmem:[%s1089 + $0x8] sm:$0xf]
        %v1093 = vld [vmem:[%s1089 + $0xc] sm:$0xf]
        %v1094 = vld [vmem:[%s1089 + $0x10] sm:$0xf]
        %v1095 = vld [vmem:[%s1089 + $0x14] sm:$0xf]
        %v1096 = vld [vmem:[%s1089 + $0x18] sm:$0xf]
        %v1097 = vld [vmem:[%s1089 + $0x1c] sm:$0xf]
        %v1098 = vld [vmem:[%s1089 + $0x20] sm:$0xf]
        %v1099 = vld [vmem:[%s1089 + $0x24] sm:$0xf]
        %v1100 = vld [vmem:[%s1089 + $0x28] sm:$0xf]
        %v1101 = vld [vmem:[%s1089 + $0x2c] sm:$0xf]
        %v1102 = vld [vmem:[%s1089 + $0x30] sm:$0xf]
        %v1103 = vld [vmem:[%s1089 + $0x34] sm:$0xf]
        %v1104 = vld [vmem:[%s1089 + $0x38] sm:$0xf]
        %v1105 = vld [vmem:[%s1089 + $0x3c] sm:$0xf]
        %v1107 = vunpack.c.l.s4 1983009808
        %v1108 = vunpack.c.0.s8 %v1107
        %v1109 = vlaneseq
        %v1110 = vshrl.u32 %v1109, 7
        %v1111 = vsub.s32 %v1108, %v1110
        %v1112 = vrot.slane %v1045, %v1111
        %v1114 = vunpack.c.l.s4 1983009808
        %v1115 = vunpack.c.0.s8 %v1114
        %v1116 = vlaneseq
        %v1117 = vshrl.u32 %v1116, 7
        %v1118 = vsub.s32 %v1115, %v1117
        %v1119 = vrot.slane %v1046, %v1118
        %v1120 = vunpack.c.l.b16 %v1112
        %v1121 = vunpack.c.l.b16 %v1119
        %v1122 = vrot.slane %v1120, 1
        %vm1123 = vcmask 1041409
        %v1124 = vsel %vm1123, %v1121, %v1122
        %v1125 = vpack.c.b16 %v1124, %v1124
        %v1130 = vunpack.c.l.b16 %v1090
        %v1131 = vunpack.c.l.b16 %v1091
        %v1132 = vunpack.c.l.b16 %v1092
        %v1133 = vunpack.c.l.b16 %v1093
        %v1134 = vpack.c.b16 %v1131, %v1130
        %v1135 = vpack.c.b16 %v1133, %v1132
        %v1139 = vsel %vm678, %v1125, 0
        %1141 = vmatprep.subr.bf16.mxu0 0
        %1142 = vmatpush1.bf16.msra.mxu0 %v1134
        %1143 = vmatprep.subr.bf16.mxu0 0
        %1144 = vmatpush1.bf16.msra.mxu0 %v1135
        %1145 = vmatprep.subr.bf16.mxu0 0
        %1146 = vmatpush1.bf16.msra.mxu0 0
        %1147 = vmatprep.subr.bf16.mxu0 0
        %1148 = vmatpush1.bf16.msra.mxu0 0
        %1149 = vmatprep.subr.bf16.mxu0 0
        %1150 = vmatpush1.bf16.msra.mxu0 0
        %1151 = vmatprep.subr.bf16.mxu0 0
        %1152 = vmatpush1.bf16.msra.mxu0 0
        %1153 = vmatprep.subr.bf16.mxu0 0
        %1154 = vmatpush1.bf16.msra.mxu0 0
        %1155 = vmatprep.subr.bf16.mxu0 0
        %1156 = vmatpush1.bf16.msra.mxu0 0
        %1157 = vmatprep.subr.bf16.mxu0 0
        %1158 = vmatpush1.bf16.msra.mxu0 0
        %1159 = vmatprep.subr.bf16.mxu0 0
        %1160 = vmatpush1.bf16.msra.mxu0 0
        %1161 = vmatprep.subr.bf16.mxu0 0
        %1162 = vmatpush1.bf16.msra.mxu0 0
        %1163 = vmatprep.subr.bf16.mxu0 0
        %1164 = vmatpush1.bf16.msra.mxu0 0
        %1165 = vmatprep.subr.bf16.mxu0 0
        %1166 = vmatpush1.bf16.msra.mxu0 0
        %1167 = vmatprep.subr.bf16.mxu0 0
        %1168 = vmatpush1.bf16.msra.mxu0 0
        %1169 = vmatprep.subr.bf16.mxu0 0
        %1170 = vmatpush1.bf16.msra.mxu0 0
        %1171 = vmatprep.subr.bf16.mxu0 0
        %1172 = vmatpush1.bf16.msra.mxu0 0
        %1173 = vmatprep.mubr.bf16.mxu0 0
        %1174 = vmatmul.mubr.bf16.gmra.mrb[0].mxu0 %v1139
        %v1175 = vpop.f32.mrb[0].mxu0
        %v1176 = vadd.f32 0.0, %v1175
        %v1177 = vpop.f32.mrb[0].mxu0
        %v1178 = vpop.f32.mrb[0].mxu0
        %v1179 = vpop.f32.mrb[0].mxu0
        %1180 = vdwg.mxu0
        %v1185 = vunpack.c.l.b16 %v1094
        %v1186 = vunpack.c.l.b16 %v1095
        %v1187 = vunpack.c.l.b16 %v1096
        %v1188 = vunpack.c.l.b16 %v1097
        %v1189 = vpack.c.b16 %v1186, %v1185
        %v1190 = vpack.c.b16 %v1188, %v1187
        %1193 = vmatprep.subr.bf16.mxu0 0
        %1194 = vmatpush1.bf16.msra.mxu0 %v1189
        %1195 = vmatprep.subr.bf16.mxu0 0
        %1196 = vmatpush1.bf16.msra.mxu0 %v1190
        %1197 = vmatprep.subr.bf16.mxu0 0
        %1198 = vmatpush1.bf16.msra.mxu0 0
        %1199 = vmatprep.subr.bf16.mxu0 0
        %1200 = vmatpush1.bf16.msra.mxu0 0
        %1201 = vmatprep.subr.bf16.mxu0 0
        %1202 = vmatpush1.bf16.msra.mxu0 0
        %1203 = vmatprep.subr.bf16.mxu0 0
        %1204 = vmatpush1.bf16.msra.mxu0 0
        %1205 = vmatprep.subr.bf16.mxu0 0
        %1206 = vmatpush1.bf16.msra.mxu0 0
        %1207 = vmatprep.subr.bf16.mxu0 0
        %1208 = vmatpush1.bf16.msra.mxu0 0
        %1209 = vmatprep.subr.bf16.mxu0 0
        %1210 = vmatpush1.bf16.msra.mxu0 0
        %1211 = vmatprep.subr.bf16.mxu0 0
        %1212 = vmatpush1.bf16.msra.mxu0 0
        %1213 = vmatprep.subr.bf16.mxu0 0
        %1214 = vmatpush1.bf16.msra.mxu0 0
        %1215 = vmatprep.subr.bf16.mxu0 0
        %1216 = vmatpush1.bf16.msra.mxu0 0
        %1217 = vmatprep.subr.bf16.mxu0 0
        %1218 = vmatpush1.bf16.msra.mxu0 0
        %1219 = vmatprep.subr.bf16.mxu0 0
        %1220 = vmatpush1.bf16.msra.mxu0 0
        %1221 = vmatprep.subr.bf16.mxu0 0
        %1222 = vmatpush1.bf16.msra.mxu0 0
        %1223 = vmatprep.subr.bf16.mxu0 0
        %1224 = vmatpush1.bf16.msra.mxu0 0
        %1225 = vmatprep.mubr.bf16.mxu0 0
        %1226 = vmatmul.mubr.bf16.gmra.mrb[0].mxu0 %v1139
        %v1227 = vpop.f32.mrb[0].mxu0
        %v1228 = vadd.f32 0.0, %v1227
        %v1229 = vpop.f32.mrb[0].mxu0
        %v1230 = vpop.f32.mrb[0].mxu0
        %v1231 = vpop.f32.mrb[0].mxu0
        %1232 = vdwg.mxu0
        %v1237 = vunpack.c.l.b16 %v1098
        %v1238 = vunpack.c.l.b16 %v1099
        %v1239 = vunpack.c.l.b16 %v1100
        %v1240 = vunpack.c.l.b16 %v1101
        %v1241 = vpack.c.b16 %v1238, %v1237
        %v1242 = vpack.c.b16 %v1240, %v1239
        %1245 = vmatprep.subr.bf16.mxu0 0
        %1246 = vmatpush1.bf16.msra.mxu0 %v1241
        %1247 = vmatprep.subr.bf16.mxu0 0
        %1248 = vmatpush1.bf16.msra.mxu0 %v1242
        %1249 = vmatprep.subr.bf16.mxu0 0
        %1250 = vmatpush1.bf16.msra.mxu0 0
        %1251 = vmatprep.subr.bf16.mxu0 0
        %1252 = vmatpush1.bf16.msra.mxu0 0
        %1253 = vmatprep.subr.bf16.mxu0 0
        %1254 = vmatpush1.bf16.msra.mxu0 0
        %1255 = vmatprep.subr.bf16.mxu0 0
        %1256 = vmatpush1.bf16.msra.mxu0 0
        %1257 = vmatprep.subr.bf16.mxu0 0
        %1258 = vmatpush1.bf16.msra.mxu0 0
        %1259 = vmatprep.subr.bf16.mxu0 0
        %1260 = vmatpush1.bf16.msra.mxu0 0
        %1261 = vmatprep.subr.bf16.mxu0 0
        %1262 = vmatpush1.bf16.msra.mxu0 0
        %1263 = vmatprep.subr.bf16.mxu0 0
        %1264 = vmatpush1.bf16.msra.mxu0 0
        %1265 = vmatprep.subr.bf16.mxu0 0
        %1266 = vmatpush1.bf16.msra.mxu0 0
        %1267 = vmatprep.subr.bf16.mxu0 0
        %1268 = vmatpush1.bf16.msra.mxu0 0
        %1269 = vmatprep.subr.bf16.mxu0 0
        %1270 = vmatpush1.bf16.msra.mxu0 0
        %1271 = vmatprep.subr.bf16.mxu0 0
        %1272 = vmatpush1.bf16.msra.mxu0 0
        %1273 = vmatprep.subr.bf16.mxu0 0
        %1274 = vmatpush1.bf16.msra.mxu0 0
        %1275 = vmatprep.subr.bf16.mxu0 0
        %1276 = vmatpush1.bf16.msra.mxu0 0
        %1277 = vmatprep.mubr.bf16.mxu0 0
        %1278 = vmatmul.mubr.bf16.gmra.mrb[0].mxu0 %v1139
        %v1279 = vpop.f32.mrb[0].mxu0
        %v1280 = vadd.f32 0.0, %v1279
        %v1281 = vpop.f32.mrb[0].mxu0
        %v1282 = vpop.f32.mrb[0].mxu0
        %v1283 = vpop.f32.mrb[0].mxu0
        %1284 = vdwg.mxu0
        %v1289 = vunpack.c.l.b16 %v1102
        %v1290 = vunpack.c.l.b16 %v1103
        %v1291 = vunpack.c.l.b16 %v1104
        %v1292 = vunpack.c.l.b16 %v1105
        %v1293 = vpack.c.b16 %v1290, %v1289
        %v1294 = vpack.c.b16 %v1292, %v1291
        %1297 = vmatprep.subr.bf16.mxu0 0
        %1298 = vmatpush1.bf16.msra.mxu0 %v1293
        %1299 = vmatprep.subr.bf16.mxu0 0
        %1300 = vmatpush1.bf16.msra.mxu0 %v1294
        %1301 = vmatprep.subr.bf16.mxu0 0
        %1302 = vmatpush1.bf16.msra.mxu0 0
        %1303 = vmatprep.subr.bf16.mxu0 0
        %1304 = vmatpush1.bf16.msra.mxu0 0
        %1305 = vmatprep.subr.bf16.mxu0 0
        %1306 = vmatpush1.bf16.msra.mxu0 0
        %1307 = vmatprep.subr.bf16.mxu0 0
        %1308 = vmatpush1.bf16.msra.mxu0 0
        %1309 = vmatprep.subr.bf16.mxu0 0
        %1310 = vmatpush1.bf16.msra.mxu0 0
        %1311 = vmatprep.subr.bf16.mxu0 0
        %1312 = vmatpush1.bf16.msra.mxu0 0
        %1313 = vmatprep.subr.bf16.mxu0 0
        %1314 = vmatpush1.bf16.msra.mxu0 0
        %1315 = vmatprep.subr.bf16.mxu0 0
        %1316 = vmatpush1.bf16.msra.mxu0 0
        %1317 = vmatprep.subr.bf16.mxu0 0
        %1318 = vmatpush1.bf16.msra.mxu0 0
        %1319 = vmatprep.subr.bf16.mxu0 0
        %1320 = vmatpush1.bf16.msra.mxu0 0
        %1321 = vmatprep.subr.bf16.mxu0 0
        %1322 = vmatpush1.bf16.msra.mxu0 0
        %1323 = vmatprep.subr.bf16.mxu0 0
        %1324 = vmatpush1.bf16.msra.mxu0 0
        %1325 = vmatprep.subr.bf16.mxu0 0
        %1326 = vmatpush1.bf16.msra.mxu0 0
        %1327 = vmatprep.subr.bf16.mxu0 0
        %1328 = vmatpush1.bf16.msra.mxu0 0
        %1329 = vmatprep.mubr.bf16.mxu0 0
        %1330 = vmatmul.mubr.bf16.gmra.mrb[0].mxu0 %v1139
        %v1331 = vpop.f32.mrb[0].mxu0
        %v1332 = vadd.f32 0.0, %v1331
        %v1333 = vpop.f32.mrb[0].mxu0
        %v1334 = vpop.f32.mrb[0].mxu0
        %v1335 = vpop.f32.mrb[0].mxu0
        %1336 = vdwg.mxu0
        %v1337 = vrot.slane %v1121, 7
        %v1338 = vsel %vm1123, %v1337, %v1120
        %v1339 = vpack.c.b16 %v1338, %v1338
        %v1344 = vunpack.c.l.b16 %v1057
        %v1345 = vunpack.c.l.b16 %v1058
        %v1346 = vunpack.c.l.b16 %v1059
        %v1347 = vunpack.c.l.b16 %v1060
        %v1348 = vpack.c.b16 %v1345, %v1344
        %v1349 = vpack.c.b16 %v1347, %v1346
        %v1353 = vsel %vm678, %v1339, 0
        %1355 = vmatprep.subr.bf16.mxu0 0
        %1356 = vmatpush1.bf16.msra.mxu0 %v1348
        %1357 = vmatprep.subr.bf16.mxu0 0
        %1358 = vmatpush1.bf16.msra.mxu0 %v1349
        %1359 = vmatprep.subr.bf16.mxu0 0
        %1360 = vmatpush1.bf16.msra.mxu0 0
        %1361 = vmatprep.subr.bf16.mxu0 0
        %1362 = vmatpush1.bf16.msra.mxu0 0
        %1363 = vmatprep.subr.bf16.mxu0 0
        %1364 = vmatpush1.bf16.msra.mxu0 0
        %1365 = vmatprep.subr.bf16.mxu0 0
        %1366 = vmatpush1.bf16.msra.mxu0 0
        %1367 = vmatprep.subr.bf16.mxu0 0
        %1368 = vmatpush1.bf16.msra.mxu0 0
        %1369 = vmatprep.subr.bf16.mxu0 0
        %1370 = vmatpush1.bf16.msra.mxu0 0
        %1371 = vmatprep.subr.bf16.mxu0 0
        %1372 = vmatpush1.bf16.msra.mxu0 0
        %1373 = vmatprep.subr.bf16.mxu0 0
        %1374 = vmatpush1.bf16.msra.mxu0 0
        %1375 = vmatprep.subr.bf16.mxu0 0
        %1376 = vmatpush1.bf16.msra.mxu0 0
        %1377 = vmatprep.subr.bf16.mxu0 0
        %1378 = vmatpush1.bf16.msra.mxu0 0
        %1379 = vmatprep.subr.bf16.mxu0 0
        %1380 = vmatpush1.bf16.msra.mxu0 0
        %1381 = vmatprep.subr.bf16.mxu0 0
        %1382 = vmatpush1.bf16.msra.mxu0 0
        %1383 = vmatprep.subr.bf16.mxu0 0
        %1384 = vmatpush1.bf16.msra.mxu0 0
        %1385 = vmatprep.subr.bf16.mxu0 0
        %1386 = vmatpush1.bf16.msra.mxu0 0
        %1387 = vmatprep.mubr.bf16.mxu0 0
        %1388 = vmatmul.mubr.bf16.gmra.mrb[0].mxu0 %v1353
        %v1389 = vpop.f32.mrb[0].mxu0
        %v1390 = vadd.f32 %v1176, %v1389
        %v1391 = vpop.f32.mrb[0].mxu0
        %v1392 = vpop.f32.mrb[0].mxu0
        %v1393 = vpop.f32.mrb[0].mxu0
        %1394 = vdwg.mxu0
        %v1399 = vunpack.c.l.b16 %v1061
        %v1400 = vunpack.c.l.b16 %v1062
        %v1401 = vunpack.c.l.b16 %v1063
        %v1402 = vunpack.c.l.b16 %v1064
        %v1403 = vpack.c.b16 %v1400, %v1399
        %v1404 = vpack.c.b16 %v1402, %v1401
        %1407 = vmatprep.subr.bf16.mxu0 0
        %1408 = vmatpush1.bf16.msra.mxu0 %v1403
        %1409 = vmatprep.subr.bf16.mxu0 0
        %1410 = vmatpush1.bf16.msra.mxu0 %v1404
        %1411 = vmatprep.subr.bf16.mxu0 0
        %1412 = vmatpush1.bf16.msra.mxu0 0
        %1413 = vmatprep.subr.bf16.mxu0 0
        %1414 = vmatpush1.bf16.msra.mxu0 0
        %1415 = vmatprep.subr.bf16.mxu0 0
        %1416 = vmatpush1.bf16.msra.mxu0 0
        %1417 = vmatprep.subr.bf16.mxu0 0
        %1418 = vmatpush1.bf16.msra.mxu0 0
        %1419 = vmatprep.subr.bf16.mxu0 0
        %1420 = vmatpush1.bf16.msra.mxu0 0
        %1421 = vmatprep.subr.bf16.mxu0 0
        %1422 = vmatpush1.bf16.msra.mxu0 0
        %1423 = vmatprep.subr.bf16.mxu0 0
        %1424 = vmatpush1.bf16.msra.mxu0 0
        %1425 = vmatprep.subr.bf16.mxu0 0
        %1426 = vmatpush1.bf16.msra.mxu0 0
        %1427 = vmatprep.subr.bf16.mxu0 0
        %1428 = vmatpush1.bf16.msra.mxu0 0
        %1429 = vmatprep.subr.bf16.mxu0 0
        %1430 = vmatpush1.bf16.msra.mxu0 0
        %1431 = vmatprep.subr.bf16.mxu0 0
        %1432 = vmatpush1.bf16.msra.mxu0 0
        %1433 = vmatprep.subr.bf16.mxu0 0
        %1434 = vmatpush1.bf16.msra.mxu0 0
        %1435 = vmatprep.subr.bf16.mxu0 0
        %1436 = vmatpush1.bf16.msra.mxu0 0
        %1437 = vmatprep.subr.bf16.mxu0 0
        %1438 = vmatpush1.bf16.msra.mxu0 0
        %1439 = vmatprep.mubr.bf16.mxu0 0
        %1440 = vmatmul.mubr.bf16.gmra.mrb[0].mxu0 %v1353
        %v1441 = vpop.f32.mrb[0].mxu0
        %v1442 = vadd.f32 %v1228, %v1441
        %v1443 = vpop.f32.mrb[0].mxu0
        %v1444 = vpop.f32.mrb[0].mxu0
        %v1445 = vpop.f32.mrb[0].mxu0
        %1446 = vdwg.mxu0
        %v1451 = vunpack.c.l.b16 %v1065
        %v1452 = vunpack.c.l.b16 %v1066
        %v1453 = vunpack.c.l.b16 %v1067
        %v1454 = vunpack.c.l.b16 %v1068
        %v1455 = vpack.c.b16 %v1452, %v1451
        %v1456 = vpack.c.b16 %v1454, %v1453
        %1459 = vmatprep.subr.bf16.mxu0 0
        %1460 = vmatpush1.bf16.msra.mxu0 %v1455
        %1461 = vmatprep.subr.bf16.mxu0 0
        %1462 = vmatpush1.bf16.msra.mxu0 %v1456
        %1463 = vmatprep.subr.bf16.mxu0 0
        %1464 = vmatpush1.bf16.msra.mxu0 0
        %1465 = vmatprep.subr.bf16.mxu0 0
        %1466 = vmatpush1.bf16.msra.mxu0 0
        %1467 = vmatprep.subr.bf16.mxu0 0
        %1468 = vmatpush1.bf16.msra.mxu0 0
        %1469 = vmatprep.subr.bf16.mxu0 0
        %1470 = vmatpush1.bf16.msra.mxu0 0
        %1471 = vmatprep.subr.bf16.mxu0 0
        %1472 = vmatpush1.bf16.msra.mxu0 0
        %1473 = vmatprep.subr.bf16.mxu0 0
        %1474 = vmatpush1.bf16.msra.mxu0 0
        %1475 = vmatprep.subr.bf16.mxu0 0
        %1476 = vmatpush1.bf16.msra.mxu0 0
        %1477 = vmatprep.subr.bf16.mxu0 0
        %1478 = vmatpush1.bf16.msra.mxu0 0
        %1479 = vmatprep.subr.bf16.mxu0 0
        %1480 = vmatpush1.bf16.msra.mxu0 0
        %1481 = vmatprep.subr.bf16.mxu0 0
        %1482 = vmatpush1.bf16.msra.mxu0 0
        %1483 = vmatprep.subr.bf16.mxu0 0
        %1484 = vmatpush1.bf16.msra.mxu0 0
        %1485 = vmatprep.subr.bf16.mxu0 0
        %1486 = vmatpush1.bf16.msra.mxu0 0
        %1487 = vmatprep.subr.bf16.mxu0 0
        %1488 = vmatpush1.bf16.msra.mxu0 0
        %1489 = vmatprep.subr.bf16.mxu0 0
        %1490 = vmatpush1.bf16.msra.mxu0 0
        %1491 = vmatprep.mubr.bf16.mxu0 0
        %1492 = vmatmul.mubr.bf16.gmra.mrb[0].mxu0 %v1353
        %v1493 = vpop.f32.mrb[0].mxu0
        %v1494 = vadd.f32 %v1280, %v1493
        %v1495 = vpop.f32.mrb[0].mxu0
        %v1496 = vpop.f32.mrb[0].mxu0
        %v1497 = vpop.f32.mrb[0].mxu0
        %1498 = vdwg.mxu0
        %v1503 = vunpack.c.l.b16 %v1069
        %v1504 = vunpack.c.l.b16 %v1070
        %v1505 = vunpack.c.l.b16 %v1071
        %v1506 = vunpack.c.l.b16 %v1072
        %v1507 = vpack.c.b16 %v1504, %v1503
        %v1508 = vpack.c.b16 %v1506, %v1505
        %1511 = vmatprep.subr.bf16.mxu0 0
        %1512 = vmatpush1.bf16.msra.mxu0 %v1507
        %1513 = vmatprep.subr.bf16.mxu0 0
        %1514 = vmatpush1.bf16.msra.mxu0 %v1508
        %1515 = vmatprep.subr.bf16.mxu0 0
        %1516 = vmatpush1.bf16.msra.mxu0 0
        %1517 = vmatprep.subr.bf16.mxu0 0
        %1518 = vmatpush1.bf16.msra.mxu0 0
        %1519 = vmatprep.subr.bf16.mxu0 0
        %1520 = vmatpush1.bf16.msra.mxu0 0
        %1521 = vmatprep.subr.bf16.mxu0 0
        %1522 = vmatpush1.bf16.msra.mxu0 0
        %1523 = vmatprep.subr.bf16.mxu0 0
        %1524 = vmatpush1.bf16.msra.mxu0 0
        %1525 = vmatprep.subr.bf16.mxu0 0
        %1526 = vmatpush1.bf16.msra.mxu0 0
        %1527 = vmatprep.subr.bf16.mxu0 0
        %1528 = vmatpush1.bf16.msra.mxu0 0
        %1529 = vmatprep.subr.bf16.mxu0 0
        %1530 = vmatpush1.bf16.msra.mxu0 0
        %1531 = vmatprep.subr.bf16.mxu0 0
        %1532 = vmatpush1.bf16.msra.mxu0 0
        %1533 = vmatprep.subr.bf16.mxu0 0
        %1534 = vmatpush1.bf16.msra.mxu0 0
        %1535 = vmatprep.subr.bf16.mxu0 0
        %1536 = vmatpush1.bf16.msra.mxu0 0
        %1537 = vmatprep.subr.bf16.mxu0 0
        %1538 = vmatpush1.bf16.msra.mxu0 0
        %1539 = vmatprep.subr.bf16.mxu0 0
        %1540 = vmatpush1.bf16.msra.mxu0 0
        %1541 = vmatprep.subr.bf16.mxu0 0
        %1542 = vmatpush1.bf16.msra.mxu0 0
        %1543 = vmatprep.mubr.bf16.mxu0 0
        %1544 = vmatmul.mubr.bf16.gmra.mrb[0].mxu0 %v1353
        %v1545 = vpop.f32.mrb[0].mxu0
        %v1546 = vadd.f32 %v1332, %v1545
        %v1547 = vpop.f32.mrb[0].mxu0
        %v1548 = vpop.f32.mrb[0].mxu0
        %v1549 = vpop.f32.mrb[0].mxu0
        %1550 = vdwg.mxu0
        %s1551 = scalar_lea.vmem %s9, 64
        %v1552 = vld [vmem:[%s1551] sm:$0xf]
        %v1553 = vld [vmem:[%s1551 + $0x4] sm:$0xf]
        %v1554 = vld [vmem:[%s1551 + $0x8] sm:$0xf]
        %v1555 = vld [vmem:[%s1551 + $0xc] sm:$0xf]
        %v1556 = vld [vmem:[%s1551 + $0x10] sm:$0xf]
        %v1557 = vld [vmem:[%s1551 + $0x14] sm:$0xf]
        %v1558 = vld [vmem:[%s1551 + $0x18] sm:$0xf]
        %v1559 = vld [vmem:[%s1551 + $0x1c] sm:$0xf]
        %v1560 = vld [vmem:[%s1551 + $0x20] sm:$0xf]
        %v1561 = vld [vmem:[%s1551 + $0x24] sm:$0xf]
        %v1562 = vld [vmem:[%s1551 + $0x28] sm:$0xf]
        %v1563 = vld [vmem:[%s1551 + $0x2c] sm:$0xf]
        %v1564 = vld [vmem:[%s1551 + $0x30] sm:$0xf]
        %v1565 = vld [vmem:[%s1551 + $0x34] sm:$0xf]
        %v1566 = vld [vmem:[%s1551 + $0x38] sm:$0xf]
        %v1567 = vld [vmem:[%s1551 + $0x3c] sm:$0xf]
        %v1569 = vunpack.c.l.s4 1983009808
        %v1570 = vunpack.c.0.s8 %v1569
        %v1571 = vlaneseq
        %v1572 = vshrl.u32 %v1571, 7
        %v1573 = vsub.s32 %v1570, %v1572
        %v1574 = vrot.slane %v1055, %v1573
        %v1576 = vunpack.c.l.s4 1983009808
        %v1577 = vunpack.c.0.s8 %v1576
        %v1578 = vlaneseq
        %v1579 = vshrl.u32 %v1578, 7
        %v1580 = vsub.s32 %v1577, %v1579
        %v1581 = vrot.slane %v1056, %v1580
        %v1582 = vunpack.c.l.b16 %v1574
        %v1583 = vunpack.c.l.b16 %v1581
        %v1584 = vrot.slane %v1582, 1
        %v1585 = vsel %vm1123, %v1583, %v1584
        %v1586 = vpack.c.b16 %v1585, %v1585
        %v1591 = vunpack.c.l.b16 %v1552
        %v1592 = vunpack.c.l.b16 %v1553
        %v1593 = vunpack.c.l.b16 %v1554
        %v1594 = vunpack.c.l.b16 %v1555
        %v1595 = vpack.c.b16 %v1592, %v1591
        %v1596 = vpack.c.b16 %v1594, %v1593
        %v1600 = vsel %vm678, %v1586, 0
        %1602 = vmatprep.subr.bf16.mxu0 0
        %1603 = vmatpush1.bf16.msra.mxu0 %v1595
        %1604 = vmatprep.subr.bf16.mxu0 0
        %1605 = vmatpush1.bf16.msra.mxu0 %v1596
        %1606 = vmatprep.subr.bf16.mxu0 0
        %1607 = vmatpush1.bf16.msra.mxu0 0
        %1608 = vmatprep.subr.bf16.mxu0 0
        %1609 = vmatpush1.bf16.msra.mxu0 0
        %1610 = vmatprep.subr.bf16.mxu0 0
        %1611 = vmatpush1.bf16.msra.mxu0 0
        %1612 = vmatprep.subr.bf16.mxu0 0
        %1613 = vmatpush1.bf16.msra.mxu0 0
        %1614 = vmatprep.subr.bf16.mxu0 0
        %1615 = vmatpush1.bf16.msra.mxu0 0
        %1616 = vmatprep.subr.bf16.mxu0 0
        %1617 = vmatpush1.bf16.msra.mxu0 0
        %1618 = vmatprep.subr.bf16.mxu0 0
        %1619 = vmatpush1.bf16.msra.mxu0 0
        %1620 = vmatprep.subr.bf16.mxu0 0
        %1621 = vmatpush1.bf16.msra.mxu0 0
        %1622 = vmatprep.subr.bf16.mxu0 0
        %1623 = vmatpush1.bf16.msra.mxu0 0
        %1624 = vmatprep.subr.bf16.mxu0 0
        %1625 = vmatpush1.bf16.msra.mxu0 0
        %1626 = vmatprep.subr.bf16.mxu0 0
        %1627 = vmatpush1.bf16.msra.mxu0 0
        %1628 = vmatprep.subr.bf16.mxu0 0
        %1629 = vmatpush1.bf16.msra.mxu0 0
        %1630 = vmatprep.subr.bf16.mxu0 0
        %1631 = vmatpush1.bf16.msra.mxu0 0
        %1632 = vmatprep.subr.bf16.mxu0 0
        %1633 = vmatpush1.bf16.msra.mxu0 0
        %1634 = vmatprep.mubr.bf16.mxu0 0
        %1635 = vmatmul.mubr.bf16.gmra.mrb[0].mxu0 %v1600
        %v1636 = vpop.f32.mrb[0].mxu0
        %v1637 = vadd.f32 0.0, %v1636
        %v1638 = vpop.f32.mrb[0].mxu0
        %v1639 = vpop.f32.mrb[0].mxu0
        %v1640 = vpop.f32.mrb[0].mxu0
        %1641 = vdwg.mxu0
        %v1646 = vunpack.c.l.b16 %v1556
        %v1647 = vunpack.c.l.b16 %v1557
        %v1648 = vunpack.c.l.b16 %v1558
        %v1649 = vunpack.c.l.b16 %v1559
        %v1650 = vpack.c.b16 %v1647, %v1646
        %v1651 = vpack.c.b16 %v1649, %v1648
        %1654 = vmatprep.subr.bf16.mxu0 0
        %1655 = vmatpush1.bf16.msra.mxu0 %v1650
        %1656 = vmatprep.subr.bf16.mxu0 0
        %1657 = vmatpush1.bf16.msra.mxu0 %v1651
        %1658 = vmatprep.subr.bf16.mxu0 0
        %1659 = vmatpush1.bf16.msra.mxu0 0
        %1660 = vmatprep.subr.bf16.mxu0 0
        %1661 = vmatpush1.bf16.msra.mxu0 0
        %1662 = vmatprep.subr.bf16.mxu0 0
        %1663 = vmatpush1.bf16.msra.mxu0 0
        %1664 = vmatprep.subr.bf16.mxu0 0
        %1665 = vmatpush1.bf16.msra.mxu0 0
        %1666 = vmatprep.subr.bf16.mxu0 0
        %1667 = vmatpush1.bf16.msra.mxu0 0
        %1668 = vmatprep.subr.bf16.mxu0 0
        %1669 = vmatpush1.bf16.msra.mxu0 0
        %1670 = vmatprep.subr.bf16.mxu0 0
        %1671 = vmatpush1.bf16.msra.mxu0 0
        %1672 = vmatprep.subr.bf16.mxu0 0
        %1673 = vmatpush1.bf16.msra.mxu0 0
        %1674 = vmatprep.subr.bf16.mxu0 0
        %1675 = vmatpush1.bf16.msra.mxu0 0
        %1676 = vmatprep.subr.bf16.mxu0 0
        %1677 = vmatpush1.bf16.msra.mxu0 0
        %1678 = vmatprep.subr.bf16.mxu0 0
        %1679 = vmatpush1.bf16.msra.mxu0 0
        %1680 = vmatprep.subr.bf16.mxu0 0
        %1681 = vmatpush1.bf16.msra.mxu0 0
        %1682 = vmatprep.subr.bf16.mxu0 0
        %1683 = vmatpush1.bf16.msra.mxu0 0
        %1684 = vmatprep.subr.bf16.mxu0 0
        %1685 = vmatpush1.bf16.msra.mxu0 0
        %1686 = vmatprep.mubr.bf16.mxu0 0
        %1687 = vmatmul.mubr.bf16.gmra.mrb[0].mxu0 %v1600
        %v1688 = vpop.f32.mrb[0].mxu0
        %v1689 = vadd.f32 0.0, %v1688
        %v1690 = vpop.f32.mrb[0].mxu0
        %v1691 = vpop.f32.mrb[0].mxu0
        %v1692 = vpop.f32.mrb[0].mxu0
        %1693 = vdwg.mxu0
        %v1698 = vunpack.c.l.b16 %v1560
        %v1699 = vunpack.c.l.b16 %v1561
        %v1700 = vunpack.c.l.b16 %v1562
        %v1701 = vunpack.c.l.b16 %v1563
        %v1702 = vpack.c.b16 %v1699, %v1698
        %v1703 = vpack.c.b16 %v1701, %v1700
        %1706 = vmatprep.subr.bf16.mxu0 0
        %1707 = vmatpush1.bf16.msra.mxu0 %v1702
        %1708 = vmatprep.subr.bf16.mxu0 0
        %1709 = vmatpush1.bf16.msra.mxu0 %v1703
        %1710 = vmatprep.subr.bf16.mxu0 0
        %1711 = vmatpush1.bf16.msra.mxu0 0
        %1712 = vmatprep.subr.bf16.mxu0 0
        %1713 = vmatpush1.bf16.msra.mxu0 0
        %1714 = vmatprep.subr.bf16.mxu0 0
        %1715 = vmatpush1.bf16.msra.mxu0 0
        %1716 = vmatprep.subr.bf16.mxu0 0
        %1717 = vmatpush1.bf16.msra.mxu0 0
        %1718 = vmatprep.subr.bf16.mxu0 0
        %1719 = vmatpush1.bf16.msra.mxu0 0
        %1720 = vmatprep.subr.bf16.mxu0 0
        %1721 = vmatpush1.bf16.msra.mxu0 0
        %1722 = vmatprep.subr.bf16.mxu0 0
        %1723 = vmatpush1.bf16.msra.mxu0 0
        %1724 = vmatprep.subr.bf16.mxu0 0
        %1725 = vmatpush1.bf16.msra.mxu0 0
        %1726 = vmatprep.subr.bf16.mxu0 0
        %1727 = vmatpush1.bf16.msra.mxu0 0
        %1728 = vmatprep.subr.bf16.mxu0 0
        %1729 = vmatpush1.bf16.msra.mxu0 0
        %1730 = vmatprep.subr.bf16.mxu0 0
        %1731 = vmatpush1.bf16.msra.mxu0 0
        %1732 = vmatprep.subr.bf16.mxu0 0
        %1733 = vmatpush1.bf16.msra.mxu0 0
        %1734 = vmatprep.subr.bf16.mxu0 0
        %1735 = vmatpush1.bf16.msra.mxu0 0
        %1736 = vmatprep.subr.bf16.mxu0 0
        %1737 = vmatpush1.bf16.msra.mxu0 0
        %1738 = vmatprep.mubr.bf16.mxu0 0
        %1739 = vmatmul.mubr.bf16.gmra.mrb[0].mxu0 %v1600
        %v1740 = vpop.f32.mrb[0].mxu0
        %v1741 = vadd.f32 0.0, %v1740
        %v1742 = vpop.f32.mrb[0].mxu0
        %v1743 = vpop.f32.mrb[0].mxu0
        %v1744 = vpop.f32.mrb[0].mxu0
        %1745 = vdwg.mxu0
        %v1750 = vunpack.c.l.b16 %v1564
        %v1751 = vunpack.c.l.b16 %v1565
        %v1752 = vunpack.c.l.b16 %v1566
        %v1753 = vunpack.c.l.b16 %v1567
        %v1754 = vpack.c.b16 %v1751, %v1750
        %v1755 = vpack.c.b16 %v1753, %v1752
        %1758 = vmatprep.subr.bf16.mxu0 0
        %1759 = vmatpush1.bf16.msra.mxu0 %v1754
        %1760 = vmatprep.subr.bf16.mxu0 0
        %1761 = vmatpush1.bf16.msra.mxu0 %v1755
        %1762 = vmatprep.subr.bf16.mxu0 0
        %1763 = vmatpush1.bf16.msra.mxu0 0
        %1764 = vmatprep.subr.bf16.mxu0 0
        %1765 = vmatpush1.bf16.msra.mxu0 0
        %1766 = vmatprep.subr.bf16.mxu0 0
        %1767 = vmatpush1.bf16.msra.mxu0 0
        %1768 = vmatprep.subr.bf16.mxu0 0
        %1769 = vmatpush1.bf16.msra.mxu0 0
        %1770 = vmatprep.subr.bf16.mxu0 0
        %1771 = vmatpush1.bf16.msra.mxu0 0
        %1772 = vmatprep.subr.bf16.mxu0 0
        %1773 = vmatpush1.bf16.msra.mxu0 0
        %1774 = vmatprep.subr.bf16.mxu0 0
        %1775 = vmatpush1.bf16.msra.mxu0 0
        %1776 = vmatprep.subr.bf16.mxu0 0
        %1777 = vmatpush1.bf16.msra.mxu0 0
        %1778 = vmatprep.subr.bf16.mxu0 0
        %1779 = vmatpush1.bf16.msra.mxu0 0
        %1780 = vmatprep.subr.bf16.mxu0 0
        %1781 = vmatpush1.bf16.msra.mxu0 0
        %1782 = vmatprep.subr.bf16.mxu0 0
        %1783 = vmatpush1.bf16.msra.mxu0 0
        %1784 = vmatprep.subr.bf16.mxu0 0
        %1785 = vmatpush1.bf16.msra.mxu0 0
        %1786 = vmatprep.subr.bf16.mxu0 0
        %1787 = vmatpush1.bf16.msra.mxu0 0
        %1788 = vmatprep.subr.bf16.mxu0 0
        %1789 = vmatpush1.bf16.msra.mxu0 0
        %1790 = vmatprep.mubr.bf16.mxu0 0
        %1791 = vmatmul.mubr.bf16.gmra.mrb[0].mxu0 %v1600
        %v1792 = vpop.f32.mrb[0].mxu0
        %v1793 = vadd.f32 0.0, %v1792
        %v1794 = vpop.f32.mrb[0].mxu0
        %v1795 = vpop.f32.mrb[0].mxu0
        %v1796 = vpop.f32.mrb[0].mxu0
        %1797 = vdwg.mxu0
        %v1798 = vrot.slane %v1583, 7
        %v1799 = vsel %vm1123, %v1798, %v1582
        %v1800 = vpack.c.b16 %v1799, %v1799
        %v1805 = vunpack.c.l.b16 %v1073
        %v1806 = vunpack.c.l.b16 %v1074
        %v1807 = vunpack.c.l.b16 %v1075
        %v1808 = vunpack.c.l.b16 %v1076
        %v1809 = vpack.c.b16 %v1806, %v1805
        %v1810 = vpack.c.b16 %v1808, %v1807
        %v1814 = vsel %vm678, %v1800, 0
        %1816 = vmatprep.subr.bf16.mxu0 0
        %1817 = vmatpush1.bf16.msra.mxu0 %v1809
        %1818 = vmatprep.subr.bf16.mxu0 0
        %1819 = vmatpush1.bf16.msra.mxu0 %v1810
        %1820 = vmatprep.subr.bf16.mxu0 0
        %1821 = vmatpush1.bf16.msra.mxu0 0
        %1822 = vmatprep.subr.bf16.mxu0 0
        %1823 = vmatpush1.bf16.msra.mxu0 0
        %1824 = vmatprep.subr.bf16.mxu0 0
        %1825 = vmatpush1.bf16.msra.mxu0 0
        %1826 = vmatprep.subr.bf16.mxu0 0
        %1827 = vmatpush1.bf16.msra.mxu0 0
        %1828 = vmatprep.subr.bf16.mxu0 0
        %1829 = vmatpush1.bf16.msra.mxu0 0
        %1830 = vmatprep.subr.bf16.mxu0 0
        %1831 = vmatpush1.bf16.msra.mxu0 0
        %1832 = vmatprep.subr.bf16.mxu0 0
        %1833 = vmatpush1.bf16.msra.mxu0 0
        %1834 = vmatprep.subr.bf16.mxu0 0
        %1835 = vmatpush1.bf16.msra.mxu0 0
        %1836 = vmatprep.subr.bf16.mxu0 0
        %1837 = vmatpush1.bf16.msra.mxu0 0
        %1838 = vmatprep.subr.bf16.mxu0 0
        %1839 = vmatpush1.bf16.msra.mxu0 0
        %1840 = vmatprep.subr.bf16.mxu0 0
        %1841 = vmatpush1.bf16.msra.mxu0 0
        %1842 = vmatprep.subr.bf16.mxu0 0
        %1843 = vmatpush1.bf16.msra.mxu0 0
        %1844 = vmatprep.subr.bf16.mxu0 0
        %1845 = vmatpush1.bf16.msra.mxu0 0
        %1846 = vmatprep.subr.bf16.mxu0 0
        %1847 = vmatpush1.bf16.msra.mxu0 0
        %1848 = vmatprep.mubr.bf16.mxu0 0
        %1849 = vmatmul.mubr.bf16.gmra.mrb[0].mxu0 %v1814
        %v1850 = vpop.f32.mrb[0].mxu0
        %v1851 = vadd.f32 %v1637, %v1850
        %v1852 = vpop.f32.mrb[0].mxu0
        %v1853 = vpop.f32.mrb[0].mxu0
        %v1854 = vpop.f32.mrb[0].mxu0
        %1855 = vdwg.mxu0
        %v1860 = vunpack.c.l.b16 %v1077
        %v1861 = vunpack.c.l.b16 %v1078
        %v1862 = vunpack.c.l.b16 %v1079
        %v1863 = vunpack.c.l.b16 %v1080
        %v1864 = vpack.c.b16 %v1861, %v1860
        %v1865 = vpack.c.b16 %v1863, %v1862
        %1868 = vmatprep.subr.bf16.mxu0 0
        %1869 = vmatpush1.bf16.msra.mxu0 %v1864
        %1870 = vmatprep.subr.bf16.mxu0 0
        %1871 = vmatpush1.bf16.msra.mxu0 %v1865
        %1872 = vmatprep.subr.bf16.mxu0 0
        %1873 = vmatpush1.bf16.msra.mxu0 0
        %1874 = vmatprep.subr.bf16.mxu0 0
        %1875 = vmatpush1.bf16.msra.mxu0 0
        %1876 = vmatprep.subr.bf16.mxu0 0
        %1877 = vmatpush1.bf16.msra.mxu0 0
        %1878 = vmatprep.subr.bf16.mxu0 0
        %1879 = vmatpush1.bf16.msra.mxu0 0
        %1880 = vmatprep.subr.bf16.mxu0 0
        %1881 = vmatpush1.bf16.msra.mxu0 0
        %1882 = vmatprep.subr.bf16.mxu0 0
        %1883 = vmatpush1.bf16.msra.mxu0 0
        %1884 = vmatprep.subr.bf16.mxu0 0
        %1885 = vmatpush1.bf16.msra.mxu0 0
        %1886 = vmatprep.subr.bf16.mxu0 0
        %1887 = vmatpush1.bf16.msra.mxu0 0
        %1888 = vmatprep.subr.bf16.mxu0 0
        %1889 = vmatpush1.bf16.msra.mxu0 0
        %1890 = vmatprep.subr.bf16.mxu0 0
        %1891 = vmatpush1.bf16.msra.mxu0 0
        %1892 = vmatprep.subr.bf16.mxu0 0
        %1893 = vmatpush1.bf16.msra.mxu0 0
        %1894 = vmatprep.subr.bf16.mxu0 0
        %1895 = vmatpush1.bf16.msra.mxu0 0
        %1896 = vmatprep.subr.bf16.mxu0 0
        %1897 = vmatpush1.bf16.msra.mxu0 0
        %1898 = vmatprep.subr.bf16.mxu0 0
        %1899 = vmatpush1.bf16.msra.mxu0 0
        %1900 = vmatprep.mubr.bf16.mxu0 0
        %1901 = vmatmul.mubr.bf16.gmra.mrb[0].mxu0 %v1814
        %v1902 = vpop.f32.mrb[0].mxu0
        %v1903 = vadd.f32 %v1689, %v1902
        %v1904 = vpop.f32.mrb[0].mxu0
        %v1905 = vpop.f32.mrb[0].mxu0
        %v1906 = vpop.f32.mrb[0].mxu0
        %1907 = vdwg.mxu0
        %v1912 = vunpack.c.l.b16 %v1081
        %v1913 = vunpack.c.l.b16 %v1082
        %v1914 = vunpack.c.l.b16 %v1083
        %v1915 = vunpack.c.l.b16 %v1084
        %v1916 = vpack.c.b16 %v1913, %v1912
        %v1917 = vpack.c.b16 %v1915, %v1914
        %1920 = vmatprep.subr.bf16.mxu0 0
        %1921 = vmatpush1.bf16.msra.mxu0 %v1916
        %1922 = vmatprep.subr.bf16.mxu0 0
        %1923 = vmatpush1.bf16.msra.mxu0 %v1917
        %1924 = vmatprep.subr.bf16.mxu0 0
        %1925 = vmatpush1.bf16.msra.mxu0 0
        %1926 = vmatprep.subr.bf16.mxu0 0
        %1927 = vmatpush1.bf16.msra.mxu0 0
        %1928 = vmatprep.subr.bf16.mxu0 0
        %1929 = vmatpush1.bf16.msra.mxu0 0
        %1930 = vmatprep.subr.bf16.mxu0 0
        %1931 = vmatpush1.bf16.msra.mxu0 0
        %1932 = vmatprep.subr.bf16.mxu0 0
        %1933 = vmatpush1.bf16.msra.mxu0 0
        %1934 = vmatprep.subr.bf16.mxu0 0
        %1935 = vmatpush1.bf16.msra.mxu0 0
        %1936 = vmatprep.subr.bf16.mxu0 0
        %1937 = vmatpush1.bf16.msra.mxu0 0
        %1938 = vmatprep.subr.bf16.mxu0 0
        %1939 = vmatpush1.bf16.msra.mxu0 0
        %1940 = vmatprep.subr.bf16.mxu0 0
        %1941 = vmatpush1.bf16.msra.mxu0 0
        %1942 = vmatprep.subr.bf16.mxu0 0
        %1943 = vmatpush1.bf16.msra.mxu0 0
        %1944 = vmatprep.subr.bf16.mxu0 0
        %1945 = vmatpush1.bf16.msra.mxu0 0
        %1946 = vmatprep.subr.bf16.mxu0 0
        %1947 = vmatpush1.bf16.msra.mxu0 0
        %1948 = vmatprep.subr.bf16.mxu0 0
        %1949 = vmatpush1.bf16.msra.mxu0 0
        %1950 = vmatprep.subr.bf16.mxu0 0
        %1951 = vmatpush1.bf16.msra.mxu0 0
        %1952 = vmatprep.mubr.bf16.mxu0 0
        %1953 = vmatmul.mubr.bf16.gmra.mrb[0].mxu0 %v1814
        %v1954 = vpop.f32.mrb[0].mxu0
        %v1955 = vadd.f32 %v1741, %v1954
        %v1956 = vpop.f32.mrb[0].mxu0
        %v1957 = vpop.f32.mrb[0].mxu0
        %v1958 = vpop.f32.mrb[0].mxu0
        %1959 = vdwg.mxu0
        %v1964 = vunpack.c.l.b16 %v1085
        %v1965 = vunpack.c.l.b16 %v1086
        %v1966 = vunpack.c.l.b16 %v1087
        %v1967 = vunpack.c.l.b16 %v1088
        %v1968 = vpack.c.b16 %v1965, %v1964
        %v1969 = vpack.c.b16 %v1967, %v1966
        %1972 = vmatprep.subr.bf16.mxu0 0
        %1973 = vmatpush1.bf16.msra.mxu0 %v1968
        %1974 = vmatprep.subr.bf16.mxu0 0
        %1975 = vmatpush1.bf16.msra.mxu0 %v1969
        %1976 = vmatprep.subr.bf16.mxu0 0
        %1977 = vmatpush1.bf16.msra.mxu0 0
        %1978 = vmatprep.subr.bf16.mxu0 0
        %1979 = vmatpush1.bf16.msra.mxu0 0
        %1980 = vmatprep.subr.bf16.mxu0 0
        %1981 = vmatpush1.bf16.msra.mxu0 0
        %1982 = vmatprep.subr.bf16.mxu0 0
        %1983 = vmatpush1.bf16.msra.mxu0 0
        %1984 = vmatprep.subr.bf16.mxu0 0
        %1985 = vmatpush1.bf16.msra.mxu0 0
        %1986 = vmatprep.subr.bf16.mxu0 0
        %1987 = vmatpush1.bf16.msra.mxu0 0
        %1988 = vmatprep.subr.bf16.mxu0 0
        %1989 = vmatpush1.bf16.msra.mxu0 0
        %1990 = vmatprep.subr.bf16.mxu0 0
        %1991 = vmatpush1.bf16.msra.mxu0 0
        %1992 = vmatprep.subr.bf16.mxu0 0
        %1993 = vmatpush1.bf16.msra.mxu0 0
        %1994 = vmatprep.subr.bf16.mxu0 0
        %1995 = vmatpush1.bf16.msra.mxu0 0
        %1996 = vmatprep.subr.bf16.mxu0 0
        %1997 = vmatpush1.bf16.msra.mxu0 0
        %1998 = vmatprep.subr.bf16.mxu0 0
        %1999 = vmatpush1.bf16.msra.mxu0 0
        %2000 = vmatprep.subr.bf16.mxu0 0
        %2001 = vmatpush1.bf16.msra.mxu0 0
        %2002 = vmatprep.subr.bf16.mxu0 0
        %2003 = vmatpush1.bf16.msra.mxu0 0
        %2004 = vmatprep.mubr.bf16.mxu0 0
        %2005 = vmatmul.mubr.bf16.gmra.mrb[0].mxu0 %v1814
        %v2006 = vpop.f32.mrb[0].mxu0
        %v2007 = vadd.f32 %v1793, %v2006
        %v2008 = vpop.f32.mrb[0].mxu0
        %v2009 = vpop.f32.mrb[0].mxu0
        %v2010 = vpop.f32.mrb[0].mxu0
        %2011 = vdwg.mxu0
        %s2012 = scalar_lea.vmem %s7, 128
        %v2013 = vld [vmem:[%s2012] sm:$0xf]
        %v2014 = vld [vmem:[%s2012 + $0x4] sm:$0xf]
        %v2015 = vld [vmem:[%s2012 + $0x8] sm:$0xf]
        %v2016 = vld [vmem:[%s2012 + $0xc] sm:$0xf]
        %v2017 = vld [vmem:[%s2012 + $0x10] sm:$0xf]
        %v2018 = vld [vmem:[%s2012 + $0x14] sm:$0xf]
        %v2019 = vld [vmem:[%s2012 + $0x18] sm:$0xf]
        %v2020 = vld [vmem:[%s2012 + $0x1c] sm:$0xf]
        %v2021 = vld [vmem:[%s2012 + $0x20] sm:$0xf]
        %v2022 = vld [vmem:[%s2012 + $0x24] sm:$0xf]
        %v2023 = vld [vmem:[%s2012 + $0x28] sm:$0xf]
        %v2024 = vld [vmem:[%s2012 + $0x2c] sm:$0xf]
        %v2025 = vld [vmem:[%s2012 + $0x30] sm:$0xf]
        %v2026 = vld [vmem:[%s2012 + $0x34] sm:$0xf]
        %v2027 = vld [vmem:[%s2012 + $0x38] sm:$0xf]
        %v2028 = vld [vmem:[%s2012 + $0x3c] sm:$0xf]
        %v2029 = vrot.slane %v1120, 2
        %v2030 = vrot.slane %v1121, 1
        %v2031 = vsel %vm1123, %v2030, %v2029
        %v2032 = vpack.c.b16 %v2031, %v2031
        %v2037 = vunpack.c.l.b16 %v2013
        %v2038 = vunpack.c.l.b16 %v2014
        %v2039 = vunpack.c.l.b16 %v2015
        %v2040 = vunpack.c.l.b16 %v2016
        %v2041 = vpack.c.b16 %v2038, %v2037
        %v2042 = vpack.c.b16 %v2040, %v2039
        %v2046 = vsel %vm678, %v2032, 0
        %2048 = vmatprep.subr.bf16.mxu0 0
        %2049 = vmatpush1.bf16.msra.mxu0 %v2041
        %2050 = vmatprep.subr.bf16.mxu0 0
        %2051 = vmatpush1.bf16.msra.mxu0 %v2042
        %2052 = vmatprep.subr.bf16.mxu0 0
        %2053 = vmatpush1.bf16.msra.mxu0 0
        %2054 = vmatprep.subr.bf16.mxu0 0
        %2055 = vmatpush1.bf16.msra.mxu0 0
        %2056 = vmatprep.subr.bf16.mxu0 0
        %2057 = vmatpush1.bf16.msra.mxu0 0
        %2058 = vmatprep.subr.bf16.mxu0 0
        %2059 = vmatpush1.bf16.msra.mxu0 0
        %2060 = vmatprep.subr.bf16.mxu0 0
        %2061 = vmatpush1.bf16.msra.mxu0 0
        %2062 = vmatprep.subr.bf16.mxu0 0
        %2063 = vmatpush1.bf16.msra.mxu0 0
        %2064 = vmatprep.subr.bf16.mxu0 0
        %2065 = vmatpush1.bf16.msra.mxu0 0
        %2066 = vmatprep.subr.bf16.mxu0 0
        %2067 = vmatpush1.bf16.msra.mxu0 0
        %2068 = vmatprep.subr.bf16.mxu0 0
        %2069 = vmatpush1.bf16.msra.mxu0 0
        %2070 = vmatprep.subr.bf16.mxu0 0
        %2071 = vmatpush1.bf16.msra.mxu0 0
        %2072 = vmatprep.subr.bf16.mxu0 0
        %2073 = vmatpush1.bf16.msra.mxu0 0
        %2074 = vmatprep.subr.bf16.mxu0 0
        %2075 = vmatpush1.bf16.msra.mxu0 0
        %2076 = vmatprep.subr.bf16.mxu0 0
        %2077 = vmatpush1.bf16.msra.mxu0 0
        %2078 = vmatprep.subr.bf16.mxu0 0
        %2079 = vmatpush1.bf16.msra.mxu0 0
        %2080 = vmatprep.mubr.bf16.mxu0 0
        %2081 = vmatmul.mubr.bf16.gmra.mrb[0].mxu0 %v2046
        %v2082 = vpop.f32.mrb[0].mxu0
        %v2083 = vadd.f32 0.0, %v2082
        %v2084 = vpop.f32.mrb[0].mxu0
        %v2085 = vpop.f32.mrb[0].mxu0
        %v2086 = vpop.f32.mrb[0].mxu0
        %2087 = vdwg.mxu0
        %v2092 = vunpack.c.l.b16 %v2017
        %v2093 = vunpack.c.l.b16 %v2018
        %v2094 = vunpack.c.l.b16 %v2019
        %v2095 = vunpack.c.l.b16 %v2020
        %v2096 = vpack.c.b16 %v2093, %v2092
        %v2097 = vpack.c.b16 %v2095, %v2094
        %2100 = vmatprep.subr.bf16.mxu0 0
        %2101 = vmatpush1.bf16.msra.mxu0 %v2096
        %2102 = vmatprep.subr.bf16.mxu0 0
        %2103 = vmatpush1.bf16.msra.mxu0 %v2097
        %2104 = vmatprep.subr.bf16.mxu0 0
        %2105 = vmatpush1.bf16.msra.mxu0 0
        %2106 = vmatprep.subr.bf16.mxu0 0
        %2107 = vmatpush1.bf16.msra.mxu0 0
        %2108 = vmatprep.subr.bf16.mxu0 0
        %2109 = vmatpush1.bf16.msra.mxu0 0
        %2110 = vmatprep.subr.bf16.mxu0 0
        %2111 = vmatpush1.bf16.msra.mxu0 0
        %2112 = vmatprep.subr.bf16.mxu0 0
        %2113 = vmatpush1.bf16.msra.mxu0 0
        %2114 = vmatprep.subr.bf16.mxu0 0
        %2115 = vmatpush1.bf16.msra.mxu0 0
        %2116 = vmatprep.subr.bf16.mxu0 0
        %2117 = vmatpush1.bf16.msra.mxu0 0
        %2118 = vmatprep.subr.bf16.mxu0 0
        %2119 = vmatpush1.bf16.msra.mxu0 0
        %2120 = vmatprep.subr.bf16.mxu0 0
        %2121 = vmatpush1.bf16.msra.mxu0 0
        %2122 = vmatprep.subr.bf16.mxu0 0
        %2123 = vmatpush1.bf16.msra.mxu0 0
        %2124 = vmatprep.subr.bf16.mxu0 0
        %2125 = vmatpush1.bf16.msra.mxu0 0
        %2126 = vmatprep.subr.bf16.mxu0 0
        %2127 = vmatpush1.bf16.msra.mxu0 0
        %2128 = vmatprep.subr.bf16.mxu0 0
        %2129 = vmatpush1.bf16.msra.mxu0 0
        %2130 = vmatprep.subr.bf16.mxu0 0
        %2131 = vmatpush1.bf16.msra.mxu0 0
        %2132 = vmatprep.mubr.bf16.mxu0 0
        %2133 = vmatmul.mubr.bf16.gmra.mrb[0].mxu0 %v2046
        %v2134 = vpop.f32.mrb[0].mxu0
        %v2135 = vadd.f32 0.0, %v2134
        %v2136 = vpop.f32.mrb[0].mxu0
        %v2137 = vpop.f32.mrb[0].mxu0
        %v2138 = vpop.f32.mrb[0].mxu0
        %2139 = vdwg.mxu0
        %v2144 = vunpack.c.l.b16 %v2021
        %v2145 = vunpack.c.l.b16 %v2022
        %v2146 = vunpack.c.l.b16 %v2023
        %v2147 = vunpack.c.l.b16 %v2024
        %v2148 = vpack.c.b16 %v2145, %v2144
        %v2149 = vpack.c.b16 %v2147, %v2146
        %2152 = vmatprep.subr.bf16.mxu0 0
        %2153 = vmatpush1.bf16.msra.mxu0 %v2148
        %2154 = vmatprep.subr.bf16.mxu0 0
        %2155 = vmatpush1.bf16.msra.mxu0 %v2149
        %2156 = vmatprep.subr.bf16.mxu0 0
        %2157 = vmatpush1.bf16.msra.mxu0 0
        %2158 = vmatprep.subr.bf16.mxu0 0
        %2159 = vmatpush1.bf16.msra.mxu0 0
        %2160 = vmatprep.subr.bf16.mxu0 0
        %2161 = vmatpush1.bf16.msra.mxu0 0
        %2162 = vmatprep.subr.bf16.mxu0 0
        %2163 = vmatpush1.bf16.msra.mxu0 0
        %2164 = vmatprep.subr.bf16.mxu0 0
        %2165 = vmatpush1.bf16.msra.mxu0 0
        %2166 = vmatprep.subr.bf16.mxu0 0
        %2167 = vmatpush1.bf16.msra.mxu0 0
        %2168 = vmatprep.subr.bf16.mxu0 0
        %2169 = vmatpush1.bf16.msra.mxu0 0
        %2170 = vmatprep.subr.bf16.mxu0 0
        %2171 = vmatpush1.bf16.msra.mxu0 0
        %2172 = vmatprep.subr.bf16.mxu0 0
        %2173 = vmatpush1.bf16.msra.mxu0 0
        %2174 = vmatprep.subr.bf16.mxu0 0
        %2175 = vmatpush1.bf16.msra.mxu0 0
        %2176 = vmatprep.subr.bf16.mxu0 0
        %2177 = vmatpush1.bf16.msra.mxu0 0
        %2178 = vmatprep.subr.bf16.mxu0 0
        %2179 = vmatpush1.bf16.msra.mxu0 0
        %2180 = vmatprep.subr.bf16.mxu0 0
        %2181 = vmatpush1.bf16.msra.mxu0 0
        %2182 = vmatprep.subr.bf16.mxu0 0
        %2183 = vmatpush1.bf16.msra.mxu0 0
        %2184 = vmatprep.mubr.bf16.mxu0 0
        %2185 = vmatmul.mubr.bf16.gmra.mrb[0].mxu0 %v2046
        %v2186 = vpop.f32.mrb[0].mxu0
        %v2187 = vadd.f32 0.0, %v2186
        %v2188 = vpop.f32.mrb[0].mxu0
        %v2189 = vpop.f32.mrb[0].mxu0
        %v2190 = vpop.f32.mrb[0].mxu0
        %2191 = vdwg.mxu0
        %v2196 = vunpack.c.l.b16 %v2025
        %v2197 = vunpack.c.l.b16 %v2026
        %v2198 = vunpack.c.l.b16 %v2027
        %v2199 = vunpack.c.l.b16 %v2028
        %v2200 = vpack.c.b16 %v2197, %v2196
        %v2201 = vpack.c.b16 %v2199, %v2198
        %2204 = vmatprep.subr.bf16.mxu0 0
        %2205 = vmatpush1.bf16.msra.mxu0 %v2200
        %2206 = vmatprep.subr.bf16.mxu0 0
        %2207 = vmatpush1.bf16.msra.mxu0 %v2201
        %2208 = vmatprep.subr.bf16.mxu0 0
        %2209 = vmatpush1.bf16.msra.mxu0 0
        %2210 = vmatprep.subr.bf16.mxu0 0
        %2211 = vmatpush1.bf16.msra.mxu0 0
        %2212 = vmatprep.subr.bf16.mxu0 0
        %2213 = vmatpush1.bf16.msra.mxu0 0
        %2214 = vmatprep.subr.bf16.mxu0 0
        %2215 = vmatpush1.bf16.msra.mxu0 0
        %2216 = vmatprep.subr.bf16.mxu0 0
        %2217 = vmatpush1.bf16.msra.mxu0 0
        %2218 = vmatprep.subr.bf16.mxu0 0
        %2219 = vmatpush1.bf16.msra.mxu0 0
        %2220 = vmatprep.subr.bf16.mxu0 0
        %2221 = vmatpush1.bf16.msra.mxu0 0
        %2222 = vmatprep.subr.bf16.mxu0 0
        %2223 = vmatpush1.bf16.msra.mxu0 0
        %2224 = vmatprep.subr.bf16.mxu0 0
        %2225 = vmatpush1.bf16.msra.mxu0 0
        %2226 = vmatprep.subr.bf16.mxu0 0
        %2227 = vmatpush1.bf16.msra.mxu0 0
        %2228 = vmatprep.subr.bf16.mxu0 0
        %2229 = vmatpush1.bf16.msra.mxu0 0
        %2230 = vmatprep.subr.bf16.mxu0 0
        %2231 = vmatpush1.bf16.msra.mxu0 0
        %2232 = vmatprep.subr.bf16.mxu0 0
        %2233 = vmatpush1.bf16.msra.mxu0 0
        %2234 = vmatprep.subr.bf16.mxu0 0
        %2235 = vmatpush1.bf16.msra.mxu0 0
        %2236 = vmatprep.mubr.bf16.mxu0 0
        %2237 = vmatmul.mubr.bf16.gmra.mrb[0].mxu0 %v2046
        %v2238 = vpop.f32.mrb[0].mxu0
        %v2239 = vadd.f32 0.0, %v2238
        %v2240 = vpop.f32.mrb[0].mxu0
        %v2241 = vpop.f32.mrb[0].mxu0
        %v2242 = vpop.f32.mrb[0].mxu0
        %2243 = vdwg.mxu0
        %v2244 = vadd.f32 %v1390, %v2083
        %v2245 = vadd.f32 %v1442, %v2135
        %v2246 = vadd.f32 %v1494, %v2187
        %v2247 = vadd.f32 %v1546, %v2239
        %s2248 = scalar_lea.vmem %s9, 128
        %v2249 = vld [vmem:[%s2248] sm:$0xf]
        %v2250 = vld [vmem:[%s2248 + $0x4] sm:$0xf]
        %v2251 = vld [vmem:[%s2248 + $0x8] sm:$0xf]
        %v2252 = vld [vmem:[%s2248 + $0xc] sm:$0xf]
        %v2253 = vld [vmem:[%s2248 + $0x10] sm:$0xf]
        %v2254 = vld [vmem:[%s2248 + $0x14] sm:$0xf]
        %v2255 = vld [vmem:[%s2248 + $0x18] sm:$0xf]
        %v2256 = vld [vmem:[%s2248 + $0x1c] sm:$0xf]
        %v2257 = vld [vmem:[%s2248 + $0x20] sm:$0xf]
        %v2258 = vld [vmem:[%s2248 + $0x24] sm:$0xf]
        %v2259 = vld [vmem:[%s2248 + $0x28] sm:$0xf]
        %v2260 = vld [vmem:[%s2248 + $0x2c] sm:$0xf]
        %v2261 = vld [vmem:[%s2248 + $0x30] sm:$0xf]
        %v2262 = vld [vmem:[%s2248 + $0x34] sm:$0xf]
        %v2263 = vld [vmem:[%s2248 + $0x38] sm:$0xf]
        %v2264 = vld [vmem:[%s2248 + $0x3c] sm:$0xf]
        %v2265 = vrot.slane %v1582, 2
        %v2266 = vrot.slane %v1583, 1
        %v2267 = vsel %vm1123, %v2266, %v2265
        %v2268 = vpack.c.b16 %v2267, %v2267
        %v2273 = vunpack.c.l.b16 %v2249
        %v2274 = vunpack.c.l.b16 %v2250
        %v2275 = vunpack.c.l.b16 %v2251
        %v2276 = vunpack.c.l.b16 %v2252
        %v2277 = vpack.c.b16 %v2274, %v2273
        %v2278 = vpack.c.b16 %v2276, %v2275
        %v2282 = vsel %vm678, %v2268, 0
        %2284 = vmatprep.subr.bf16.mxu0 0
        %2285 = vmatpush1.bf16.msra.mxu0 %v2277
        %2286 = vmatprep.subr.bf16.mxu0 0
        %2287 = vmatpush1.bf16.msra.mxu0 %v2278
        %2288 = vmatprep.subr.bf16.mxu0 0
        %2289 = vmatpush1.bf16.msra.mxu0 0
        %2290 = vmatprep.subr.bf16.mxu0 0
        %2291 = vmatpush1.bf16.msra.mxu0 0
        %2292 = vmatprep.subr.bf16.mxu0 0
        %2293 = vmatpush1.bf16.msra.mxu0 0
        %2294 = vmatprep.subr.bf16.mxu0 0
        %2295 = vmatpush1.bf16.msra.mxu0 0
        %2296 = vmatprep.subr.bf16.mxu0 0
        %2297 = vmatpush1.bf16.msra.mxu0 0
        %2298 = vmatprep.subr.bf16.mxu0 0
        %2299 = vmatpush1.bf16.msra.mxu0 0
        %2300 = vmatprep.subr.bf16.mxu0 0
        %2301 = vmatpush1.bf16.msra.mxu0 0
        %2302 = vmatprep.subr.bf16.mxu0 0
        %2303 = vmatpush1.bf16.msra.mxu0 0
        %2304 = vmatprep.subr.bf16.mxu0 0
        %2305 = vmatpush1.bf16.msra.mxu0 0
        %2306 = vmatprep.subr.bf16.mxu0 0
        %2307 = vmatpush1.bf16.msra.mxu0 0
        %2308 = vmatprep.subr.bf16.mxu0 0
        %2309 = vmatpush1.bf16.msra.mxu0 0
        %2310 = vmatprep.subr.bf16.mxu0 0
        %2311 = vmatpush1.bf16.msra.mxu0 0
        %2312 = vmatprep.subr.bf16.mxu0 0
        %2313 = vmatpush1.bf16.msra.mxu0 0
        %2314 = vmatprep.subr.bf16.mxu0 0
        %2315 = vmatpush1.bf16.msra.mxu0 0
        %2316 = vmatprep.mubr.bf16.mxu0 0
        %2317 = vmatmul.mubr.bf16.gmra.mrb[0].mxu0 %v2282
        %v2318 = vpop.f32.mrb[0].mxu0
        %v2319 = vadd.f32 0.0, %v2318
        %v2320 = vpop.f32.mrb[0].mxu0
        %v2321 = vpop.f32.mrb[0].mxu0
        %v2322 = vpop.f32.mrb[0].mxu0
        %2323 = vdwg.mxu0
        %v2328 = vunpack.c.l.b16 %v2253
        %v2329 = vunpack.c.l.b16 %v2254
        %v2330 = vunpack.c.l.b16 %v2255
        %v2331 = vunpack.c.l.b16 %v2256
        %v2332 = vpack.c.b16 %v2329, %v2328
        %v2333 = vpack.c.b16 %v2331, %v2330
        %2336 = vmatprep.subr.bf16.mxu0 0
        %2337 = vmatpush1.bf16.msra.mxu0 %v2332
        %2338 = vmatprep.subr.bf16.mxu0 0
        %2339 = vmatpush1.bf16.msra.mxu0 %v2333
        %2340 = vmatprep.subr.bf16.mxu0 0
        %2341 = vmatpush1.bf16.msra.mxu0 0
        %2342 = vmatprep.subr.bf16.mxu0 0
        %2343 = vmatpush1.bf16.msra.mxu0 0
        %2344 = vmatprep.subr.bf16.mxu0 0
        %2345 = vmatpush1.bf16.msra.mxu0 0
        %2346 = vmatprep.subr.bf16.mxu0 0
        %2347 = vmatpush1.bf16.msra.mxu0 0
        %2348 = vmatprep.subr.bf16.mxu0 0
        %2349 = vmatpush1.bf16.msra.mxu0 0
        %2350 = vmatprep.subr.bf16.mxu0 0
        %2351 = vmatpush1.bf16.msra.mxu0 0
        %2352 = vmatprep.subr.bf16.mxu0 0
        %2353 = vmatpush1.bf16.msra.mxu0 0
        %2354 = vmatprep.subr.bf16.mxu0 0
        %2355 = vmatpush1.bf16.msra.mxu0 0
        %2356 = vmatprep.subr.bf16.mxu0 0
        %2357 = vmatpush1.bf16.msra.mxu0 0
        %2358 = vmatprep.subr.bf16.mxu0 0
        %2359 = vmatpush1.bf16.msra.mxu0 0
        %2360 = vmatprep.subr.bf16.mxu0 0
        %2361 = vmatpush1.bf16.msra.mxu0 0
        %2362 = vmatprep.subr.bf16.mxu0 0
        %2363 = vmatpush1.bf16.msra.mxu0 0
        %2364 = vmatprep.subr.bf16.mxu0 0
        %2365 = vmatpush1.bf16.msra.mxu0 0
        %2366 = vmatprep.subr.bf16.mxu0 0
        %2367 = vmatpush1.bf16.msra.mxu0 0
        %2368 = vmatprep.mubr.bf16.mxu0 0
        %2369 = vmatmul.mubr.bf16.gmra.mrb[0].mxu0 %v2282
        %v2370 = vpop.f32.mrb[0].mxu0
        %v2371 = vadd.f32 0.0, %v2370
        %v2372 = vpop.f32.mrb[0].mxu0
        %v2373 = vpop.f32.mrb[0].mxu0
        %v2374 = vpop.f32.mrb[0].mxu0
        %2375 = vdwg.mxu0
        %v2380 = vunpack.c.l.b16 %v2257
        %v2381 = vunpack.c.l.b16 %v2258
        %v2382 = vunpack.c.l.b16 %v2259
        %v2383 = vunpack.c.l.b16 %v2260
        %v2384 = vpack.c.b16 %v2381, %v2380
        %v2385 = vpack.c.b16 %v2383, %v2382
        %2388 = vmatprep.subr.bf16.mxu0 0
        %2389 = vmatpush1.bf16.msra.mxu0 %v2384
        %2390 = vmatprep.subr.bf16.mxu0 0
        %2391 = vmatpush1.bf16.msra.mxu0 %v2385
        %2392 = vmatprep.subr.bf16.mxu0 0
        %2393 = vmatpush1.bf16.msra.mxu0 0
        %2394 = vmatprep.subr.bf16.mxu0 0
        %2395 = vmatpush1.bf16.msra.mxu0 0
        %2396 = vmatprep.subr.bf16.mxu0 0
        %2397 = vmatpush1.bf16.msra.mxu0 0
        %2398 = vmatprep.subr.bf16.mxu0 0
        %2399 = vmatpush1.bf16.msra.mxu0 0
        %2400 = vmatprep.subr.bf16.mxu0 0
        %2401 = vmatpush1.bf16.msra.mxu0 0
        %2402 = vmatprep.subr.bf16.mxu0 0
        %2403 = vmatpush1.bf16.msra.mxu0 0
        %2404 = vmatprep.subr.bf16.mxu0 0
        %2405 = vmatpush1.bf16.msra.mxu0 0
        %2406 = vmatprep.subr.bf16.mxu0 0
        %2407 = vmatpush1.bf16.msra.mxu0 0
        %2408 = vmatprep.subr.bf16.mxu0 0
        %2409 = vmatpush1.bf16.msra.mxu0 0
        %2410 = vmatprep.subr.bf16.mxu0 0
        %2411 = vmatpush1.bf16.msra.mxu0 0
        %2412 = vmatprep.subr.bf16.mxu0 0
        %2413 = vmatpush1.bf16.msra.mxu0 0
        %2414 = vmatprep.subr.bf16.mxu0 0
        %2415 = vmatpush1.bf16.msra.mxu0 0
        %2416 = vmatprep.subr.bf16.mxu0 0
        %2417 = vmatpush1.bf16.msra.mxu0 0
        %2418 = vmatprep.subr.bf16.mxu0 0
        %2419 = vmatpush1.bf16.msra.mxu0 0
        %2420 = vmatprep.mubr.bf16.mxu0 0
        %2421 = vmatmul.mubr.bf16.gmra.mrb[0].mxu0 %v2282
        %v2422 = vpop.f32.mrb[0].mxu0
        %v2423 = vadd.f32 0.0, %v2422
        %v2424 = vpop.f32.mrb[0].mxu0
        %v2425 = vpop.f32.mrb[0].mxu0
        %v2426 = vpop.f32.mrb[0].mxu0
        %2427 = vdwg.mxu0
        %v2432 = vunpack.c.l.b16 %v2261
        %v2433 = vunpack.c.l.b16 %v2262
        %v2434 = vunpack.c.l.b16 %v2263
        %v2435 = vunpack.c.l.b16 %v2264
        %v2436 = vpack.c.b16 %v2433, %v2432
        %v2437 = vpack.c.b16 %v2435, %v2434
        %2440 = vmatprep.subr.bf16.mxu0 0
        %2441 = vmatpush1.bf16.msra.mxu0 %v2436
        %2442 = vmatprep.subr.bf16.mxu0 0
        %2443 = vmatpush1.bf16.msra.mxu0 %v2437
        %2444 = vmatprep.subr.bf16.mxu0 0
        %2445 = vmatpush1.bf16.msra.mxu0 0
        %2446 = vmatprep.subr.bf16.mxu0 0
        %2447 = vmatpush1.bf16.msra.mxu0 0
        %2448 = vmatprep.subr.bf16.mxu0 0
        %2449 = vmatpush1.bf16.msra.mxu0 0
        %2450 = vmatprep.subr.bf16.mxu0 0
        %2451 = vmatpush1.bf16.msra.mxu0 0
        %2452 = vmatprep.subr.bf16.mxu0 0
        %2453 = vmatpush1.bf16.msra.mxu0 0
        %2454 = vmatprep.subr.bf16.mxu0 0
        %2455 = vmatpush1.bf16.msra.mxu0 0
        %2456 = vmatprep.subr.bf16.mxu0 0
        %2457 = vmatpush1.bf16.msra.mxu0 0
        %2458 = vmatprep.subr.bf16.mxu0 0
        %2459 = vmatpush1.bf16.msra.mxu0 0
        %2460 = vmatprep.subr.bf16.mxu0 0
        %2461 = vmatpush1.bf16.msra.mxu0 0
        %2462 = vmatprep.subr.bf16.mxu0 0
        %2463 = vmatpush1.bf16.msra.mxu0 0
        %2464 = vmatprep.subr.bf16.mxu0 0
        %2465 = vmatpush1.bf16.msra.mxu0 0
        %2466 = vmatprep.subr.bf16.mxu0 0
        %2467 = vmatpush1.bf16.msra.mxu0 0
        %2468 = vmatprep.subr.bf16.mxu0 0
        %2469 = vmatpush1.bf16.msra.mxu0 0
        %2470 = vmatprep.subr.bf16.mxu0 0
        %2471 = vmatpush1.bf16.msra.mxu0 0
        %2472 = vmatprep.mubr.bf16.mxu0 0
        %2473 = vmatmul.mubr.bf16.gmra.mrb[0].mxu0 %v2282
        %v2474 = vpop.f32.mrb[0].mxu0
        %v2475 = vadd.f32 0.0, %v2474
        %v2476 = vpop.f32.mrb[0].mxu0
        %v2477 = vpop.f32.mrb[0].mxu0
        %v2478 = vpop.f32.mrb[0].mxu0
        %2479 = vdwg.mxu0
        %v2480 = vadd.f32 %v1851, %v2319
        %v2481 = vadd.f32 %v1903, %v2371
        %v2482 = vadd.f32 %v1955, %v2423
        %v2483 = vadd.f32 %v2007, %v2475
        %s2484 = scalar_lea.vmem %s7, 192
        %v2485 = vld [vmem:[%s2484] sm:$0xf]
        %v2486 = vld [vmem:[%s2484 + $0x4] sm:$0xf]
        %v2487 = vld [vmem:[%s2484 + $0x8] sm:$0xf]
        %v2488 = vld [vmem:[%s2484 + $0xc] sm:$0xf]
        %v2489 = vld [vmem:[%s2484 + $0x10] sm:$0xf]
        %v2490 = vld [vmem:[%s2484 + $0x14] sm:$0xf]
        %v2491 = vld [vmem:[%s2484 + $0x18] sm:$0xf]
        %v2492 = vld [vmem:[%s2484 + $0x1c] sm:$0xf]
        %v2493 = vld [vmem:[%s2484 + $0x20] sm:$0xf]
        %v2494 = vld [vmem:[%s2484 + $0x24] sm:$0xf]
        %v2495 = vld [vmem:[%s2484 + $0x28] sm:$0xf]
        %v2496 = vld [vmem:[%s2484 + $0x2c] sm:$0xf]
        %v2497 = vld [vmem:[%s2484 + $0x30] sm:$0xf]
        %v2498 = vld [vmem:[%s2484 + $0x34] sm:$0xf]
        %v2499 = vld [vmem:[%s2484 + $0x38] sm:$0xf]
        %v2500 = vld [vmem:[%s2484 + $0x3c] sm:$0xf]
        %v2501 = vrot.slane %v1120, 3
        %v2502 = vrot.slane %v1121, 2
        %v2503 = vsel %vm1123, %v2502, %v2501
        %v2504 = vpack.c.b16 %v2503, %v2503
        %v2509 = vunpack.c.l.b16 %v2485
        %v2510 = vunpack.c.l.b16 %v2486
        %v2511 = vunpack.c.l.b16 %v2487
        %v2512 = vunpack.c.l.b16 %v2488
        %v2513 = vpack.c.b16 %v2510, %v2509
        %v2514 = vpack.c.b16 %v2512, %v2511
        %v2518 = vsel %vm678, %v2504, 0
        %2520 = vmatprep.subr.bf16.mxu0 0
        %2521 = vmatpush1.bf16.msra.mxu0 %v2513
        %2522 = vmatprep.subr.bf16.mxu0 0
        %2523 = vmatpush1.bf16.msra.mxu0 %v2514
        %2524 = vmatprep.subr.bf16.mxu0 0
        %2525 = vmatpush1.bf16.msra.mxu0 0
        %2526 = vmatprep.subr.bf16.mxu0 0
        %2527 = vmatpush1.bf16.msra.mxu0 0
        %2528 = vmatprep.subr.bf16.mxu0 0
        %2529 = vmatpush1.bf16.msra.mxu0 0
        %2530 = vmatprep.subr.bf16.mxu0 0
        %2531 = vmatpush1.bf16.msra.mxu0 0
        %2532 = vmatprep.subr.bf16.mxu0 0
        %2533 = vmatpush1.bf16.msra.mxu0 0
        %2534 = vmatprep.subr.bf16.mxu0 0
        %2535 = vmatpush1.bf16.msra.mxu0 0
        %2536 = vmatprep.subr.bf16.mxu0 0
        %2537 = vmatpush1.bf16.msra.mxu0 0
        %2538 = vmatprep.subr.bf16.mxu0 0
        %2539 = vmatpush1.bf16.msra.mxu0 0
        %2540 = vmatprep.subr.bf16.mxu0 0
        %2541 = vmatpush1.bf16.msra.mxu0 0
        %2542 = vmatprep.subr.bf16.mxu0 0
        %2543 = vmatpush1.bf16.msra.mxu0 0
        %2544 = vmatprep.subr.bf16.mxu0 0
        %2545 = vmatpush1.bf16.msra.mxu0 0
        %2546 = vmatprep.subr.bf16.mxu0 0
        %2547 = vmatpush1.bf16.msra.mxu0 0
        %2548 = vmatprep.subr.bf16.mxu0 0
        %2549 = vmatpush1.bf16.msra.mxu0 0
        %2550 = vmatprep.subr.bf16.mxu0 0
        %2551 = vmatpush1.bf16.msra.mxu0 0
        %2552 = vmatprep.mubr.bf16.mxu0 0
        %2553 = vmatmul.mubr.bf16.gmra.mrb[0].mxu0 %v2518
        %v2554 = vpop.f32.mrb[0].mxu0
        %v2555 = vadd.f32 0.0, %v2554
        %v2556 = vpop.f32.mrb[0].mxu0
        %v2557 = vpop.f32.mrb[0].mxu0
        %v2558 = vpop.f32.mrb[0].mxu0
        %2559 = vdwg.mxu0
        %v2564 = vunpack.c.l.b16 %v2489
        %v2565 = vunpack.c.l.b16 %v2490
        %v2566 = vunpack.c.l.b16 %v2491
        %v2567 = vunpack.c.l.b16 %v2492
        %v2568 = vpack.c.b16 %v2565, %v2564
        %v2569 = vpack.c.b16 %v2567, %v2566
        %2572 = vmatprep.subr.bf16.mxu0 0
        %2573 = vmatpush1.bf16.msra.mxu0 %v2568
        %2574 = vmatprep.subr.bf16.mxu0 0
        %2575 = vmatpush1.bf16.msra.mxu0 %v2569
        %2576 = vmatprep.subr.bf16.mxu0 0
        %2577 = vmatpush1.bf16.msra.mxu0 0
        %2578 = vmatprep.subr.bf16.mxu0 0
        %2579 = vmatpush1.bf16.msra.mxu0 0
        %2580 = vmatprep.subr.bf16.mxu0 0
        %2581 = vmatpush1.bf16.msra.mxu0 0
        %2582 = vmatprep.subr.bf16.mxu0 0
        %2583 = vmatpush1.bf16.msra.mxu0 0
        %2584 = vmatprep.subr.bf16.mxu0 0
        %2585 = vmatpush1.bf16.msra.mxu0 0
        %2586 = vmatprep.subr.bf16.mxu0 0
        %2587 = vmatpush1.bf16.msra.mxu0 0
        %2588 = vmatprep.subr.bf16.mxu0 0
        %2589 = vmatpush1.bf16.msra.mxu0 0
        %2590 = vmatprep.subr.bf16.mxu0 0
        %2591 = vmatpush1.bf16.msra.mxu0 0
        %2592 = vmatprep.subr.bf16.mxu0 0
        %2593 = vmatpush1.bf16.msra.mxu0 0
        %2594 = vmatprep.subr.bf16.mxu0 0
        %2595 = vmatpush1.bf16.msra.mxu0 0
        %2596 = vmatprep.subr.bf16.mxu0 0
        %2597 = vmatpush1.bf16.msra.mxu0 0
        %2598 = vmatprep.subr.bf16.mxu0 0
        %2599 = vmatpush1.bf16.msra.mxu0 0
        %2600 = vmatprep.subr.bf16.mxu0 0
        %2601 = vmatpush1.bf16.msra.mxu0 0
        %2602 = vmatprep.subr.bf16.mxu0 0
        %2603 = vmatpush1.bf16.msra.mxu0 0
        %2604 = vmatprep.mubr.bf16.mxu0 0
        %2605 = vmatmul.mubr.bf16.gmra.mrb[0].mxu0 %v2518
        %v2606 = vpop.f32.mrb[0].mxu0
        %v2607 = vadd.f32 0.0, %v2606
        %v2608 = vpop.f32.mrb[0].mxu0
        %v2609 = vpop.f32.mrb[0].mxu0
        %v2610 = vpop.f32.mrb[0].mxu0
        %2611 = vdwg.mxu0
        %v2616 = vunpack.c.l.b16 %v2493
        %v2617 = vunpack.c.l.b16 %v2494
        %v2618 = vunpack.c.l.b16 %v2495
        %v2619 = vunpack.c.l.b16 %v2496
        %v2620 = vpack.c.b16 %v2617, %v2616
        %v2621 = vpack.c.b16 %v2619, %v2618
        %2624 = vmatprep.subr.bf16.mxu0 0
        %2625 = vmatpush1.bf16.msra.mxu0 %v2620
        %2626 = vmatprep.subr.bf16.mxu0 0
        %2627 = vmatpush1.bf16.msra.mxu0 %v2621
        %2628 = vmatprep.subr.bf16.mxu0 0
        %2629 = vmatpush1.bf16.msra.mxu0 0
        %2630 = vmatprep.subr.bf16.mxu0 0
        %2631 = vmatpush1.bf16.msra.mxu0 0
        %2632 = vmatprep.subr.bf16.mxu0 0
        %2633 = vmatpush1.bf16.msra.mxu0 0
        %2634 = vmatprep.subr.bf16.mxu0 0
        %2635 = vmatpush1.bf16.msra.mxu0 0
        %2636 = vmatprep.subr.bf16.mxu0 0
        %2637 = vmatpush1.bf16.msra.mxu0 0
        %2638 = vmatprep.subr.bf16.mxu0 0
        %2639 = vmatpush1.bf16.msra.mxu0 0
        %2640 = vmatprep.subr.bf16.mxu0 0
        %2641 = vmatpush1.bf16.msra.mxu0 0
        %2642 = vmatprep.subr.bf16.mxu0 0
        %2643 = vmatpush1.bf16.msra.mxu0 0
        %2644 = vmatprep.subr.bf16.mxu0 0
        %2645 = vmatpush1.bf16.msra.mxu0 0
        %2646 = vmatprep.subr.bf16.mxu0 0
        %2647 = vmatpush1.bf16.msra.mxu0 0
        %2648 = vmatprep.subr.bf16.mxu0 0
        %2649 = vmatpush1.bf16.msra.mxu0 0
        %2650 = vmatprep.subr.bf16.mxu0 0
        %2651 = vmatpush1.bf16.msra.mxu0 0
        %2652 = vmatprep.subr.bf16.mxu0 0
        %2653 = vmatpush1.bf16.msra.mxu0 0
        %2654 = vmatprep.subr.bf16.mxu0 0
        %2655 = vmatpush1.bf16.msra.mxu0 0
        %2656 = vmatprep.mubr.bf16.mxu0 0
        %2657 = vmatmul.mubr.bf16.gmra.mrb[0].mxu0 %v2518
        %v2658 = vpop.f32.mrb[0].mxu0
        %v2659 = vadd.f32 0.0, %v2658
        %v2660 = vpop.f32.mrb[0].mxu0
        %v2661 = vpop.f32.mrb[0].mxu0
        %v2662 = vpop.f32.mrb[0].mxu0
        %2663 = vdwg.mxu0
        %v2668 = vunpack.c.l.b16 %v2497
        %v2669 = vunpack.c.l.b16 %v2498
        %v2670 = vunpack.c.l.b16 %v2499
        %v2671 = vunpack.c.l.b16 %v2500
        %v2672 = vpack.c.b16 %v2669, %v2668
        %v2673 = vpack.c.b16 %v2671, %v2670
        %2676 = vmatprep.subr.bf16.mxu0 0
        %2677 = vmatpush1.bf16.msra.mxu0 %v2672
        %2678 = vmatprep.subr.bf16.mxu0 0
        %2679 = vmatpush1.bf16.msra.mxu0 %v2673
        %2680 = vmatprep.subr.bf16.mxu0 0
        %2681 = vmatpush1.bf16.msra.mxu0 0
        %2682 = vmatprep.subr.bf16.mxu0 0
        %2683 = vmatpush1.bf16.msra.mxu0 0
        %2684 = vmatprep.subr.bf16.mxu0 0
        %2685 = vmatpush1.bf16.msra.mxu0 0
        %2686 = vmatprep.subr.bf16.mxu0 0
        %2687 = vmatpush1.bf16.msra.mxu0 0
        %2688 = vmatprep.subr.bf16.mxu0 0
        %2689 = vmatpush1.bf16.msra.mxu0 0
        %2690 = vmatprep.subr.bf16.mxu0 0
        %2691 = vmatpush1.bf16.msra.mxu0 0
        %2692 = vmatprep.subr.bf16.mxu0 0
        %2693 = vmatpush1.bf16.msra.mxu0 0
        %2694 = vmatprep.subr.bf16.mxu0 0
        %2695 = vmatpush1.bf16.msra.mxu0 0
        %2696 = vmatprep.subr.bf16.mxu0 0
        %2697 = vmatpush1.bf16.msra.mxu0 0
        %2698 = vmatprep.subr.bf16.mxu0 0
        %2699 = vmatpush1.bf16.msra.mxu0 0
        %2700 = vmatprep.subr.bf16.mxu0 0
        %2701 = vmatpush1.bf16.msra.mxu0 0
        %2702 = vmatprep.subr.bf16.mxu0 0
        %2703 = vmatpush1.bf16.msra.mxu0 0
        %2704 = vmatprep.subr.bf16.mxu0 0
        %2705 = vmatpush1.bf16.msra.mxu0 0
        %2706 = vmatprep.subr.bf16.mxu0 0
        %2707 = vmatpush1.bf16.msra.mxu0 0
        %2708 = vmatprep.mubr.bf16.mxu0 0
        %2709 = vmatmul.mubr.bf16.gmra.mrb[0].mxu0 %v2518
        %v2710 = vpop.f32.mrb[0].mxu0
        %v2711 = vadd.f32 0.0, %v2710
        %v2712 = vpop.f32.mrb[0].mxu0
        %v2713 = vpop.f32.mrb[0].mxu0
        %v2714 = vpop.f32.mrb[0].mxu0
        %2715 = vdwg.mxu0
        %v2716 = vadd.f32 %v2244, %v2555
        %v2717 = vadd.f32 %v2245, %v2607
        %v2718 = vadd.f32 %v2246, %v2659
        %v2719 = vadd.f32 %v2247, %v2711
        %s2720 = scalar_lea.vmem %s9, 192
        %v2721 = vld [vmem:[%s2720] sm:$0xf]
        %v2722 = vld [vmem:[%s2720 + $0x4] sm:$0xf]
        %v2723 = vld [vmem:[%s2720 + $0x8] sm:$0xf]
        %v2724 = vld [vmem:[%s2720 + $0xc] sm:$0xf]
        %v2725 = vld [vmem:[%s2720 + $0x10] sm:$0xf]
        %v2726 = vld [vmem:[%s2720 + $0x14] sm:$0xf]
        %v2727 = vld [vmem:[%s2720 + $0x18] sm:$0xf]
        %v2728 = vld [vmem:[%s2720 + $0x1c] sm:$0xf]
        %v2729 = vld [vmem:[%s2720 + $0x20] sm:$0xf]
        %v2730 = vld [vmem:[%s2720 + $0x24] sm:$0xf]
        %v2731 = vld [vmem:[%s2720 + $0x28] sm:$0xf]
        %v2732 = vld [vmem:[%s2720 + $0x2c] sm:$0xf]
        %v2733 = vld [vmem:[%s2720 + $0x30] sm:$0xf]
        %v2734 = vld [vmem:[%s2720 + $0x34] sm:$0xf]
        %v2735 = vld [vmem:[%s2720 + $0x38] sm:$0xf]
        %v2736 = vld [vmem:[%s2720 + $0x3c] sm:$0xf]
        %v2737 = vrot.slane %v1582, 3
        %v2738 = vrot.slane %v1583, 2
        %v2739 = vsel %vm1123, %v2738, %v2737
        %v2740 = vpack.c.b16 %v2739, %v2739
        %v2745 = vunpack.c.l.b16 %v2721
        %v2746 = vunpack.c.l.b16 %v2722
        %v2747 = vunpack.c.l.b16 %v2723
        %v2748 = vunpack.c.l.b16 %v2724
        %v2749 = vpack.c.b16 %v2746, %v2745
        %v2750 = vpack.c.b16 %v2748, %v2747
        %v2754 = vsel %vm678, %v2740, 0
        %2756 = vmatprep.subr.bf16.mxu0 0
        %2757 = vmatpush1.bf16.msra.mxu0 %v2749
        %2758 = vmatprep.subr.bf16.mxu0 0
        %2759 = vmatpush1.bf16.msra.mxu0 %v2750
        %2760 = vmatprep.subr.bf16.mxu0 0
        %2761 = vmatpush1.bf16.msra.mxu0 0
        %2762 = vmatprep.subr.bf16.mxu0 0
        %2763 = vmatpush1.bf16.msra.mxu0 0
        %2764 = vmatprep.subr.bf16.mxu0 0
        %2765 = vmatpush1.bf16.msra.mxu0 0
        %2766 = vmatprep.subr.bf16.mxu0 0
        %2767 = vmatpush1.bf16.msra.mxu0 0
        %2768 = vmatprep.subr.bf16.mxu0 0
        %2769 = vmatpush1.bf16.msra.mxu0 0
        %2770 = vmatprep.subr.bf16.mxu0 0
        %2771 = vmatpush1.bf16.msra.mxu0 0
        %2772 = vmatprep.subr.bf16.mxu0 0
        %2773 = vmatpush1.bf16.msra.mxu0 0
        %2774 = vmatprep.subr.bf16.mxu0 0
        %2775 = vmatpush1.bf16.msra.mxu0 0
        %2776 = vmatprep.subr.bf16.mxu0 0
        %2777 = vmatpush1.bf16.msra.mxu0 0
        %2778 = vmatprep.subr.bf16.mxu0 0
        %2779 = vmatpush1.bf16.msra.mxu0 0
        %2780 = vmatprep.subr.bf16.mxu0 0
        %2781 = vmatpush1.bf16.msra.mxu0 0
        %2782 = vmatprep.subr.bf16.mxu0 0
        %2783 = vmatpush1.bf16.msra.mxu0 0
        %2784 = vmatprep.subr.bf16.mxu0 0
        %2785 = vmatpush1.bf16.msra.mxu0 0
        %2786 = vmatprep.subr.bf16.mxu0 0
        %2787 = vmatpush1.bf16.msra.mxu0 0
        %2788 = vmatprep.mubr.bf16.mxu0 0
        %2789 = vmatmul.mubr.bf16.gmra.mrb[0].mxu0 %v2754
        %v2790 = vpop.f32.mrb[0].mxu0
        %v2791 = vadd.f32 0.0, %v2790
        %v2792 = vpop.f32.mrb[0].mxu0
        %v2793 = vpop.f32.mrb[0].mxu0
        %v2794 = vpop.f32.mrb[0].mxu0
        %2795 = vdwg.mxu0
        %v2800 = vunpack.c.l.b16 %v2725
        %v2801 = vunpack.c.l.b16 %v2726
        %v2802 = vunpack.c.l.b16 %v2727
        %v2803 = vunpack.c.l.b16 %v2728
        %v2804 = vpack.c.b16 %v2801, %v2800
        %v2805 = vpack.c.b16 %v2803, %v2802
        %2808 = vmatprep.subr.bf16.mxu0 0
        %2809 = vmatpush1.bf16.msra.mxu0 %v2804
        %2810 = vmatprep.subr.bf16.mxu0 0
        %2811 = vmatpush1.bf16.msra.mxu0 %v2805
        %2812 = vmatprep.subr.bf16.mxu0 0
        %2813 = vmatpush1.bf16.msra.mxu0 0
        %2814 = vmatprep.subr.bf16.mxu0 0
        %2815 = vmatpush1.bf16.msra.mxu0 0
        %2816 = vmatprep.subr.bf16.mxu0 0
        %2817 = vmatpush1.bf16.msra.mxu0 0
        %2818 = vmatprep.subr.bf16.mxu0 0
        %2819 = vmatpush1.bf16.msra.mxu0 0
        %2820 = vmatprep.subr.bf16.mxu0 0
        %2821 = vmatpush1.bf16.msra.mxu0 0
        %2822 = vmatprep.subr.bf16.mxu0 0
        %2823 = vmatpush1.bf16.msra.mxu0 0
        %2824 = vmatprep.subr.bf16.mxu0 0
        %2825 = vmatpush1.bf16.msra.mxu0 0
        %2826 = vmatprep.subr.bf16.mxu0 0
        %2827 = vmatpush1.bf16.msra.mxu0 0
        %2828 = vmatprep.subr.bf16.mxu0 0
        %2829 = vmatpush1.bf16.msra.mxu0 0
        %2830 = vmatprep.subr.bf16.mxu0 0
        %2831 = vmatpush1.bf16.msra.mxu0 0
        %2832 = vmatprep.subr.bf16.mxu0 0
        %2833 = vmatpush1.bf16.msra.mxu0 0
        %2834 = vmatprep.subr.bf16.mxu0 0
        %2835 = vmatpush1.bf16.msra.mxu0 0
        %2836 = vmatprep.subr.bf16.mxu0 0
        %2837 = vmatpush1.bf16.msra.mxu0 0
        %2838 = vmatprep.subr.bf16.mxu0 0
        %2839 = vmatpush1.bf16.msra.mxu0 0
        %2840 = vmatprep.mubr.bf16.mxu0 0
        %2841 = vmatmul.mubr.bf16.gmra.mrb[0].mxu0 %v2754
        %v2842 = vpop.f32.mrb[0].mxu0
        %v2843 = vadd.f32 0.0, %v2842
        %v2844 = vpop.f32.mrb[0].mxu0
        %v2845 = vpop.f32.mrb[0].mxu0
        %v2846 = vpop.f32.mrb[0].mxu0
        %2847 = vdwg.mxu0
        %v2852 = vunpack.c.l.b16 %v2729
        %v2853 = vunpack.c.l.b16 %v2730
        %v2854 = vunpack.c.l.b16 %v2731
        %v2855 = vunpack.c.l.b16 %v2732
        %v2856 = vpack.c.b16 %v2853, %v2852
        %v2857 = vpack.c.b16 %v2855, %v2854
        %2860 = vmatprep.subr.bf16.mxu0 0
        %2861 = vmatpush1.bf16.msra.mxu0 %v2856
        %2862 = vmatprep.subr.bf16.mxu0 0
        %2863 = vmatpush1.bf16.msra.mxu0 %v2857
        %2864 = vmatprep.subr.bf16.mxu0 0
        %2865 = vmatpush1.bf16.msra.mxu0 0
        %2866 = vmatprep.subr.bf16.mxu0 0
        %2867 = vmatpush1.bf16.msra.mxu0 0
        %2868 = vmatprep.subr.bf16.mxu0 0
        %2869 = vmatpush1.bf16.msra.mxu0 0
        %2870 = vmatprep.subr.bf16.mxu0 0
        %2871 = vmatpush1.bf16.msra.mxu0 0
        %2872 = vmatprep.subr.bf16.mxu0 0
        %2873 = vmatpush1.bf16.msra.mxu0 0
        %2874 = vmatprep.subr.bf16.mxu0 0
        %2875 = vmatpush1.bf16.msra.mxu0 0
        %2876 = vmatprep.subr.bf16.mxu0 0
        %2877 = vmatpush1.bf16.msra.mxu0 0
        %2878 = vmatprep.subr.bf16.mxu0 0
        %2879 = vmatpush1.bf16.msra.mxu0 0
        %2880 = vmatprep.subr.bf16.mxu0 0
        %2881 = vmatpush1.bf16.msra.mxu0 0
        %2882 = vmatprep.subr.bf16.mxu0 0
        %2883 = vmatpush1.bf16.msra.mxu0 0
        %2884 = vmatprep.subr.bf16.mxu0 0
        %2885 = vmatpush1.bf16.msra.mxu0 0
        %2886 = vmatprep.subr.bf16.mxu0 0
        %2887 = vmatpush1.bf16.msra.mxu0 0
        %2888 = vmatprep.subr.bf16.mxu0 0
        %2889 = vmatpush1.bf16.msra.mxu0 0
        %2890 = vmatprep.subr.bf16.mxu0 0
        %2891 = vmatpush1.bf16.msra.mxu0 0
        %2892 = vmatprep.mubr.bf16.mxu0 0
        %2893 = vmatmul.mubr.bf16.gmra.mrb[0].mxu0 %v2754
        %v2894 = vpop.f32.mrb[0].mxu0
        %v2895 = vadd.f32 0.0, %v2894
        %v2896 = vpop.f32.mrb[0].mxu0
        %v2897 = vpop.f32.mrb[0].mxu0
        %v2898 = vpop.f32.mrb[0].mxu0
        %2899 = vdwg.mxu0
        %v2904 = vunpack.c.l.b16 %v2733
        %v2905 = vunpack.c.l.b16 %v2734
        %v2906 = vunpack.c.l.b16 %v2735
        %v2907 = vunpack.c.l.b16 %v2736
        %v2908 = vpack.c.b16 %v2905, %v2904
        %v2909 = vpack.c.b16 %v2907, %v2906
        %2912 = vmatprep.subr.bf16.mxu0 0
        %2913 = vmatpush1.bf16.msra.mxu0 %v2908
        %2914 = vmatprep.subr.bf16.mxu0 0
        %2915 = vmatpush1.bf16.msra.mxu0 %v2909
        %2916 = vmatprep.subr.bf16.mxu0 0
        %2917 = vmatpush1.bf16.msra.mxu0 0
        %2918 = vmatprep.subr.bf16.mxu0 0
        %2919 = vmatpush1.bf16.msra.mxu0 0
        %2920 = vmatprep.subr.bf16.mxu0 0
        %2921 = vmatpush1.bf16.msra.mxu0 0
        %2922 = vmatprep.subr.bf16.mxu0 0
        %2923 = vmatpush1.bf16.msra.mxu0 0
        %2924 = vmatprep.subr.bf16.mxu0 0
        %2925 = vmatpush1.bf16.msra.mxu0 0
        %2926 = vmatprep.subr.bf16.mxu0 0
        %2927 = vmatpush1.bf16.msra.mxu0 0
        %2928 = vmatprep.subr.bf16.mxu0 0
        %2929 = vmatpush1.bf16.msra.mxu0 0
        %2930 = vmatprep.subr.bf16.mxu0 0
        %2931 = vmatpush1.bf16.msra.mxu0 0
        %2932 = vmatprep.subr.bf16.mxu0 0
        %2933 = vmatpush1.bf16.msra.mxu0 0
        %2934 = vmatprep.subr.bf16.mxu0 0
        %2935 = vmatpush1.bf16.msra.mxu0 0
        %2936 = vmatprep.subr.bf16.mxu0 0
        %2937 = vmatpush1.bf16.msra.mxu0 0
        %2938 = vmatprep.subr.bf16.mxu0 0
        %2939 = vmatpush1.bf16.msra.mxu0 0
        %2940 = vmatprep.subr.bf16.mxu0 0
        %2941 = vmatpush1.bf16.msra.mxu0 0
        %2942 = vmatprep.subr.bf16.mxu0 0
        %2943 = vmatpush1.bf16.msra.mxu0 0
        %2944 = vmatprep.mubr.bf16.mxu0 0
        %2945 = vmatmul.mubr.bf16.gmra.mrb[0].mxu0 %v2754
        %v2946 = vpop.f32.mrb[0].mxu0
        %v2947 = vadd.f32 0.0, %v2946
        %v2948 = vpop.f32.mrb[0].mxu0
        %v2949 = vpop.f32.mrb[0].mxu0
        %v2950 = vpop.f32.mrb[0].mxu0
        %2951 = vdwg.mxu0
        %v2952 = vadd.f32 %v2480, %v2791
        %v2953 = vadd.f32 %v2481, %v2843
        %v2954 = vadd.f32 %v2482, %v2895
        %v2955 = vadd.f32 %v2483, %v2947
        %v2956 = vld [vmem:[%s8] sm:$0x1]
        %v2957 = vld [vmem:[%s8 + $0x1] sm:$0x1]
        %v2958 = vld [vmem:[%s8 + $0x2] sm:$0x1]
        %v2959 = vld [vmem:[%s8 + $0x3] sm:$0x1]
        %v2964 = vlaneseq
        %v2965 = vshrl.u32 %v2964, 7
        %v2966 = vsub.s32 0, %v2965
        %v2967 = vrot.slane %v2956, %v2966
        %v2968 = vlaneseq
        %v2969 = vshrl.u32 %v2968, 7
        %v2970 = vsub.s32 0, %v2969
        %v2971 = vrot.slane %v2957, %v2970
        %v2972 = vlaneseq
        %v2973 = vshrl.u32 %v2972, 7
        %v2974 = vsub.s32 0, %v2973
        %v2975 = vrot.slane %v2958, %v2974
        %v2976 = vlaneseq
        %v2977 = vshrl.u32 %v2976, 7
        %v2978 = vsub.s32 0, %v2977
        %v2979 = vrot.slane %v2959, %v2978
        %v2984 = vadd.f32 %v2716, %v2967
        %v2985 = vadd.f32 %v2717, %v2971
        %v2986 = vadd.f32 %v2718, %v2975
        %v2987 = vadd.f32 %v2719, %v2979
        %v2988 = vld [vmem:[%s10] sm:$0x1]
        %v2989 = vld [vmem:[%s10 + $0x1] sm:$0x1]
        %v2990 = vld [vmem:[%s10 + $0x2] sm:$0x1]
        %v2991 = vld [vmem:[%s10 + $0x3] sm:$0x1]
        %v2996 = vlaneseq
        %v2997 = vshrl.u32 %v2996, 7
        %v2998 = vsub.s32 0, %v2997
        %v2999 = vrot.slane %v2988, %v2998
        %v3000 = vlaneseq
        %v3001 = vshrl.u32 %v3000, 7
        %v3002 = vsub.s32 0, %v3001
        %v3003 = vrot.slane %v2989, %v3002
        %v3004 = vlaneseq
        %v3005 = vshrl.u32 %v3004, 7
        %v3006 = vsub.s32 0, %v3005
        %v3007 = vrot.slane %v2990, %v3006
        %v3008 = vlaneseq
        %v3009 = vshrl.u32 %v3008, 7
        %v3010 = vsub.s32 0, %v3009
        %v3011 = vrot.slane %v2991, %v3010
        %v3016 = vadd.f32 %v2952, %v2999
        %v3017 = vadd.f32 %v2953, %v3003
        %v3018 = vadd.f32 %v2954, %v3007
        %v3019 = vadd.f32 %v2955, %v3011
        %v3020 = vlaneseq
        %v3021 = vshrl.u32 %v3020, 7
        %v3022 = vlaneseq
        %v3023 = vand.u32 %v3022, 127
        %v3024 = vmul.u32 %v3023, 4
        %vm3025 = vcmp.le.s32.totalorder %v3024, %v3021
        %v3026 = vpack.c.bf16 %v876, %v876
        %v3027 = vpack.c.bf16 %v928, %v928
        %v3028 = vpack.c.bf16 %v980, %v980
        %v3029 = vpack.c.bf16 %v1032, %v1032
        %v3030 = vpack.c.bf16 %v2984, %v2984
        %v3031 = vpack.c.bf16 %v2985, %v2985
        %v3032 = vpack.c.bf16 %v2986, %v2986
        %v3033 = vpack.c.bf16 %v2987, %v2987
        %vm3034 = vcmask 64512
        %v3036 = vsel %vm3034, %v3026, 0
        %v3039 = vsel %vm3034, %v3030, 0
        %3041 = vmatprep.subr.bf16.mxu0 0
        %3042 = vmatpush1.bf16.xpose.msra.mxu0 %v3039
        %3043 = vmatprep.subr.bf16.mxu0 0
        %3044 = vmatpush1.bf16.xpose.msra.mxu0 0
        %3045 = vmatprep.subr.bf16.mxu0 0
        %3046 = vmatpush1.bf16.xpose.msra.mxu0 0
        %3047 = vmatprep.subr.bf16.mxu0 0
        %3048 = vmatpush1.bf16.xpose.msra.mxu0 0
        %3049 = vmatprep.subr.bf16.mxu0 0
        %3050 = vmatpush1.bf16.xpose.msra.mxu0 0
        %3051 = vmatprep.subr.bf16.mxu0 0
        %3052 = vmatpush1.bf16.xpose.msra.mxu0 0
        %3053 = vmatprep.subr.bf16.mxu0 0
        %3054 = vmatpush1.bf16.xpose.msra.mxu0 0
        %3055 = vmatprep.subr.bf16.mxu0 0
        %3056 = vmatpush1.bf16.xpose.msra.mxu0 0
        %3057 = vmatprep.subr.bf16.mxu0 0
        %3058 = vmatpush1.bf16.xpose.msra.mxu0 0
        %3059 = vmatprep.subr.bf16.mxu0 0
        %3060 = vmatpush1.bf16.xpose.msra.mxu0 0
        %3061 = vmatprep.subr.bf16.mxu0 0
        %3062 = vmatpush1.bf16.xpose.msra.mxu0 0
        %3063 = vmatprep.subr.bf16.mxu0 0
        %3064 = vmatpush1.bf16.xpose.msra.mxu0 0
        %3065 = vmatprep.subr.bf16.mxu0 0
        %3066 = vmatpush1.bf16.xpose.msra.mxu0 0
        %3067 = vmatprep.subr.bf16.mxu0 0
        %3068 = vmatpush1.bf16.xpose.msra.mxu0 0
        %3069 = vmatprep.subr.bf16.mxu0 0
        %3070 = vmatpush1.bf16.xpose.msra.mxu0 0
        %3071 = vmatprep.subr.bf16.mxu0 0
        %3072 = vmatpush1.bf16.xpose.msra.mxu0 0
        %3073 = vmatprep.mubr.bf16.mxu0 0
        %3074 = vmatmul.mubr.bf16.gmra.mrb[0].mxu0 %v3036
        %v3075 = vpop.f32.mrb[0].mxu0
        %v3076 = vadd.f32 0.0, %v3075
        %v3077 = vpop.f32.mrb[0].mxu0
        %v3078 = vpop.f32.mrb[0].mxu0
        %v3079 = vpop.f32.mrb[0].mxu0
        %3080 = vdwg.mxu0
        %v3082 = vsel %vm3034, %v3027, 0
        %v3085 = vsel %vm3034, %v3031, 0
        %3087 = vmatprep.subr.bf16.mxu0 0
        %3088 = vmatpush1.bf16.xpose.msra.mxu0 %v3085
        %3089 = vmatprep.subr.bf16.mxu0 0
        %3090 = vmatpush1.bf16.xpose.msra.mxu0 0
        %3091 = vmatprep.subr.bf16.mxu0 0
        %3092 = vmatpush1.bf16.xpose.msra.mxu0 0
        %3093 = vmatprep.subr.bf16.mxu0 0
        %3094 = vmatpush1.bf16.xpose.msra.mxu0 0
        %3095 = vmatprep.subr.bf16.mxu0 0
        %3096 = vmatpush1.bf16.xpose.msra.mxu0 0
        %3097 = vmatprep.subr.bf16.mxu0 0
        %3098 = vmatpush1.bf16.xpose.msra.mxu0 0
        %3099 = vmatprep.subr.bf16.mxu0 0
        %3100 = vmatpush1.bf16.xpose.msra.mxu0 0
        %3101 = vmatprep.subr.bf16.mxu0 0
        %3102 = vmatpush1.bf16.xpose.msra.mxu0 0
        %3103 = vmatprep.subr.bf16.mxu0 0
        %3104 = vmatpush1.bf16.xpose.msra.mxu0 0
        %3105 = vmatprep.subr.bf16.mxu0 0
        %3106 = vmatpush1.bf16.xpose.msra.mxu0 0
        %3107 = vmatprep.subr.bf16.mxu0 0
        %3108 = vmatpush1.bf16.xpose.msra.mxu0 0
        %3109 = vmatprep.subr.bf16.mxu0 0
        %3110 = vmatpush1.bf16.xpose.msra.mxu0 0
        %3111 = vmatprep.subr.bf16.mxu0 0
        %3112 = vmatpush1.bf16.xpose.msra.mxu0 0
        %3113 = vmatprep.subr.bf16.mxu0 0
        %3114 = vmatpush1.bf16.xpose.msra.mxu0 0
        %3115 = vmatprep.subr.bf16.mxu0 0
        %3116 = vmatpush1.bf16.xpose.msra.mxu0 0
        %3117 = vmatprep.subr.bf16.mxu0 0
        %3118 = vmatpush1.bf16.xpose.msra.mxu0 0
        %3119 = vmatprep.mubr.bf16.mxu0 0
        %3120 = vmatmul.mubr.bf16.gmra.mrb[0].mxu0 %v3082
        %v3121 = vpop.f32.mrb[0].mxu0
        %v3122 = vadd.f32 0.0, %v3121
        %v3123 = vpop.f32.mrb[0].mxu0
        %v3124 = vpop.f32.mrb[0].mxu0
        %v3125 = vpop.f32.mrb[0].mxu0
        %3126 = vdwg.mxu0
        %v3128 = vsel %vm3034, %v3028, 0
        %v3131 = vsel %vm3034, %v3032, 0
        %3133 = vmatprep.subr.bf16.mxu0 0
        %3134 = vmatpush1.bf16.xpose.msra.mxu0 %v3131
        %3135 = vmatprep.subr.bf16.mxu0 0
        %3136 = vmatpush1.bf16.xpose.msra.mxu0 0
        %3137 = vmatprep.subr.bf16.mxu0 0
        %3138 = vmatpush1.bf16.xpose.msra.mxu0 0
        %3139 = vmatprep.subr.bf16.mxu0 0
        %3140 = vmatpush1.bf16.xpose.msra.mxu0 0
        %3141 = vmatprep.subr.bf16.mxu0 0
        %3142 = vmatpush1.bf16.xpose.msra.mxu0 0
        %3143 = vmatprep.subr.bf16.mxu0 0
        %3144 = vmatpush1.bf16.xpose.msra.mxu0 0
        %3145 = vmatprep.subr.bf16.mxu0 0
        %3146 = vmatpush1.bf16.xpose.msra.mxu0 0
        %3147 = vmatprep.subr.bf16.mxu0 0
        %3148 = vmatpush1.bf16.xpose.msra.mxu0 0
        %3149 = vmatprep.subr.bf16.mxu0 0
        %3150 = vmatpush1.bf16.xpose.msra.mxu0 0
        %3151 = vmatprep.subr.bf16.mxu0 0
        %3152 = vmatpush1.bf16.xpose.msra.mxu0 0
        %3153 = vmatprep.subr.bf16.mxu0 0
        %3154 = vmatpush1.bf16.xpose.msra.mxu0 0
        %3155 = vmatprep.subr.bf16.mxu0 0
        %3156 = vmatpush1.bf16.xpose.msra.mxu0 0
        %3157 = vmatprep.subr.bf16.mxu0 0
        %3158 = vmatpush1.bf16.xpose.msra.mxu0 0
        %3159 = vmatprep.subr.bf16.mxu0 0
        %3160 = vmatpush1.bf16.xpose.msra.mxu0 0
        %3161 = vmatprep.subr.bf16.mxu0 0
        %3162 = vmatpush1.bf16.xpose.msra.mxu0 0
        %3163 = vmatprep.subr.bf16.mxu0 0
        %3164 = vmatpush1.bf16.xpose.msra.mxu0 0
        %3165 = vmatprep.mubr.bf16.mxu0 0
        %3166 = vmatmul.mubr.bf16.gmra.mrb[0].mxu0 %v3128
        %v3167 = vpop.f32.mrb[0].mxu0
        %v3168 = vadd.f32 0.0, %v3167
        %v3169 = vpop.f32.mrb[0].mxu0
        %v3170 = vpop.f32.mrb[0].mxu0
        %v3171 = vpop.f32.mrb[0].mxu0
        %3172 = vdwg.mxu0
        %v3174 = vsel %vm3034, %v3029, 0
        %v3177 = vsel %vm3034, %v3033, 0
        %3179 = vmatprep.subr.bf16.mxu0 0
        %3180 = vmatpush1.bf16.xpose.msra.mxu0 %v3177
        %3181 = vmatprep.subr.bf16.mxu0 0
        %3182 = vmatpush1.bf16.xpose.msra.mxu0 0
        %3183 = vmatprep.subr.bf16.mxu0 0
        %3184 = vmatpush1.bf16.xpose.msra.mxu0 0
        %3185 = vmatprep.subr.bf16.mxu0 0
        %3186 = vmatpush1.bf16.xpose.msra.mxu0 0
        %3187 = vmatprep.subr.bf16.mxu0 0
        %3188 = vmatpush1.bf16.xpose.msra.mxu0 0
        %3189 = vmatprep.subr.bf16.mxu0 0
        %3190 = vmatpush1.bf16.xpose.msra.mxu0 0
        %3191 = vmatprep.subr.bf16.mxu0 0
        %3192 = vmatpush1.bf16.xpose.msra.mxu0 0
        %3193 = vmatprep.subr.bf16.mxu0 0
        %3194 = vmatpush1.bf16.xpose.msra.mxu0 0
        %3195 = vmatprep.subr.bf16.mxu0 0
        %3196 = vmatpush1.bf16.xpose.msra.mxu0 0
        %3197 = vmatprep.subr.bf16.mxu0 0
        %3198 = vmatpush1.bf16.xpose.msra.mxu0 0
        %3199 = vmatprep.subr.bf16.mxu0 0
        %3200 = vmatpush1.bf16.xpose.msra.mxu0 0
        %3201 = vmatprep.subr.bf16.mxu0 0
        %3202 = vmatpush1.bf16.xpose.msra.mxu0 0
        %3203 = vmatprep.subr.bf16.mxu0 0
        %3204 = vmatpush1.bf16.xpose.msra.mxu0 0
        %3205 = vmatprep.subr.bf16.mxu0 0
        %3206 = vmatpush1.bf16.xpose.msra.mxu0 0
        %3207 = vmatprep.subr.bf16.mxu0 0
        %3208 = vmatpush1.bf16.xpose.msra.mxu0 0
        %3209 = vmatprep.subr.bf16.mxu0 0
        %3210 = vmatpush1.bf16.xpose.msra.mxu0 0
        %3211 = vmatprep.mubr.bf16.mxu0 0
        %3212 = vmatmul.mubr.bf16.gmra.mrb[0].mxu0 %v3174
        %v3213 = vpop.f32.mrb[0].mxu0
        %v3214 = vadd.f32 0.0, %v3213
        %v3215 = vpop.f32.mrb[0].mxu0
        %v3216 = vpop.f32.mrb[0].mxu0
        %v3217 = vpop.f32.mrb[0].mxu0
        %3218 = vdwg.mxu0
        %v3219 = vmul.f32 %v3076, 0.35355338
        %v3220 = vmul.f32 %v3122, 0.35355338
        %v3221 = vmul.f32 %v3168, 0.35355338
        %v3222 = vmul.f32 %v3214, 0.35355338
        %v3223 = vsel %vm3025, 1, 0
        %vm3224 = vcmp.eq.s32.totalorder %v3223, 1
        %v3225 = vsel %vm3224, %v3219, -1e+09
        %v3226 = vsel %vm3224, %v3220, -1e+09
        %v3227 = vsel %vm3224, %v3221, -1e+09
        %v3228 = vsel %vm3224, %v3222, -1e+09
        %vm3229 = vcmask 15360
        %v3230 = vsel %vm3229, %v3225, -inf
        %3231 = vmax.xlane.f32.xlu0 %v3230
        %v3232 = vpop.xlane.xlu0 %3231
        %v3233 = vsel %vm3229, %v3226, -inf
        %3234 = vmax.xlane.f32.xlu0 %v3233
        %v3235 = vpop.xlane.xlu0 %3234
        %v3236 = vsel %vm3229, %v3227, -inf
        %3237 = vmax.xlane.f32.xlu0 %v3236
        %v3238 = vpop.xlane.xlu0 %3237
        %v3239 = vsel %vm3229, %v3228, -inf
        %3240 = vmax.xlane.f32.xlu0 %v3239
        %v3241 = vpop.xlane.xlu0 %3240
        %v3242 = vsub.f32 %v3225, %v3232
        %v3243 = vsub.f32 %v3226, %v3235
        %v3244 = vsub.f32 %v3227, %v3238
        %v3245 = vsub.f32 %v3228, %v3241
        %v3246 = vmul.f32 %v3242, 1.442695
        %v3247 = vpow.pop %v3246
        %v3248 = vmul.f32 %v3243, 1.442695
        %v3249 = vpow.pop %v3248
        %v3250 = vmul.f32 %v3244, 1.442695
        %v3251 = vpow.pop %v3250
        %v3252 = vmul.f32 %v3245, 1.442695
        %v3253 = vpow.pop %v3252
        %v3254 = vsel %vm3229, %v3247, 0.0
        %3255 = vadd.xlane.f32.xlu0 %v3254
        %v3256 = vpop.xlane.xlu0 %3255
        %v3257 = vsel %vm3229, %v3249, 0.0
        %3258 = vadd.xlane.f32.xlu0 %v3257
        %v3259 = vpop.xlane.xlu0 %3258
        %v3260 = vsel %vm3229, %v3251, 0.0
        %3261 = vadd.xlane.f32.xlu0 %v3260
        %v3262 = vpop.xlane.xlu0 %3261
        %v3263 = vsel %vm3229, %v3253, 0.0
        %3264 = vadd.xlane.f32.xlu0 %v3263
        %v3265 = vpop.xlane.xlu0 %3264
        %v3266 = vpack.c.bf16 %v3247, %v3247
        %v3267 = vpack.c.bf16 %v3249, %v3249
        %v3268 = vpack.c.bf16 %v3251, %v3251
        %v3269 = vpack.c.bf16 %v3253, %v3253
        %v3270 = vpack.c.bf16 %v3016, %v3016
        %v3271 = vpack.c.bf16 %v3017, %v3017
        %v3272 = vpack.c.bf16 %v3018, %v3018
        %v3273 = vpack.c.bf16 %v3019, %v3019
        %v3275 = vsel %vm3229, %v3266, 0
        %vm3277 = vcmask 1040384
        %v3279 = vsel %vm3277, %v3270, 0
        %3281 = vmatprep.subr.bf16.mxu0 0
        %3282 = vmatpush1.bf16.msra.mxu0 %v3279
        %3283 = vmatprep.subr.bf16.mxu0 0
        %3284 = vmatpush1.bf16.msra.mxu0 0
        %3285 = vmatprep.subr.bf16.mxu0 0
        %3286 = vmatpush1.bf16.msra.mxu0 0
        %3287 = vmatprep.subr.bf16.mxu0 0
        %3288 = vmatpush1.bf16.msra.mxu0 0
        %3289 = vmatprep.subr.bf16.mxu0 0
        %3290 = vmatpush1.bf16.msra.mxu0 0
        %3291 = vmatprep.subr.bf16.mxu0 0
        %3292 = vmatpush1.bf16.msra.mxu0 0
        %3293 = vmatprep.subr.bf16.mxu0 0
        %3294 = vmatpush1.bf16.msra.mxu0 0
        %3295 = vmatprep.subr.bf16.mxu0 0
        %3296 = vmatpush1.bf16.msra.mxu0 0
        %3297 = vmatprep.subr.bf16.mxu0 0
        %3298 = vmatpush1.bf16.msra.mxu0 0
        %3299 = vmatprep.subr.bf16.mxu0 0
        %3300 = vmatpush1.bf16.msra.mxu0 0
        %3301 = vmatprep.subr.bf16.mxu0 0
        %3302 = vmatpush1.bf16.msra.mxu0 0
        %3303 = vmatprep.subr.bf16.mxu0 0
        %3304 = vmatpush1.bf16.msra.mxu0 0
        %3305 = vmatprep.subr.bf16.mxu0 0
        %3306 = vmatpush1.bf16.msra.mxu0 0
        %3307 = vmatprep.subr.bf16.mxu0 0
        %3308 = vmatpush1.bf16.msra.mxu0 0
        %3309 = vmatprep.subr.bf16.mxu0 0
        %3310 = vmatpush1.bf16.msra.mxu0 0
        %3311 = vmatprep.subr.bf16.mxu0 0
        %3312 = vmatpush1.bf16.msra.mxu0 0
        %3313 = vmatprep.mubr.bf16.mxu0 0
        %3314 = vmatmul.mubr.bf16.gmra.mrb[0].mxu0 %v3275
        %v3315 = vpop.f32.mrb[0].mxu0
        %v3316 = vadd.f32 0.0, %v3315
        %v3317 = vpop.f32.mrb[0].mxu0
        %v3318 = vpop.f32.mrb[0].mxu0
        %v3319 = vpop.f32.mrb[0].mxu0
        %3320 = vdwg.mxu0
        %v3322 = vsel %vm3229, %v3267, 0
        %v3325 = vsel %vm3277, %v3271, 0
        %3327 = vmatprep.subr.bf16.mxu0 0
        %3328 = vmatpush1.bf16.msra.mxu0 %v3325
        %3329 = vmatprep.subr.bf16.mxu0 0
        %3330 = vmatpush1.bf16.msra.mxu0 0
        %3331 = vmatprep.subr.bf16.mxu0 0
        %3332 = vmatpush1.bf16.msra.mxu0 0
        %3333 = vmatprep.subr.bf16.mxu0 0
        %3334 = vmatpush1.bf16.msra.mxu0 0
        %3335 = vmatprep.subr.bf16.mxu0 0
        %3336 = vmatpush1.bf16.msra.mxu0 0
        %3337 = vmatprep.subr.bf16.mxu0 0
        %3338 = vmatpush1.bf16.msra.mxu0 0
        %3339 = vmatprep.subr.bf16.mxu0 0
        %3340 = vmatpush1.bf16.msra.mxu0 0
        %3341 = vmatprep.subr.bf16.mxu0 0
        %3342 = vmatpush1.bf16.msra.mxu0 0
        %3343 = vmatprep.subr.bf16.mxu0 0
        %3344 = vmatpush1.bf16.msra.mxu0 0
        %3345 = vmatprep.subr.bf16.mxu0 0
        %3346 = vmatpush1.bf16.msra.mxu0 0
        %3347 = vmatprep.subr.bf16.mxu0 0
        %3348 = vmatpush1.bf16.msra.mxu0 0
        %3349 = vmatprep.subr.bf16.mxu0 0
        %3350 = vmatpush1.bf16.msra.mxu0 0
        %3351 = vmatprep.subr.bf16.mxu0 0
        %3352 = vmatpush1.bf16.msra.mxu0 0
        %3353 = vmatprep.subr.bf16.mxu0 0
        %3354 = vmatpush1.bf16.msra.mxu0 0
        %3355 = vmatprep.subr.bf16.mxu0 0
        %3356 = vmatpush1.bf16.msra.mxu0 0
        %3357 = vmatprep.subr.bf16.mxu0 0
        %3358 = vmatpush1.bf16.msra.mxu0 0
        %3359 = vmatprep.mubr.bf16.mxu0 0
        %3360 = vmatmul.mubr.bf16.gmra.mrb[0].mxu0 %v3322
        %v3361 = vpop.f32.mrb[0].mxu0
        %v3362 = vadd.f32 0.0, %v3361
        %v3363 = vpop.f32.mrb[0].mxu0
        %v3364 = vpop.f32.mrb[0].mxu0
        %v3365 = vpop.f32.mrb[0].mxu0
        %3366 = vdwg.mxu0
        %v3368 = vsel %vm3229, %v3268, 0
        %v3371 = vsel %vm3277, %v3272, 0
        %3373 = vmatprep.subr.bf16.mxu0 0
        %3374 = vmatpush1.bf16.msra.mxu0 %v3371
        %3375 = vmatprep.subr.bf16.mxu0 0
        %3376 = vmatpush1.bf16.msra.mxu0 0
        %3377 = vmatprep.subr.bf16.mxu0 0
        %3378 = vmatpush1.bf16.msra.mxu0 0
        %3379 = vmatprep.subr.bf16.mxu0 0
        %3380 = vmatpush1.bf16.msra.mxu0 0
        %3381 = vmatprep.subr.bf16.mxu0 0
        %3382 = vmatpush1.bf16.msra.mxu0 0
        %3383 = vmatprep.subr.bf16.mxu0 0
        %3384 = vmatpush1.bf16.msra.mxu0 0
        %3385 = vmatprep.subr.bf16.mxu0 0
        %3386 = vmatpush1.bf16.msra.mxu0 0
        %3387 = vmatprep.subr.bf16.mxu0 0
        %3388 = vmatpush1.bf16.msra.mxu0 0
        %3389 = vmatprep.subr.bf16.mxu0 0
        %3390 = vmatpush1.bf16.msra.mxu0 0
        %3391 = vmatprep.subr.bf16.mxu0 0
        %3392 = vmatpush1.bf16.msra.mxu0 0
        %3393 = vmatprep.subr.bf16.mxu0 0
        %3394 = vmatpush1.bf16.msra.mxu0 0
        %3395 = vmatprep.subr.bf16.mxu0 0
        %3396 = vmatpush1.bf16.msra.mxu0 0
        %3397 = vmatprep.subr.bf16.mxu0 0
        %3398 = vmatpush1.bf16.msra.mxu0 0
        %3399 = vmatprep.subr.bf16.mxu0 0
        %3400 = vmatpush1.bf16.msra.mxu0 0
        %3401 = vmatprep.subr.bf16.mxu0 0
        %3402 = vmatpush1.bf16.msra.mxu0 0
        %3403 = vmatprep.subr.bf16.mxu0 0
        %3404 = vmatpush1.bf16.msra.mxu0 0
        %3405 = vmatprep.mubr.bf16.mxu0 0
        %3406 = vmatmul.mubr.bf16.gmra.mrb[0].mxu0 %v3368
        %v3407 = vpop.f32.mrb[0].mxu0
        %v3408 = vadd.f32 0.0, %v3407
        %v3409 = vpop.f32.mrb[0].mxu0
        %v3410 = vpop.f32.mrb[0].mxu0
        %v3411 = vpop.f32.mrb[0].mxu0
        %3412 = vdwg.mxu0
        %v3414 = vsel %vm3229, %v3269, 0
        %v3417 = vsel %vm3277, %v3273, 0
        %3419 = vmatprep.subr.bf16.mxu0 0
        %3420 = vmatpush1.bf16.msra.mxu0 %v3417
        %3421 = vmatprep.subr.bf16.mxu0 0
        %3422 = vmatpush1.bf16.msra.mxu0 0
        %3423 = vmatprep.subr.bf16.mxu0 0
        %3424 = vmatpush1.bf16.msra.mxu0 0
        %3425 = vmatprep.subr.bf16.mxu0 0
        %3426 = vmatpush1.bf16.msra.mxu0 0
        %3427 = vmatprep.subr.bf16.mxu0 0
        %3428 = vmatpush1.bf16.msra.mxu0 0
        %3429 = vmatprep.subr.bf16.mxu0 0
        %3430 = vmatpush1.bf16.msra.mxu0 0
        %3431 = vmatprep.subr.bf16.mxu0 0
        %3432 = vmatpush1.bf16.msra.mxu0 0
        %3433 = vmatprep.subr.bf16.mxu0 0
        %3434 = vmatpush1.bf16.msra.mxu0 0
        %3435 = vmatprep.subr.bf16.mxu0 0
        %3436 = vmatpush1.bf16.msra.mxu0 0
        %3437 = vmatprep.subr.bf16.mxu0 0
        %3438 = vmatpush1.bf16.msra.mxu0 0
        %3439 = vmatprep.subr.bf16.mxu0 0
        %3440 = vmatpush1.bf16.msra.mxu0 0
        %3441 = vmatprep.subr.bf16.mxu0 0
        %3442 = vmatpush1.bf16.msra.mxu0 0
        %3443 = vmatprep.subr.bf16.mxu0 0
        %3444 = vmatpush1.bf16.msra.mxu0 0
        %3445 = vmatprep.subr.bf16.mxu0 0
        %3446 = vmatpush1.bf16.msra.mxu0 0
        %3447 = vmatprep.subr.bf16.mxu0 0
        %3448 = vmatpush1.bf16.msra.mxu0 0
        %3449 = vmatprep.subr.bf16.mxu0 0
        %3450 = vmatpush1.bf16.msra.mxu0 0
        %3451 = vmatprep.mubr.bf16.mxu0 0
        %3452 = vmatmul.mubr.bf16.gmra.mrb[0].mxu0 %v3414
        %v3453 = vpop.f32.mrb[0].mxu0
        %v3454 = vadd.f32 0.0, %v3453
        %v3455 = vpop.f32.mrb[0].mxu0
        %v3456 = vpop.f32.mrb[0].mxu0
        %v3457 = vpop.f32.mrb[0].mxu0
        %3458 = vdwg.mxu0
        %v3459 = vrcp.pop %v3256
        %v3460 = vrcp.pop %v3259
        %v3461 = vrcp.pop %v3262
        %v3462 = vrcp.pop %v3265
        %v3463 = vmul.f32 %v3316, %v3459
        %v3464 = vmul.f32 %v3362, %v3460
        %v3465 = vmul.f32 %v3408, %v3461
        %v3466 = vmul.f32 %v3454, %v3462
        %v3467 = vpack.c.bf16 %v3463, %v3463
        %v3468 = vpack.c.bf16 %v3464, %v3464
        %v3469 = vpack.c.bf16 %v3465, %v3465
        %v3470 = vpack.c.bf16 %v3466, %v3466
        %v3471 = vld [vmem:[%s11] sm:$0xf]
        %v3472 = vld [vmem:[%s11 + $0x4] sm:$0xf]
        %v3473 = vld [vmem:[%s11 + $0x8] sm:$0xf]
        %v3474 = vld [vmem:[%s11 + $0xc] sm:$0xf]
        %v3476 = vsel %vm3034, %v3467, 0
        %vm3478 = vcmask 1043456
        %v3480 = vsel %vm3478, %v3471, 0
        %3482 = vmatprep.subr.bf16.mxu0 0
        %3483 = vmatpush1.bf16.msra.mxu0 %v3480
        %3484 = vmatprep.subr.bf16.mxu0 0
        %3485 = vmatpush1.bf16.msra.mxu0 0
        %3486 = vmatprep.subr.bf16.mxu0 0
        %3487 = vmatpush1.bf16.msra.mxu0 0
        %3488 = vmatprep.subr.bf16.mxu0 0
        %3489 = vmatpush1.bf16.msra.mxu0 0
        %3490 = vmatprep.subr.bf16.mxu0 0
        %3491 = vmatpush1.bf16.msra.mxu0 0
        %3492 = vmatprep.subr.bf16.mxu0 0
        %3493 = vmatpush1.bf16.msra.mxu0 0
        %3494 = vmatprep.subr.bf16.mxu0 0
        %3495 = vmatpush1.bf16.msra.mxu0 0
        %3496 = vmatprep.subr.bf16.mxu0 0
        %3497 = vmatpush1.bf16.msra.mxu0 0
        %3498 = vmatprep.subr.bf16.mxu0 0
        %3499 = vmatpush1.bf16.msra.mxu0 0
        %3500 = vmatprep.subr.bf16.mxu0 0
        %3501 = vmatpush1.bf16.msra.mxu0 0
        %3502 = vmatprep.subr.bf16.mxu0 0
        %3503 = vmatpush1.bf16.msra.mxu0 0
        %3504 = vmatprep.subr.bf16.mxu0 0
        %3505 = vmatpush1.bf16.msra.mxu0 0
        %3506 = vmatprep.subr.bf16.mxu0 0
        %3507 = vmatpush1.bf16.msra.mxu0 0
        %3508 = vmatprep.subr.bf16.mxu0 0
        %3509 = vmatpush1.bf16.msra.mxu0 0
        %3510 = vmatprep.subr.bf16.mxu0 0
        %3511 = vmatpush1.bf16.msra.mxu0 0
        %3512 = vmatprep.subr.bf16.mxu0 0
        %3513 = vmatpush1.bf16.msra.mxu0 0
        %3514 = vmatprep.mubr.bf16.mxu0 0
        %3515 = vmatmul.mubr.bf16.gmra.mrb[0].mxu0 %v3476
        %v3516 = vpop.f32.mrb[0].mxu0
        %v3517 = vadd.f32 0.0, %v3516
        %v3518 = vpop.f32.mrb[0].mxu0
        %v3519 = vpop.f32.mrb[0].mxu0
        %v3520 = vpop.f32.mrb[0].mxu0
        %3521 = vdwg.mxu0
        %v3523 = vsel %vm3034, %v3468, 0
        %v3526 = vsel %vm3478, %v3472, 0
        %3528 = vmatprep.subr.bf16.mxu0 0
        %3529 = vmatpush1.bf16.msra.mxu0 %v3526
        %3530 = vmatprep.subr.bf16.mxu0 0
        %3531 = vmatpush1.bf16.msra.mxu0 0
        %3532 = vmatprep.subr.bf16.mxu0 0
        %3533 = vmatpush1.bf16.msra.mxu0 0
        %3534 = vmatprep.subr.bf16.mxu0 0
        %3535 = vmatpush1.bf16.msra.mxu0 0
        %3536 = vmatprep.subr.bf16.mxu0 0
        %3537 = vmatpush1.bf16.msra.mxu0 0
        %3538 = vmatprep.subr.bf16.mxu0 0
        %3539 = vmatpush1.bf16.msra.mxu0 0
        %3540 = vmatprep.subr.bf16.mxu0 0
        %3541 = vmatpush1.bf16.msra.mxu0 0
        %3542 = vmatprep.subr.bf16.mxu0 0
        %3543 = vmatpush1.bf16.msra.mxu0 0
        %3544 = vmatprep.subr.bf16.mxu0 0
        %3545 = vmatpush1.bf16.msra.mxu0 0
        %3546 = vmatprep.subr.bf16.mxu0 0
        %3547 = vmatpush1.bf16.msra.mxu0 0
        %3548 = vmatprep.subr.bf16.mxu0 0
        %3549 = vmatpush1.bf16.msra.mxu0 0
        %3550 = vmatprep.subr.bf16.mxu0 0
        %3551 = vmatpush1.bf16.msra.mxu0 0
        %3552 = vmatprep.subr.bf16.mxu0 0
        %3553 = vmatpush1.bf16.msra.mxu0 0
        %3554 = vmatprep.subr.bf16.mxu0 0
        %3555 = vmatpush1.bf16.msra.mxu0 0
        %3556 = vmatprep.subr.bf16.mxu0 0
        %3557 = vmatpush1.bf16.msra.mxu0 0
        %3558 = vmatprep.subr.bf16.mxu0 0
        %3559 = vmatpush1.bf16.msra.mxu0 0
        %3560 = vmatprep.mubr.bf16.mxu0 0
        %3561 = vmatmul.mubr.bf16.gmra.mrb[0].mxu0 %v3523
        %v3562 = vpop.f32.mrb[0].mxu0
        %v3563 = vadd.f32 0.0, %v3562
        %v3564 = vpop.f32.mrb[0].mxu0
        %v3565 = vpop.f32.mrb[0].mxu0
        %v3566 = vpop.f32.mrb[0].mxu0
        %3567 = vdwg.mxu0
        %v3569 = vsel %vm3034, %v3469, 0
        %v3572 = vsel %vm3478, %v3473, 0
        %3574 = vmatprep.subr.bf16.mxu0 0
        %3575 = vmatpush1.bf16.msra.mxu0 %v3572
        %3576 = vmatprep.subr.bf16.mxu0 0
        %3577 = vmatpush1.bf16.msra.mxu0 0
        %3578 = vmatprep.subr.bf16.mxu0 0
        %3579 = vmatpush1.bf16.msra.mxu0 0
        %3580 = vmatprep.subr.bf16.mxu0 0
        %3581 = vmatpush1.bf16.msra.mxu0 0
        %3582 = vmatprep.subr.bf16.mxu0 0
        %3583 = vmatpush1.bf16.msra.mxu0 0
        %3584 = vmatprep.subr.bf16.mxu0 0
        %3585 = vmatpush1.bf16.msra.mxu0 0
        %3586 = vmatprep.subr.bf16.mxu0 0
        %3587 = vmatpush1.bf16.msra.mxu0 0
        %3588 = vmatprep.subr.bf16.mxu0 0
        %3589 = vmatpush1.bf16.msra.mxu0 0
        %3590 = vmatprep.subr.bf16.mxu0 0
        %3591 = vmatpush1.bf16.msra.mxu0 0
        %3592 = vmatprep.subr.bf16.mxu0 0
        %3593 = vmatpush1.bf16.msra.mxu0 0
        %3594 = vmatprep.subr.bf16.mxu0 0
        %3595 = vmatpush1.bf16.msra.mxu0 0
        %3596 = vmatprep.subr.bf16.mxu0 0
        %3597 = vmatpush1.bf16.msra.mxu0 0
        %3598 = vmatprep.subr.bf16.mxu0 0
        %3599 = vmatpush1.bf16.msra.mxu0 0
        %3600 = vmatprep.subr.bf16.mxu0 0
        %3601 = vmatpush1.bf16.msra.mxu0 0
        %3602 = vmatprep.subr.bf16.mxu0 0
        %3603 = vmatpush1.bf16.msra.mxu0 0
        %3604 = vmatprep.subr.bf16.mxu0 0
        %3605 = vmatpush1.bf16.msra.mxu0 0
        %3606 = vmatprep.mubr.bf16.mxu0 0
        %3607 = vmatmul.mubr.bf16.gmra.mrb[0].mxu0 %v3569
        %v3608 = vpop.f32.mrb[0].mxu0
        %v3609 = vadd.f32 0.0, %v3608
        %v3610 = vpop.f32.mrb[0].mxu0
        %v3611 = vpop.f32.mrb[0].mxu0
        %v3612 = vpop.f32.mrb[0].mxu0
        %3613 = vdwg.mxu0
        %v3615 = vsel %vm3034, %v3470, 0
        %v3618 = vsel %vm3478, %v3474, 0
        %3620 = vmatprep.subr.bf16.mxu0 0
        %3621 = vmatpush1.bf16.msra.mxu0 %v3618
        %3622 = vmatprep.subr.bf16.mxu0 0
        %3623 = vmatpush1.bf16.msra.mxu0 0
        %3624 = vmatprep.subr.bf16.mxu0 0
        %3625 = vmatpush1.bf16.msra.mxu0 0
        %3626 = vmatprep.subr.bf16.mxu0 0
        %3627 = vmatpush1.bf16.msra.mxu0 0
        %3628 = vmatprep.subr.bf16.mxu0 0
        %3629 = vmatpush1.bf16.msra.mxu0 0
        %3630 = vmatprep.subr.bf16.mxu0 0
        %3631 = vmatpush1.bf16.msra.mxu0 0
        %3632 = vmatprep.subr.bf16.mxu0 0
        %3633 = vmatpush1.bf16.msra.mxu0 0
        %3634 = vmatprep.subr.bf16.mxu0 0
        %3635 = vmatpush1.bf16.msra.mxu0 0
        %3636 = vmatprep.subr.bf16.mxu0 0
        %3637 = vmatpush1.bf16.msra.mxu0 0
        %3638 = vmatprep.subr.bf16.mxu0 0
        %3639 = vmatpush1.bf16.msra.mxu0 0
        %3640 = vmatprep.subr.bf16.mxu0 0
        %3641 = vmatpush1.bf16.msra.mxu0 0
        %3642 = vmatprep.subr.bf16.mxu0 0
        %3643 = vmatpush1.bf16.msra.mxu0 0
        %3644 = vmatprep.subr.bf16.mxu0 0
        %3645 = vmatpush1.bf16.msra.mxu0 0
        %3646 = vmatprep.subr.bf16.mxu0 0
        %3647 = vmatpush1.bf16.msra.mxu0 0
        %3648 = vmatprep.subr.bf16.mxu0 0
        %3649 = vmatpush1.bf16.msra.mxu0 0
        %3650 = vmatprep.subr.bf16.mxu0 0
        %3651 = vmatpush1.bf16.msra.mxu0 0
        %3652 = vmatprep.mubr.bf16.mxu0 0
        %3653 = vmatmul.mubr.bf16.gmra.mrb[0].mxu0 %v3615
        %v3654 = vpop.f32.mrb[0].mxu0
        %v3655 = vadd.f32 0.0, %v3654
        %v3656 = vpop.f32.mrb[0].mxu0
        %v3657 = vpop.f32.mrb[0].mxu0
        %v3658 = vpop.f32.mrb[0].mxu0
        %3659 = vdwg.mxu0
        %v3660 = vsel %vm678, %v3517, 0.0
        %v3661 = vsel %vm678, %v3563, 0.0
        %v3662 = vadd.f32 %v3660, %v3661
        %v3663 = vsel %vm678, %v3609, 0.0
        %v3664 = vadd.f32 %v3662, %v3663
        %v3665 = vsel %vm678, %v3655, 0.0
        %v3666 = vadd.f32 %v3664, %v3665
        %v3667 = vld [vmem:[%s12] sm:$0x1]
        %v3669 = vlaneseq
        %v3670 = vshrl.u32 %v3669, 7
        %v3671 = vsub.s32 0, %v3670
        %v3672 = vrot.slane %v3667, %v3671
        %v3674 = vadd.f32 %v3666, %v3672
        %v3675 = vadd.f32 %v3674, %v653
        %v3676 = vld [vmem:[%s13] sm:$0x1]
        %v3677 = vld [vmem:[%s14] sm:$0x1]
        %v3678 = vsel %vm678, %v3675, 0.0
        %3679 = vadd.xlane.f32.xlu0 %v3678
        %v3680 = vpop.xlane.xlu0 %3679
        %v3681 = vrcp.pop 32.0
        %v3682 = vmul.f32 %v3680, %v3681
        %v3683 = vsub.f32 %v3675, %v3682
        %v3684 = vmul.f32 %v3683, %v3683
        %v3685 = vsel %vm678, %v3684, 0.0
        %3686 = vadd.xlane.f32.xlu0 %v3685
        %v3687 = vpop.xlane.xlu0 %3686
        %v3688 = vmul.f32 %v3687, %v3681
        %v3689 = vadd.f32 %v3688, 1e-05
        %v3690 = vrsqrt.pop %v3689
        %v3691 = vmul.f32 %v3683, %v3690
        %v3693 = vlaneseq
        %v3694 = vshrl.u32 %v3693, 7
        %v3695 = vsub.s32 0, %v3694
        %v3696 = vrot.slane %v3676, %v3695
        %v3698 = vmul.f32 %v3691, %v3696
        %v3700 = vlaneseq
        %v3701 = vshrl.u32 %v3700, 7
        %v3702 = vsub.s32 0, %v3701
        %v3703 = vrot.slane %v3677, %v3702
        %v3705 = vadd.f32 %v3698, %v3703
        %v3706 = vpack.c.bf16 %v3705, %v3705
        %v3707 = vld [vmem:[%s15] sm:$0xf]
        %v3708 = vld [vmem:[%s15 + $0x4] sm:$0xf]
        %v3709 = vld [vmem:[%s15 + $0x8] sm:$0xf]
        %v3710 = vld [vmem:[%s15 + $0xc] sm:$0xf]
        %v3711 = vld [vmem:[%s16] sm:$0x1]
        %v3713 = vlaneseq
        %v3714 = vshrl.u32 %v3713, 7
        %v3715 = vsub.s32 0, %v3714
        %v3716 = vrot.slane %v3711, %v3715
        %v3722 = vunpack.c.l.b16 %v3707
        %v3723 = vunpack.c.l.b16 %v3708
        %v3724 = vunpack.c.l.b16 %v3709
        %v3725 = vunpack.c.l.b16 %v3710
        %v3726 = vpack.c.b16 %v3723, %v3722
        %v3727 = vpack.c.b16 %v3725, %v3724
        %v3731 = vsel %vm678, %v3706, 0
        %3733 = vmatprep.subr.bf16.mxu0 0
        %3734 = vmatpush1.bf16.msra.mxu0 %v3726
        %3735 = vmatprep.subr.bf16.mxu0 0
        %3736 = vmatpush1.bf16.msra.mxu0 %v3727
        %3737 = vmatprep.subr.bf16.mxu0 0
        %3738 = vmatpush1.bf16.msra.mxu0 0
        %3739 = vmatprep.subr.bf16.mxu0 0
        %3740 = vmatpush1.bf16.msra.mxu0 0
        %3741 = vmatprep.subr.bf16.mxu0 0
        %3742 = vmatpush1.bf16.msra.mxu0 0
        %3743 = vmatprep.subr.bf16.mxu0 0
        %3744 = vmatpush1.bf16.msra.mxu0 0
        %3745 = vmatprep.subr.bf16.mxu0 0
        %3746 = vmatpush1.bf16.msra.mxu0 0
        %3747 = vmatprep.subr.bf16.mxu0 0
        %3748 = vmatpush1.bf16.msra.mxu0 0
        %3749 = vmatprep.subr.bf16.mxu0 0
        %3750 = vmatpush1.bf16.msra.mxu0 0
        %3751 = vmatprep.subr.bf16.mxu0 0
        %3752 = vmatpush1.bf16.msra.mxu0 0
        %3753 = vmatprep.subr.bf16.mxu0 0
        %3754 = vmatpush1.bf16.msra.mxu0 0
        %3755 = vmatprep.subr.bf16.mxu0 0
        %3756 = vmatpush1.bf16.msra.mxu0 0
        %3757 = vmatprep.subr.bf16.mxu0 0
        %3758 = vmatpush1.bf16.msra.mxu0 0
        %3759 = vmatprep.subr.bf16.mxu0 0
        %3760 = vmatpush1.bf16.msra.mxu0 0
        %3761 = vmatprep.subr.bf16.mxu0 0
        %3762 = vmatpush1.bf16.msra.mxu0 0
        %3763 = vmatprep.subr.bf16.mxu0 0
        %3764 = vmatpush1.bf16.msra.mxu0 0
        %3765 = vmatprep.mubr.bf16.mxu0 0
        %3766 = vmatmul.mubr.bf16.gmra.mrb[0].mxu0 %v3731
        %v3767 = vpop.f32.mrb[0].mxu0
        %v3768 = vadd.f32 %v3716, %v3767
        %v3769 = vpop.f32.mrb[0].mxu0
        %v3770 = vpop.f32.mrb[0].mxu0
        %v3771 = vpop.f32.mrb[0].mxu0
        %3772 = vdwg.mxu0
        %v3773 = vmax.f32 %v3768, 0.0
        %v3774 = vpack.c.bf16 %v3773, %v3773
        %v3775 = vld [vmem:[%s17] sm:$0xf]
        %v3776 = vld [vmem:[%s17 + $0x4] sm:$0xf]
        %v3777 = vld [vmem:[%s17 + $0x8] sm:$0xf]
        %v3778 = vld [vmem:[%s17 + $0xc] sm:$0xf]
        %v3779 = vld [vmem:[%s17 + $0x10] sm:$0xf]
        %v3780 = vld [vmem:[%s17 + $0x14] sm:$0xf]
        %v3781 = vld [vmem:[%s17 + $0x18] sm:$0xf]
        %v3782 = vld [vmem:[%s17 + $0x1c] sm:$0xf]
        %v3783 = vld [vmem:[%s17 + $0x20] sm:$0xf]
        %v3784 = vld [vmem:[%s17 + $0x24] sm:$0xf]
        %v3785 = vld [vmem:[%s17 + $0x28] sm:$0xf]
        %v3786 = vld [vmem:[%s17 + $0x2c] sm:$0xf]
        %v3787 = vld [vmem:[%s17 + $0x30] sm:$0xf]
        %v3788 = vld [vmem:[%s17 + $0x34] sm:$0xf]
        %v3789 = vld [vmem:[%s17 + $0x38] sm:$0xf]
        %v3790 = vld [vmem:[%s17 + $0x3c] sm:$0xf]
        %v3791 = vld [vmem:[%s18] sm:$0x1]
        %v3793 = vlaneseq
        %v3794 = vshrl.u32 %v3793, 7
        %v3795 = vsub.s32 0, %v3794
        %v3796 = vrot.slane %v3791, %v3795
        %v3814 = vunpack.c.l.b16 %v3775
        %v3815 = vunpack.c.l.b16 %v3776
        %v3816 = vunpack.c.l.b16 %v3777
        %v3817 = vunpack.c.l.b16 %v3778
        %v3818 = vunpack.c.l.b16 %v3779
        %v3819 = vunpack.c.l.b16 %v3780
        %v3820 = vunpack.c.l.b16 %v3781
        %v3821 = vunpack.c.l.b16 %v3782
        %v3822 = vunpack.c.l.b16 %v3783
        %v3823 = vunpack.c.l.b16 %v3784
        %v3824 = vunpack.c.l.b16 %v3785
        %v3825 = vunpack.c.l.b16 %v3786
        %v3826 = vunpack.c.l.b16 %v3787
        %v3827 = vunpack.c.l.b16 %v3788
        %v3828 = vunpack.c.l.b16 %v3789
        %v3829 = vunpack.c.l.b16 %v3790
        %v3830 = vpack.c.b16 %v3815, %v3814
        %v3831 = vpack.c.b16 %v3817, %v3816
        %v3832 = vpack.c.b16 %v3819, %v3818
        %v3833 = vpack.c.b16 %v3821, %v3820
        %v3834 = vpack.c.b16 %v3823, %v3822
        %v3835 = vpack.c.b16 %v3825, %v3824
        %v3836 = vpack.c.b16 %v3827, %v3826
        %v3837 = vpack.c.b16 %v3829, %v3828
        %3846 = vmatprep.subr.bf16.mxu0 0
        %3847 = vmatpush1.bf16.msra.mxu0 %v3830
        %3848 = vmatprep.subr.bf16.mxu0 0
        %3849 = vmatpush1.bf16.msra.mxu0 %v3831
        %3850 = vmatprep.subr.bf16.mxu0 0
        %3851 = vmatpush1.bf16.msra.mxu0 %v3832
        %3852 = vmatprep.subr.bf16.mxu0 0
        %3853 = vmatpush1.bf16.msra.mxu0 %v3833
        %3854 = vmatprep.subr.bf16.mxu0 0
        %3855 = vmatpush1.bf16.msra.mxu0 %v3834
        %3856 = vmatprep.subr.bf16.mxu0 0
        %3857 = vmatpush1.bf16.msra.mxu0 %v3835
        %3858 = vmatprep.subr.bf16.mxu0 0
        %3859 = vmatpush1.bf16.msra.mxu0 %v3836
        %3860 = vmatprep.subr.bf16.mxu0 0
        %3861 = vmatpush1.bf16.msra.mxu0 %v3837
        %3862 = vmatprep.subr.bf16.mxu0 0
        %3863 = vmatpush1.bf16.msra.mxu0 0
        %3864 = vmatprep.subr.bf16.mxu0 0
        %3865 = vmatpush1.bf16.msra.mxu0 0
        %3866 = vmatprep.subr.bf16.mxu0 0
        %3867 = vmatpush1.bf16.msra.mxu0 0
        %3868 = vmatprep.subr.bf16.mxu0 0
        %3869 = vmatpush1.bf16.msra.mxu0 0
        %3870 = vmatprep.subr.bf16.mxu0 0
        %3871 = vmatpush1.bf16.msra.mxu0 0
        %3872 = vmatprep.subr.bf16.mxu0 0
        %3873 = vmatpush1.bf16.msra.mxu0 0
        %3874 = vmatprep.subr.bf16.mxu0 0
        %3875 = vmatpush1.bf16.msra.mxu0 0
        %3876 = vmatprep.subr.bf16.mxu0 0
        %3877 = vmatpush1.bf16.msra.mxu0 0
        %3878 = vmatprep.mubr.bf16.mxu0 0
        %3879 = vmatmul.mubr.bf16.gmra.mrb[0].mxu0 %v3774
        %v3880 = vpop.f32.mrb[0].mxu0
        %v3881 = vadd.f32 %v3796, %v3880
        %v3882 = vpop.f32.mrb[0].mxu0
        %v3883 = vpop.f32.mrb[0].mxu0
        %v3884 = vpop.f32.mrb[0].mxu0
        %3885 = vdwg.mxu0
        %v3886 = vadd.f32 %v3881, %v3705
        %v3887 = vld [vmem:[%s19] sm:$0x1]
        %v3888 = vld [vmem:[%s20] sm:$0x1]
        %v3889 = vsel %vm678, %v3886, 0.0
        %3890 = vadd.xlane.f32.xlu0 %v3889
        %v3891 = vpop.xlane.xlu0 %3890
        %v3892 = vmul.f32 %v3891, %v3681
        %v3893 = vsub.f32 %v3886, %v3892
        %v3894 = vmul.f32 %v3893, %v3893
        %v3895 = vsel %vm678, %v3894, 0.0
        %3896 = vadd.xlane.f32.xlu0 %v3895
        %v3897 = vpop.xlane.xlu0 %3896
        %v3898 = vmul.f32 %v3897, %v3681
        %v3899 = vadd.f32 %v3898, 1e-05
        %v3900 = vrsqrt.pop %v3899
        %v3901 = vmul.f32 %v3893, %v3900
        %v3903 = vlaneseq
        %v3904 = vshrl.u32 %v3903, 7
        %v3905 = vsub.s32 0, %v3904
        %v3906 = vrot.slane %v3887, %v3905
        %v3908 = vmul.f32 %v3901, %v3906
        %v3910 = vlaneseq
        %v3911 = vshrl.u32 %v3910, 7
        %v3912 = vsub.s32 0, %v3911
        %v3913 = vrot.slane %v3888, %v3912
        %v3915 = vadd.f32 %v3908, %v3913
        %3916 = vst.msk [vmem:[%s647] sm:$0xff] %vm678, %v3915
        %s3917 = sand.u32 %s489, 1
        %s3918 = scalar_lea.sflag [#allocation3], %s3917
        %s3919 = sand.u32 %s489, 1
        %s3920 = smul.addr %s3919, 8
        %s3921 = scalar_lea.vmem [#allocation2], %s3920
        // Predicated region
        $region105: #{tpu_custom_call.1} parent=103 // pred_check
          %p3922 = pneg %p499
        $region106: #{tpu_custom_call.1} parent=103 // pred_check_branch
          %3924 = sbr.rel (%p3922) target = $region108
        $region107: #{tpu_custom_call.1} parent=103 // pred_region
          %s3926 = ssub.s32 128, 128
          %3927 = vsyncadd %s3918, %s3926
          %s3928 = smul.addr %s35, 128
          %s3929 = scalar_lea.hbm %s21, %s3928
          %s3931 = sshll.u32 %s3921, 4
          %s3932 = int_to_ptr.vmem [resolvable:$true] %s3931
          %3934 = dma.vmem_to_hbm [thread:$0]  %s3932, 128, %s3929, %s3918
        $region108: #{tpu_custom_call.1} parent=103 // pred_fallthru
          _
      $region104: #{tpu_custom_call.1} parent=5 // pred_fallthru
        _
      %p3935 = scmp.le.s32.totalorder 2, %s30
      // Predicated region
      $region109: #{tpu_custom_call.1} parent=5 // pred_check
        %p3936 = pneg %p3935
      $region110: #{tpu_custom_call.1} parent=5 // pred_check_branch
        %3938 = sbr.rel (%p3936) target = $region112
      $region111: #{tpu_custom_call.1} parent=5 // pred_region
        %s3939 = ssub.s32 %s30, 2
        // Predicated region
        $region113: #{tpu_custom_call.1} parent=111 // pred_check
          %p3940 = pneg %p505
        $region114: #{tpu_custom_call.1} parent=111 // pred_check_branch
          %3942 = sbr.rel (%p3940) target = $region116
        $region115: #{tpu_custom_call.1} parent=111 // pred_region
          %s3943 = sand.u32 %s490, 1
          %s3944 = scalar_lea.sflag [#allocation3], %s3943
          %s3945 = sand.u32 %s490, 1
          %s3946 = smul.addr %s3945, 8
          %s3947 = scalar_lea.vmem [#allocation2], %s3946
          %3948 = dma.done %s3944, 128
        $region116: #{tpu_custom_call.1} parent=111 // pred_fallthru
          _
      $region112: #{tpu_custom_call.1} parent=5 // pred_fallthru
        _
    $region6: #{tpu_custom_call.1} parent=1 // loop_footer
      %s34 = sadd.s32 1, %s30
    $region7: #{tpu_custom_call.1} parent=1 // loop_footer_branch
      %29 = sbr.rel target = $region3
    $region8: #{tpu_custom_call.1} parent=1 // loop_exit
      _
    %3949 = vsyncpa [#allocation3], 1
    %s3950 = scalar_lea.sflag [#allocation3], 1
    %3951 = vsyncpa %s3950, 1

</llo_original>
